<compile_context>
chip_gen: v7x
topology: tpu7x:2x2x1
jax: 0.10.0
libtpu: 0.0.40
codegen_flags: <defaults>
</compile_context>

<pallas_src>
import jax
import jax.numpy as jnp
from jax.experimental import pallas as pl
from jax.experimental.pallas import tpu as pltpu


def _make_kernel(H, D, mxu_dtype):
    """Builds the kernel body for a given head count / head dim."""

    def mm(a, b):
        if mxu_dtype is not None:
            a = a.astype(mxu_dtype)
            b = b.astype(mxu_dtype)
        return jnp.dot(a, b, preferred_element_type=jnp.float32)

    def kernel(q_ref, k_ref, v_ref, wq_ref, wk_ref, wv_ref, wo_ref, bo_ref,
               o_ref, attn_ref):
        # Input projections: three small MXU matmuls, (tile_n, D) @ (D, H*D).
        Q = mm(q_ref[...], wq_ref[...])
        K = mm(k_ref[...], wk_ref[...])
        V = mm(v_ref[...], wv_ref[...])

        # Per-sample H x H attention in the lane-dense (tile_n, H*D) layout
        # (no (N, H, D) reshape).  H and D are tiny -> statically unrolled.
        for h in range(H):
            qh = Q[:, h * D:(h + 1) * D]                        # (tile_n, D)

            # Packed logits (tile_n, H): one lane-segment dot per target head.
            logits = jnp.concatenate(
                [jnp.sum(qh * K[:, g * D:(g + 1) * D], axis=-1, keepdims=True)
                 for g in range(H)],
                axis=-1)                                        # (tile_n, H)

            # Numerically-stable, EXACT softmax over the H logits
            # (matches nn.Softmax(dim=-1); no approximate reciprocal).
            m = jnp.max(logits, axis=-1, keepdims=True)
            p = jnp.exp(logits - m)                             # (tile_n, H)
            inv = 1.0 / jnp.sum(p, axis=-1, keepdims=True)      # (tile_n, 1)

            # Unnormalized sum_g p[:, g] * V_g; normalize once per head.
            oh = p[:, 0:1] * V[:, 0:D]
            for g in range(1, H):
                oh = oh + p[:, g:g + 1] * V[:, g * D:(g + 1) * D]
            attn_ref[:, h * D:(h + 1) * D] = oh * inv           # (tile_n, D)

        # Output projection (lane-padded to 128 columns) + bias.  The HBM
        # output block is 128 lanes wide -> full, unmasked vector stores.
        o_ref[...] = mm(attn_ref[...], wo_ref[...]) + bo_ref[...]

    return kernel


def _pick_tile_n(n, max_tile=2048):
    """Largest VMEM-safe row tile that still leaves >= 2 grid steps."""
    for cand in (2048, 1024, 512, 256, 128):
        if cand <= max_tile and n % cand == 0 and n // cand >= 2:
            return cand
    if n <= max_tile:
        return n                      # small N: a single block is fine
    # Large, oddly-sized N: largest power-of-two divisor <= max_tile.
    t = 128
    while n % (t * 2) == 0 and t * 2 <= max_tile:
        t *= 2
    return t


def cross_attention(q, k, v, wq, wk, wv, wo, bo, *, tile_n=None,
                    mxu_dtype=None):
    """q, k, v: (N, D); wq/wk/wv: (D, H*D) in (in, out) layout; wo: (H*D, D);
    bo: (1, D).  Returns (N, D) float32.

    mxu_dtype: optional dtype (e.g. jnp.bfloat16) for MXU operands only; all
    softmax / elementwise math stays f32.  Default None keeps f32-exact MXU.
    """
    N, D = q.shape
    HD = wq.shape[1]
    H = HD // D
    out_pad = 128 * pl.cdiv(D, 128)        # lane-dense output width (>= 128)

    if tile_n is None:
        tile_n = _pick_tile_n(N)
    assert N % tile_n == 0, f"N={N} must be divisible by tile_n={tile_n}"
    grid = (N // tile_n,)

    # Zero-pad the output projection to a 128-lane-wide result.  The extra
    # columns are free on the MXU (output lanes are padded anyway) and the
    # slice back to D columns below fuses in XLA.
    wo_pad = jnp.zeros((HD, out_pad), wo.dtype).at[:, :D].set(wo)
    bo_pad = jnp.zeros((1, out_pad), bo.dtype).at[:, :D].set(bo)

    cost = pl.CostEstimate(
        flops=(2 * N * D * HD * 3           # Q / K / V projections
               + 4 * N * H * H * D          # logits + attn @ V
               + 2 * N * HD * out_pad),     # output projection
        transcendentals=N * H * H,          # exp
        bytes_accessed=4 * (3 * N * D + 3 * D * HD + HD * out_pad
                            + out_pad + N * out_pad),
    )

    out_padded = pl.pallas_call(
        _make_kernel(H, D, mxu_dtype),
        out_shape=jax.ShapeDtypeStruct((N, out_pad), jnp.float32),
        grid=grid,
        in_specs=[
            pl.BlockSpec((tile_n, D), lambda i: (i, 0)),       # q rows
            pl.BlockSpec((tile_n, D), lambda i: (i, 0)),       # k rows
            pl.BlockSpec((tile_n, D), lambda i: (i, 0)),       # v rows
            pl.BlockSpec((D, HD), lambda i: (0, 0)),           # Wq
            pl.BlockSpec((D, HD), lambda i: (0, 0)),           # Wk
            pl.BlockSpec((D, HD), lambda i: (0, 0)),           # Wv
            pl.BlockSpec((HD, out_pad), lambda i: (0, 0)),     # Wo (padded)
            pl.BlockSpec((1, out_pad), lambda i: (0, 0)),      # bo (padded)
        ],
        out_specs=pl.BlockSpec((tile_n, out_pad), lambda i: (i, 0)),
        scratch_shapes=[pltpu.VMEM((tile_n, HD), jnp.float32)],
        compiler_params=pltpu.CompilerParams(
            dimension_semantics=("parallel",)),
        cost_estimate=cost,
    )(q, k, v, wq, wk, wv, wo_pad, bo_pad)

    return out_padded[:, :D]


def cross_attention_ref(q, k, v, wq, wk, wv, wo, bo):
    """Pure-JAX reference mirroring the PyTorch forward."""
    N, D = q.shape
    H = wq.shape[1] // D
    Q = (q @ wq).reshape(N, H, D)
    K = (k @ wk).reshape(N, H, D)
    V = (v @ wv).reshape(N, H, D)
    attn = jnp.einsum('nhd,ngd->nhg', Q, K)       # no 1/sqrt(D), as in module
    attn = jax.nn.softmax(attn, axis=-1)
    out = jnp.einsum('nhg,ngd->nhd', attn, V).reshape(N, H * D)
    return out @ wo + bo


if __name__ == "__main__":
    # Scaled-down shapes consistent with the module (query_dim = key_dim =
    # value_dim = D, num_heads = H).  N is chosen so the auto tile heuristic
    # yields tile_n=128 -> grid=(2,): real pipelining and, on v7x, both TCs.
    N, D, H = 256, 32, 4

    key = jax.random.PRNGKey(0)
    ks = jax.random.split(key, 8)
    scale_in = 1.0 / jnp.sqrt(jnp.float32(D))
    scale_out = 1.0 / jnp.sqrt(jnp.float32(H * D))

    queries = jax.random.normal(ks[0], (N, D), jnp.float32)
    keys_ = jax.random.normal(ks[1], (N, D), jnp.float32)
    values = jax.random.normal(ks[2], (N, D), jnp.float32)

    # Weights in (in, out) layout; deterministic synthetic init.
    wq = jax.random.normal(ks[3], (D, H * D), jnp.float32) * scale_in
    wk = jax.random.normal(ks[4], (D, H * D), jnp.float32) * scale_in
    wv = jax.random.normal(ks[5], (D, H * D), jnp.float32) * scale_in
    wo = jax.random.normal(ks[6], (H * D, D), jnp.float32) * scale_out
    bo = jax.random.normal(ks[7], (1, D), jnp.float32) * 0.01

    out = cross_attention(queries, keys_, values, wq, wk, wv, wo, bo)
    out = jax.block_until_ready(out)

    ref = cross_attention_ref(queries, keys_, values, wq, wk, wv, wo, bo)
    assert out.shape == (N, D)
    max_err = float(jnp.max(jnp.abs(out - ref)))
    assert jnp.allclose(out, ref, atol=1e-3, rtol=1e-3), (
        f"mismatch vs reference (max abs err {max_err})")

    print("KERNEL_OK")
</pallas_src>

<mosaic_0001>
module attributes {stable_mosaic.version = 11 : i64} {
  func.func @kernel(%arg0: i32, %arg1: memref<128x32xf32, #tpu.memory_space<vmem>>, %arg2: memref<128x32xf32, #tpu.memory_space<vmem>>, %arg3: memref<128x32xf32, #tpu.memory_space<vmem>>, %arg4: memref<32x128xf32, #tpu.memory_space<vmem>>, %arg5: memref<32x128xf32, #tpu.memory_space<vmem>>, %arg6: memref<32x128xf32, #tpu.memory_space<vmem>>, %arg7: memref<128x128xf32, #tpu.memory_space<vmem>>, %arg8: memref<1x128xf32, #tpu.memory_space<vmem>>, %arg9: memref<128x128xf32, #tpu.memory_space<vmem>>, %arg10: memref<128x128xf32, #tpu.memory_space<vmem>>) attributes {dimension_semantics = [#tpu.dimension_semantics<parallel>], iteration_bounds = array<i64: 2>, scalar_prefetch = 0 : i64, scratch_operands = 1 : i64, tpu.core_type = #tpu.core_type<tc>, window_params = [{transform_indices = @transform_0, window_bounds = array<i64: 128, 32>}, {transform_indices = @transform_1, window_bounds = array<i64: 128, 32>}, {transform_indices = @transform_2, window_bounds = array<i64: 128, 32>}, {pipeline_mode = #tpu.pipeline_mode<synchronous>, transform_indices = @transform_3, window_bounds = array<i64: 32, 128>}, {pipeline_mode = #tpu.pipeline_mode<synchronous>, transform_indices = @transform_4, window_bounds = array<i64: 32, 128>}, {pipeline_mode = #tpu.pipeline_mode<synchronous>, transform_indices = @transform_5, window_bounds = array<i64: 32, 128>}, {pipeline_mode = #tpu.pipeline_mode<synchronous>, transform_indices = @transform_6, window_bounds = array<i64: 128, 128>}, {pipeline_mode = #tpu.pipeline_mode<synchronous>, transform_indices = @transform_7, window_bounds = array<i64: 1, 128>}, {transform_indices = @transform_8, window_bounds = array<i64: 128, 128>}]} {
    %c0 = arith.constant 0 : index
    %c0_0 = arith.constant 0 : index
    %0 = vector.load %arg1[%c0, %c0_0] : memref<128x32xf32, #tpu.memory_space<vmem>>, vector<128x32xf32>
    %c0_1 = arith.constant 0 : index
    %c0_2 = arith.constant 0 : index
    %1 = vector.load %arg4[%c0_1, %c0_2] : memref<32x128xf32, #tpu.memory_space<vmem>>, vector<32x128xf32>
    %cst = arith.constant dense<0.000000e+00> : vector<128x128xf32>
    %2 = tpu.matmul %0, %1, %cst {dimension_numbers = #tpu.dot_dimension_numbers<[1], [0], [0], [1], [0, 0, 1, 1], [], []>} : vector<128x32xf32>, vector<32x128xf32>, vector<128x128xf32> -> vector<128x128xf32>
    %c0_3 = arith.constant 0 : index
    %c0_4 = arith.constant 0 : index
    %3 = vector.load %arg2[%c0_3, %c0_4] : memref<128x32xf32, #tpu.memory_space<vmem>>, vector<128x32xf32>
    %c0_5 = arith.constant 0 : index
    %c0_6 = arith.constant 0 : index
    %4 = vector.load %arg5[%c0_5, %c0_6] : memref<32x128xf32, #tpu.memory_space<vmem>>, vector<32x128xf32>
    %cst_7 = arith.constant dense<0.000000e+00> : vector<128x128xf32>
    %5 = tpu.matmul %3, %4, %cst_7 {dimension_numbers = #tpu.dot_dimension_numbers<[1], [0], [0], [1], [0, 0, 1, 1], [], []>} : vector<128x32xf32>, vector<32x128xf32>, vector<128x128xf32> -> vector<128x128xf32>
    %c0_8 = arith.constant 0 : index
    %c0_9 = arith.constant 0 : index
    %6 = vector.load %arg3[%c0_8, %c0_9] : memref<128x32xf32, #tpu.memory_space<vmem>>, vector<128x32xf32>
    %c0_10 = arith.constant 0 : index
    %c0_11 = arith.constant 0 : index
    %7 = vector.load %arg6[%c0_10, %c0_11] : memref<32x128xf32, #tpu.memory_space<vmem>>, vector<32x128xf32>
    %cst_12 = arith.constant dense<0.000000e+00> : vector<128x128xf32>
    %8 = tpu.matmul %6, %7, %cst_12 {dimension_numbers = #tpu.dot_dimension_numbers<[1], [0], [0], [1], [0, 0, 1, 1], [], []>} : vector<128x32xf32>, vector<32x128xf32>, vector<128x128xf32> -> vector<128x128xf32>
    %9 = vector.extract_strided_slice %2 {offsets = [0, 0], sizes = [128, 32], strides = [1, 1]} : vector<128x128xf32> to vector<128x32xf32>
    %10 = vector.extract_strided_slice %5 {offsets = [0, 0], sizes = [128, 32], strides = [1, 1]} : vector<128x128xf32> to vector<128x32xf32>
    %11 = arith.mulf %9, %10 : vector<128x32xf32>
    %cst_13 = arith.constant dense<0.000000e+00> : vector<128xf32>
    %12 = vector.multi_reduction <add>, %11, %cst_13 [1] : vector<128x32xf32> to vector<128xf32>
    %13 = vector.shape_cast %12 : vector<128xf32> to vector<128x1xf32>
    %14 = vector.extract_strided_slice %5 {offsets = [0, 32], sizes = [128, 32], strides = [1, 1]} : vector<128x128xf32> to vector<128x32xf32>
    %15 = arith.mulf %9, %14 : vector<128x32xf32>
    %cst_14 = arith.constant dense<0.000000e+00> : vector<128xf32>
    %16 = vector.multi_reduction <add>, %15, %cst_14 [1] : vector<128x32xf32> to vector<128xf32>
    %17 = vector.shape_cast %16 : vector<128xf32> to vector<128x1xf32>
    %18 = vector.extract_strided_slice %5 {offsets = [0, 64], sizes = [128, 32], strides = [1, 1]} : vector<128x128xf32> to vector<128x32xf32>
    %19 = arith.mulf %9, %18 : vector<128x32xf32>
    %cst_15 = arith.constant dense<0.000000e+00> : vector<128xf32>
    %20 = vector.multi_reduction <add>, %19, %cst_15 [1] : vector<128x32xf32> to vector<128xf32>
    %21 = vector.shape_cast %20 : vector<128xf32> to vector<128x1xf32>
    %22 = vector.extract_strided_slice %5 {offsets = [0, 96], sizes = [128, 32], strides = [1, 1]} : vector<128x128xf32> to vector<128x32xf32>
    %23 = arith.mulf %9, %22 : vector<128x32xf32>
    %cst_16 = arith.constant dense<0.000000e+00> : vector<128xf32>
    %24 = vector.multi_reduction <add>, %23, %cst_16 [1] : vector<128x32xf32> to vector<128xf32>
    %25 = vector.shape_cast %24 : vector<128xf32> to vector<128x1xf32>
    %26 = tpu.concatenate %13, %17, %21, %25 in 1 : vector<128x1xf32>, vector<128x1xf32>, vector<128x1xf32>, vector<128x1xf32> -> vector<128x4xf32>
    %cst_17 = arith.constant dense<0xFF800000> : vector<128xf32>
    %27 = vector.multi_reduction <maximumf>, %26, %cst_17 [1] : vector<128x4xf32> to vector<128xf32>
    %28 = vector.shape_cast %27 : vector<128xf32> to vector<128x1xf32>
    %29 = vector.broadcast %28 : vector<128x1xf32> to vector<128x4xf32>
    %30 = arith.subf %26, %29 : vector<128x4xf32>
    %31 = math.exp %30 : vector<128x4xf32>
    %cst_18 = arith.constant dense<0.000000e+00> : vector<128xf32>
    %32 = vector.multi_reduction <add>, %31, %cst_18 [1] : vector<128x4xf32> to vector<128xf32>
    %33 = vector.shape_cast %32 : vector<128xf32> to vector<128x1xf32>
    %cst_19 = arith.constant 1.000000e+00 : f32
    %34 = vector.broadcast %cst_19 : f32 to vector<128x1xf32>
    %35 = arith.divf %34, %33 : vector<128x1xf32>
    %36 = vector.extract_strided_slice %31 {offsets = [0, 0], sizes = [128, 1], strides = [1, 1]} : vector<128x4xf32> to vector<128x1xf32>
    %37 = vector.extract_strided_slice %8 {offsets = [0, 0], sizes = [128, 32], strides = [1, 1]} : vector<128x128xf32> to vector<128x32xf32>
    %38 = vector.broadcast %36 : vector<128x1xf32> to vector<128x32xf32>
    %39 = arith.mulf %38, %37 : vector<128x32xf32>
    %40 = vector.extract_strided_slice %31 {offsets = [0, 1], sizes = [128, 1], strides = [1, 1]} : vector<128x4xf32> to vector<128x1xf32>
    %41 = vector.extract_strided_slice %8 {offsets = [0, 32], sizes = [128, 32], strides = [1, 1]} : vector<128x128xf32> to vector<128x32xf32>
    %42 = vector.broadcast %40 : vector<128x1xf32> to vector<128x32xf32>
    %43 = arith.mulf %42, %41 : vector<128x32xf32>
    %44 = arith.addf %39, %43 : vector<128x32xf32>
    %45 = vector.extract_strided_slice %31 {offsets = [0, 2], sizes = [128, 1], strides = [1, 1]} : vector<128x4xf32> to vector<128x1xf32>
    %46 = vector.extract_strided_slice %8 {offsets = [0, 64], sizes = [128, 32], strides = [1, 1]} : vector<128x128xf32> to vector<128x32xf32>
    %47 = vector.broadcast %45 : vector<128x1xf32> to vector<128x32xf32>
    %48 = arith.mulf %47, %46 : vector<128x32xf32>
    %49 = arith.addf %44, %48 : vector<128x32xf32>
    %50 = vector.extract_strided_slice %31 {offsets = [0, 3], sizes = [128, 1], strides = [1, 1]} : vector<128x4xf32> to vector<128x1xf32>
    %51 = vector.extract_strided_slice %8 {offsets = [0, 96], sizes = [128, 32], strides = [1, 1]} : vector<128x128xf32> to vector<128x32xf32>
    %52 = vector.broadcast %50 : vector<128x1xf32> to vector<128x32xf32>
    %53 = arith.mulf %52, %51 : vector<128x32xf32>
    %54 = arith.addf %49, %53 : vector<128x32xf32>
    %55 = vector.broadcast %35 : vector<128x1xf32> to vector<128x32xf32>
    %56 = arith.mulf %54, %55 : vector<128x32xf32>
    %c0_20 = arith.constant 0 : index
    %c0_21 = arith.constant 0 : index
    %57 = vector.load %arg10[%c0_20, %c0_21] : memref<128x128xf32, #tpu.memory_space<vmem>>, vector<128x32xf32>
    tpu.vector_store %arg10[%c0_20, %c0_21], %56 {strides = array<i32>} : memref<128x128xf32, #tpu.memory_space<vmem>>, vector<128x32xf32>,
    %58 = vector.extract_strided_slice %2 {offsets = [0, 32], sizes = [128, 32], strides = [1, 1]} : vector<128x128xf32> to vector<128x32xf32>
    %59 = vector.extract_strided_slice %5 {offsets = [0, 0], sizes = [128, 32], strides = [1, 1]} : vector<128x128xf32> to vector<128x32xf32>
    %60 = arith.mulf %58, %59 : vector<128x32xf32>
    %cst_22 = arith.constant dense<0.000000e+00> : vector<128xf32>
    %61 = vector.multi_reduction <add>, %60, %cst_22 [1] : vector<128x32xf32> to vector<128xf32>
    %62 = vector.shape_cast %61 : vector<128xf32> to vector<128x1xf32>
    %63 = vector.extract_strided_slice %5 {offsets = [0, 32], sizes = [128, 32], strides = [1, 1]} : vector<128x128xf32> to vector<128x32xf32>
    %64 = arith.mulf %58, %63 : vector<128x32xf32>
    %cst_23 = arith.constant dense<0.000000e+00> : vector<128xf32>
    %65 = vector.multi_reduction <add>, %64, %cst_23 [1] : vector<128x32xf32> to vector<128xf32>
    %66 = vector.shape_cast %65 : vector<128xf32> to vector<128x1xf32>
    %67 = vector.extract_strided_slice %5 {offsets = [0, 64], sizes = [128, 32], strides = [1, 1]} : vector<128x128xf32> to vector<128x32xf32>
    %68 = arith.mulf %58, %67 : vector<128x32xf32>
    %cst_24 = arith.constant dense<0.000000e+00> : vector<128xf32>
    %69 = vector.multi_reduction <add>, %68, %cst_24 [1] : vector<128x32xf32> to vector<128xf32>
    %70 = vector.shape_cast %69 : vector<128xf32> to vector<128x1xf32>
    %71 = vector.extract_strided_slice %5 {offsets = [0, 96], sizes = [128, 32], strides = [1, 1]} : vector<128x128xf32> to vector<128x32xf32>
    %72 = arith.mulf %58, %71 : vector<128x32xf32>
    %cst_25 = arith.constant dense<0.000000e+00> : vector<128xf32>
    %73 = vector.multi_reduction <add>, %72, %cst_25 [1] : vector<128x32xf32> to vector<128xf32>
    %74 = vector.shape_cast %73 : vector<128xf32> to vector<128x1xf32>
    %75 = tpu.concatenate %62, %66, %70, %74 in 1 : vector<128x1xf32>, vector<128x1xf32>, vector<128x1xf32>, vector<128x1xf32> -> vector<128x4xf32>
    %cst_26 = arith.constant dense<0xFF800000> : vector<128xf32>
    %76 = vector.multi_reduction <maximumf>, %75, %cst_26 [1] : vector<128x4xf32> to vector<128xf32>
    %77 = vector.shape_cast %76 : vector<128xf32> to vector<128x1xf32>
    %78 = vector.broadcast %77 : vector<128x1xf32> to vector<128x4xf32>
    %79 = arith.subf %75, %78 : vector<128x4xf32>
    %80 = math.exp %79 : vector<128x4xf32>
    %cst_27 = arith.constant dense<0.000000e+00> : vector<128xf32>
    %81 = vector.multi_reduction <add>, %80, %cst_27 [1] : vector<128x4xf32> to vector<128xf32>
    %82 = vector.shape_cast %81 : vector<128xf32> to vector<128x1xf32>
    %cst_28 = arith.constant 1.000000e+00 : f32
    %83 = vector.broadcast %cst_28 : f32 to vector<128x1xf32>
    %84 = arith.divf %83, %82 : vector<128x1xf32>
    %85 = vector.extract_strided_slice %80 {offsets = [0, 0], sizes = [128, 1], strides = [1, 1]} : vector<128x4xf32> to vector<128x1xf32>
    %86 = vector.extract_strided_slice %8 {offsets = [0, 0], sizes = [128, 32], strides = [1, 1]} : vector<128x128xf32> to vector<128x32xf32>
    %87 = vector.broadcast %85 : vector<128x1xf32> to vector<128x32xf32>
    %88 = arith.mulf %87, %86 : vector<128x32xf32>
    %89 = vector.extract_strided_slice %80 {offsets = [0, 1], sizes = [128, 1], strides = [1, 1]} : vector<128x4xf32> to vector<128x1xf32>
    %90 = vector.extract_strided_slice %8 {offsets = [0, 32], sizes = [128, 32], strides = [1, 1]} : vector<128x128xf32> to vector<128x32xf32>
    %91 = vector.broadcast %89 : vector<128x1xf32> to vector<128x32xf32>
    %92 = arith.mulf %91, %90 : vector<128x32xf32>
    %93 = arith.addf %88, %92 : vector<128x32xf32>
    %94 = vector.extract_strided_slice %80 {offsets = [0, 2], sizes = [128, 1], strides = [1, 1]} : vector<128x4xf32> to vector<128x1xf32>
    %95 = vector.extract_strided_slice %8 {offsets = [0, 64], sizes = [128, 32], strides = [1, 1]} : vector<128x128xf32> to vector<128x32xf32>
    %96 = vector.broadcast %94 : vector<128x1xf32> to vector<128x32xf32>
    %97 = arith.mulf %96, %95 : vector<128x32xf32>
    %98 = arith.addf %93, %97 : vector<128x32xf32>
    %99 = vector.extract_strided_slice %80 {offsets = [0, 3], sizes = [128, 1], strides = [1, 1]} : vector<128x4xf32> to vector<128x1xf32>
    %100 = vector.extract_strided_slice %8 {offsets = [0, 96], sizes = [128, 32], strides = [1, 1]} : vector<128x128xf32> to vector<128x32xf32>
    %101 = vector.broadcast %99 : vector<128x1xf32> to vector<128x32xf32>
    %102 = arith.mulf %101, %100 : vector<128x32xf32>
    %103 = arith.addf %98, %102 : vector<128x32xf32>
    %104 = vector.broadcast %84 : vector<128x1xf32> to vector<128x32xf32>
    %105 = arith.mulf %103, %104 : vector<128x32xf32>
    %c0_29 = arith.constant 0 : index
    %c32 = arith.constant 32 : index
    %106 = vector.load %arg10[%c0_29, %c32] : memref<128x128xf32, #tpu.memory_space<vmem>>, vector<128x32xf32>
    tpu.vector_store %arg10[%c0_29, %c32], %105 {strides = array<i32>} : memref<128x128xf32, #tpu.memory_space<vmem>>, vector<128x32xf32>,
    %107 = vector.extract_strided_slice %2 {offsets = [0, 64], sizes = [128, 32], strides = [1, 1]} : vector<128x128xf32> to vector<128x32xf32>
    %108 = vector.extract_strided_slice %5 {offsets = [0, 0], sizes = [128, 32], strides = [1, 1]} : vector<128x128xf32> to vector<128x32xf32>
    %109 = arith.mulf %107, %108 : vector<128x32xf32>
    %cst_30 = arith.constant dense<0.000000e+00> : vector<128xf32>
    %110 = vector.multi_reduction <add>, %109, %cst_30 [1] : vector<128x32xf32> to vector<128xf32>
    %111 = vector.shape_cast %110 : vector<128xf32> to vector<128x1xf32>
    %112 = vector.extract_strided_slice %5 {offsets = [0, 32], sizes = [128, 32], strides = [1, 1]} : vector<128x128xf32> to vector<128x32xf32>
    %113 = arith.mulf %107, %112 : vector<128x32xf32>
    %cst_31 = arith.constant dense<0.000000e+00> : vector<128xf32>
    %114 = vector.multi_reduction <add>, %113, %cst_31 [1] : vector<128x32xf32> to vector<128xf32>
    %115 = vector.shape_cast %114 : vector<128xf32> to vector<128x1xf32>
    %116 = vector.extract_strided_slice %5 {offsets = [0, 64], sizes = [128, 32], strides = [1, 1]} : vector<128x128xf32> to vector<128x32xf32>
    %117 = arith.mulf %107, %116 : vector<128x32xf32>
    %cst_32 = arith.constant dense<0.000000e+00> : vector<128xf32>
    %118 = vector.multi_reduction <add>, %117, %cst_32 [1] : vector<128x32xf32> to vector<128xf32>
    %119 = vector.shape_cast %118 : vector<128xf32> to vector<128x1xf32>
    %120 = vector.extract_strided_slice %5 {offsets = [0, 96], sizes = [128, 32], strides = [1, 1]} : vector<128x128xf32> to vector<128x32xf32>
    %121 = arith.mulf %107, %120 : vector<128x32xf32>
    %cst_33 = arith.constant dense<0.000000e+00> : vector<128xf32>
    %122 = vector.multi_reduction <add>, %121, %cst_33 [1] : vector<128x32xf32> to vector<128xf32>
    %123 = vector.shape_cast %122 : vector<128xf32> to vector<128x1xf32>
    %124 = tpu.concatenate %111, %115, %119, %123 in 1 : vector<128x1xf32>, vector<128x1xf32>, vector<128x1xf32>, vector<128x1xf32> -> vector<128x4xf32>
    %cst_34 = arith.constant dense<0xFF800000> : vector<128xf32>
    %125 = vector.multi_reduction <maximumf>, %124, %cst_34 [1] : vector<128x4xf32> to vector<128xf32>
    %126 = vector.shape_cast %125 : vector<128xf32> to vector<128x1xf32>
    %127 = vector.broadcast %126 : vector<128x1xf32> to vector<128x4xf32>
    %128 = arith.subf %124, %127 : vector<128x4xf32>
    %129 = math.exp %128 : vector<128x4xf32>
    %cst_35 = arith.constant dense<0.000000e+00> : vector<128xf32>
    %130 = vector.multi_reduction <add>, %129, %cst_35 [1] : vector<128x4xf32> to vector<128xf32>
    %131 = vector.shape_cast %130 : vector<128xf32> to vector<128x1xf32>
    %cst_36 = arith.constant 1.000000e+00 : f32
    %132 = vector.broadcast %cst_36 : f32 to vector<128x1xf32>
    %133 = arith.divf %132, %131 : vector<128x1xf32>
    %134 = vector.extract_strided_slice %129 {offsets = [0, 0], sizes = [128, 1], strides = [1, 1]} : vector<128x4xf32> to vector<128x1xf32>
    %135 = vector.extract_strided_slice %8 {offsets = [0, 0], sizes = [128, 32], strides = [1, 1]} : vector<128x128xf32> to vector<128x32xf32>
    %136 = vector.broadcast %134 : vector<128x1xf32> to vector<128x32xf32>
    %137 = arith.mulf %136, %135 : vector<128x32xf32>
    %138 = vector.extract_strided_slice %129 {offsets = [0, 1], sizes = [128, 1], strides = [1, 1]} : vector<128x4xf32> to vector<128x1xf32>
    %139 = vector.extract_strided_slice %8 {offsets = [0, 32], sizes = [128, 32], strides = [1, 1]} : vector<128x128xf32> to vector<128x32xf32>
    %140 = vector.broadcast %138 : vector<128x1xf32> to vector<128x32xf32>
    %141 = arith.mulf %140, %139 : vector<128x32xf32>
    %142 = arith.addf %137, %141 : vector<128x32xf32>
    %143 = vector.extract_strided_slice %129 {offsets = [0, 2], sizes = [128, 1], strides = [1, 1]} : vector<128x4xf32> to vector<128x1xf32>
    %144 = vector.extract_strided_slice %8 {offsets = [0, 64], sizes = [128, 32], strides = [1, 1]} : vector<128x128xf32> to vector<128x32xf32>
    %145 = vector.broadcast %143 : vector<128x1xf32> to vector<128x32xf32>
    %146 = arith.mulf %145, %144 : vector<128x32xf32>
    %147 = arith.addf %142, %146 : vector<128x32xf32>
    %148 = vector.extract_strided_slice %129 {offsets = [0, 3], sizes = [128, 1], strides = [1, 1]} : vector<128x4xf32> to vector<128x1xf32>
    %149 = vector.extract_strided_slice %8 {offsets = [0, 96], sizes = [128, 32], strides = [1, 1]} : vector<128x128xf32> to vector<128x32xf32>
    %150 = vector.broadcast %148 : vector<128x1xf32> to vector<128x32xf32>
    %151 = arith.mulf %150, %149 : vector<128x32xf32>
    %152 = arith.addf %147, %151 : vector<128x32xf32>
    %153 = vector.broadcast %133 : vector<128x1xf32> to vector<128x32xf32>
    %154 = arith.mulf %152, %153 : vector<128x32xf32>
    %c0_37 = arith.constant 0 : index
    %c64 = arith.constant 64 : index
    %155 = vector.load %arg10[%c0_37, %c64] : memref<128x128xf32, #tpu.memory_space<vmem>>, vector<128x32xf32>
    tpu.vector_store %arg10[%c0_37, %c64], %154 {strides = array<i32>} : memref<128x128xf32, #tpu.memory_space<vmem>>, vector<128x32xf32>,
    %156 = vector.extract_strided_slice %2 {offsets = [0, 96], sizes = [128, 32], strides = [1, 1]} : vector<128x128xf32> to vector<128x32xf32>
    %157 = vector.extract_strided_slice %5 {offsets = [0, 0], sizes = [128, 32], strides = [1, 1]} : vector<128x128xf32> to vector<128x32xf32>
    %158 = arith.mulf %156, %157 : vector<128x32xf32>
    %cst_38 = arith.constant dense<0.000000e+00> : vector<128xf32>
    %159 = vector.multi_reduction <add>, %158, %cst_38 [1] : vector<128x32xf32> to vector<128xf32>
    %160 = vector.shape_cast %159 : vector<128xf32> to vector<128x1xf32>
    %161 = vector.extract_strided_slice %5 {offsets = [0, 32], sizes = [128, 32], strides = [1, 1]} : vector<128x128xf32> to vector<128x32xf32>
    %162 = arith.mulf %156, %161 : vector<128x32xf32>
    %cst_39 = arith.constant dense<0.000000e+00> : vector<128xf32>
    %163 = vector.multi_reduction <add>, %162, %cst_39 [1] : vector<128x32xf32> to vector<128xf32>
    %164 = vector.shape_cast %163 : vector<128xf32> to vector<128x1xf32>
    %165 = vector.extract_strided_slice %5 {offsets = [0, 64], sizes = [128, 32], strides = [1, 1]} : vector<128x128xf32> to vector<128x32xf32>
    %166 = arith.mulf %156, %165 : vector<128x32xf32>
    %cst_40 = arith.constant dense<0.000000e+00> : vector<128xf32>
    %167 = vector.multi_reduction <add>, %166, %cst_40 [1] : vector<128x32xf32> to vector<128xf32>
    %168 = vector.shape_cast %167 : vector<128xf32> to vector<128x1xf32>
    %169 = vector.extract_strided_slice %5 {offsets = [0, 96], sizes = [128, 32], strides = [1, 1]} : vector<128x128xf32> to vector<128x32xf32>
    %170 = arith.mulf %156, %169 : vector<128x32xf32>
    %cst_41 = arith.constant dense<0.000000e+00> : vector<128xf32>
    %171 = vector.multi_reduction <add>, %170, %cst_41 [1] : vector<128x32xf32> to vector<128xf32>
    %172 = vector.shape_cast %171 : vector<128xf32> to vector<128x1xf32>
    %173 = tpu.concatenate %160, %164, %168, %172 in 1 : vector<128x1xf32>, vector<128x1xf32>, vector<128x1xf32>, vector<128x1xf32> -> vector<128x4xf32>
    %cst_42 = arith.constant dense<0xFF800000> : vector<128xf32>
    %174 = vector.multi_reduction <maximumf>, %173, %cst_42 [1] : vector<128x4xf32> to vector<128xf32>
    %175 = vector.shape_cast %174 : vector<128xf32> to vector<128x1xf32>
    %176 = vector.broadcast %175 : vector<128x1xf32> to vector<128x4xf32>
    %177 = arith.subf %173, %176 : vector<128x4xf32>
    %178 = math.exp %177 : vector<128x4xf32>
    %cst_43 = arith.constant dense<0.000000e+00> : vector<128xf32>
    %179 = vector.multi_reduction <add>, %178, %cst_43 [1] : vector<128x4xf32> to vector<128xf32>
    %180 = vector.shape_cast %179 : vector<128xf32> to vector<128x1xf32>
    %cst_44 = arith.constant 1.000000e+00 : f32
    %181 = vector.broadcast %cst_44 : f32 to vector<128x1xf32>
    %182 = arith.divf %181, %180 : vector<128x1xf32>
    %183 = vector.extract_strided_slice %178 {offsets = [0, 0], sizes = [128, 1], strides = [1, 1]} : vector<128x4xf32> to vector<128x1xf32>
    %184 = vector.extract_strided_slice %8 {offsets = [0, 0], sizes = [128, 32], strides = [1, 1]} : vector<128x128xf32> to vector<128x32xf32>
    %185 = vector.broadcast %183 : vector<128x1xf32> to vector<128x32xf32>
    %186 = arith.mulf %185, %184 : vector<128x32xf32>
    %187 = vector.extract_strided_slice %178 {offsets = [0, 1], sizes = [128, 1], strides = [1, 1]} : vector<128x4xf32> to vector<128x1xf32>
    %188 = vector.extract_strided_slice %8 {offsets = [0, 32], sizes = [128, 32], strides = [1, 1]} : vector<128x128xf32> to vector<128x32xf32>
    %189 = vector.broadcast %187 : vector<128x1xf32> to vector<128x32xf32>
    %190 = arith.mulf %189, %188 : vector<128x32xf32>
    %191 = arith.addf %186, %190 : vector<128x32xf32>
    %192 = vector.extract_strided_slice %178 {offsets = [0, 2], sizes = [128, 1], strides = [1, 1]} : vector<128x4xf32> to vector<128x1xf32>
    %193 = vector.extract_strided_slice %8 {offsets = [0, 64], sizes = [128, 32], strides = [1, 1]} : vector<128x128xf32> to vector<128x32xf32>
    %194 = vector.broadcast %192 : vector<128x1xf32> to vector<128x32xf32>
    %195 = arith.mulf %194, %193 : vector<128x32xf32>
    %196 = arith.addf %191, %195 : vector<128x32xf32>
    %197 = vector.extract_strided_slice %178 {offsets = [0, 3], sizes = [128, 1], strides = [1, 1]} : vector<128x4xf32> to vector<128x1xf32>
    %198 = vector.extract_strided_slice %8 {offsets = [0, 96], sizes = [128, 32], strides = [1, 1]} : vector<128x128xf32> to vector<128x32xf32>
    %199 = vector.broadcast %197 : vector<128x1xf32> to vector<128x32xf32>
    %200 = arith.mulf %199, %198 : vector<128x32xf32>
    %201 = arith.addf %196, %200 : vector<128x32xf32>
    %202 = vector.broadcast %182 : vector<128x1xf32> to vector<128x32xf32>
    %203 = arith.mulf %201, %202 : vector<128x32xf32>
    %c0_45 = arith.constant 0 : index
    %c96 = arith.constant 96 : index
    %204 = vector.load %arg10[%c0_45, %c96] : memref<128x128xf32, #tpu.memory_space<vmem>>, vector<128x32xf32>
    tpu.vector_store %arg10[%c0_45, %c96], %203 {strides = array<i32>} : memref<128x128xf32, #tpu.memory_space<vmem>>, vector<128x32xf32>,
    %c0_46 = arith.constant 0 : index
    %c0_47 = arith.constant 0 : index
    %205 = vector.load %arg10[%c0_46, %c0_47] : memref<128x128xf32, #tpu.memory_space<vmem>>, vector<128x128xf32>
    %c0_48 = arith.constant 0 : index
    %c0_49 = arith.constant 0 : index
    %206 = vector.load %arg7[%c0_48, %c0_49] : memref<128x128xf32, #tpu.memory_space<vmem>>, vector<128x128xf32>
    %cst_50 = arith.constant dense<0.000000e+00> : vector<128x128xf32>
    %207 = tpu.matmul %205, %206, %cst_50 {dimension_numbers = #tpu.dot_dimension_numbers<[1], [0], [0], [1], [0, 0, 1, 1], [], []>} : vector<128x128xf32>, vector<128x128xf32>, vector<128x128xf32> -> vector<128x128xf32>
    %c0_51 = arith.constant 0 : index
    %c0_52 = arith.constant 0 : index
    %208 = vector.load %arg8[%c0_51, %c0_52] : memref<1x128xf32, #tpu.memory_space<vmem>>, vector<1x128xf32>
    %209 = vector.broadcast %208 : vector<1x128xf32> to vector<128x128xf32>
    %210 = arith.addf %207, %209 : vector<128x128xf32>
    %c0_53 = arith.constant 0 : index
    %c0_54 = arith.constant 0 : index
    %211 = vector.load %arg9[%c0_53, %c0_54] : memref<128x128xf32, #tpu.memory_space<vmem>>, vector<128x128xf32>
    tpu.vector_store %arg9[%c0_53, %c0_54], %210 {strides = array<i32>} : memref<128x128xf32, #tpu.memory_space<vmem>>, vector<128x128xf32>,
    return
  }
  func.func @transform_0(%arg0: i32) -> (i32, i32) {
    %c0_i32 = arith.constant 0 : i32
    %c0_i32_0 = arith.constant 0 : i32
    return %arg0, %c0_i32 : i32, i32
  }
  func.func @transform_1(%arg0: i32) -> (i32, i32) {
    %c0_i32 = arith.constant 0 : i32
    %c0_i32_0 = arith.constant 0 : i32
    return %arg0, %c0_i32 : i32, i32
  }
  func.func @transform_2(%arg0: i32) -> (i32, i32) {
    %c0_i32 = arith.constant 0 : i32
    %c0_i32_0 = arith.constant 0 : i32
    return %arg0, %c0_i32 : i32, i32
  }
  func.func @transform_3(%arg0: i32) -> (i32, i32) {
    %c0_i32 = arith.constant 0 : i32
    %c0_i32_0 = arith.constant 0 : i32
    %c0_i32_1 = arith.constant 0 : i32
    return %c0_i32, %c0_i32_0 : i32, i32
  }
  func.func @transform_4(%arg0: i32) -> (i32, i32) {
    %c0_i32 = arith.constant 0 : i32
    %c0_i32_0 = arith.constant 0 : i32
    %c0_i32_1 = arith.constant 0 : i32
    return %c0_i32, %c0_i32_0 : i32, i32
  }
  func.func @transform_5(%arg0: i32) -> (i32, i32) {
    %c0_i32 = arith.constant 0 : i32
    %c0_i32_0 = arith.constant 0 : i32
    %c0_i32_1 = arith.constant 0 : i32
    return %c0_i32, %c0_i32_0 : i32, i32
  }
  func.func @transform_6(%arg0: i32) -> (i32, i32) {
    %c0_i32 = arith.constant 0 : i32
    %c0_i32_0 = arith.constant 0 : i32
    %c0_i32_1 = arith.constant 0 : i32
    return %c0_i32, %c0_i32_0 : i32, i32
  }
  func.func @transform_7(%arg0: i32) -> (i32, i32) {
    %c0_i32 = arith.constant 0 : i32
    %c0_i32_0 = arith.constant 0 : i32
    %c0_i32_1 = arith.constant 0 : i32
    return %c0_i32, %c0_i32_0 : i32, i32
  }
  func.func @transform_8(%arg0: i32) -> (i32, i32) {
    %c0_i32 = arith.constant 0 : i32
    %c0_i32_0 = arith.constant 0 : i32
    return %arg0, %c0_i32 : i32, i32
  }
}

</mosaic_0001>

<llo_original>
// kernel: tpu_custom_call.1
$region0: #{tpu_custom_call.1}
  #allocation0 [shape = 'u32[]', space=smem, size = 0x4, offset = 0x4, fixed_abs, tag = 'smem constant byte address 0x4 - core index']
  #allocation1 [shape = 'u32[144,128]{1,0:T(1,128)}', space=vmem, size = 0x12000, scoped, tag = 'internal scratch']
  #allocation2 [shape = 'f32[128,128]{1,0:T(8,128)}', space=vmem, size = 0x10000, scoped, tag = 'scratch operand']
  %s0 = inlined_call_operand.vmem [shape: f32[256,32], index: 0, kind: input, shape index: {}]
  %s1 = inlined_call_operand.vmem [shape: f32[256,32], index: 1, kind: input, shape index: {}]
  %s2 = inlined_call_operand.vmem [shape: f32[256,32], index: 2, kind: input, shape index: {}]
  %s3 = inlined_call_operand.vmem [shape: f32[32,128], index: 3, kind: input, shape index: {}]
  %s4 = inlined_call_operand.vmem [shape: f32[32,128], index: 4, kind: input, shape index: {}]
  %s5 = inlined_call_operand.vmem [shape: f32[32,128], index: 5, kind: input, shape index: {}]
  %s6 = inlined_call_operand.vmem [shape: f32[128,128], index: 6, kind: input, shape index: {}]
  %s7 = inlined_call_operand.vmem [shape: f32[1,128], index: 7, kind: input, shape index: {}]
  %s8 = inlined_call_operand.hbm [shape: f32[256,128], index: 8, kind: output, shape index: {}]
  %s9 = sld [smem:[#allocation0]]
  $region65: #{tpu_custom_call.1} parent=0
    _
  %s11 = ssub.s32 1, %s9
  %s12 = scalar_select 0, %s11, %s9
  $region1: #{tpu_custom_call.1} parent=0
    #allocation3 [shape = 'u8[131072]{0}', space=vmem, size = 0x20000, scoped, tag = 'output window, operand 0']
    #allocation4 [shape = 's32[2]{0}', space=sflag, size = 0x8, scoped, tag = 'scoped memory for tpu_custom_call.1']
    %13 = vsyncpa [#allocation4], 0
    %s14 = scalar_lea.sflag [#allocation4], 1
    %15 = vsyncpa %s14, 0
    loop: start=0, step=1, limit=4
    $region2: #{tpu_custom_call.1} parent=1 // loop_pre_header
      _
    $region3: #{tpu_custom_call.1} parent=1 // loop_header
      %s17 = sphi 0, %s21
      %p18 = scmp.ge.s32.totalorder %s17, 4
      %s27 = sphi 0, %s29
      %s30 = sphi 0, %s27
      %s31 = sphi 0, %s30
      %s47 = sphi 0, %s31
      %s53 = sphi 0, %s55
      %s56 = sphi 0, %s53
      %s57 = sphi 0, %s56
      %s73 = sphi 0, %s57
      %s79 = sphi 0, %s81
      %s82 = sphi 0, %s79
      %s83 = sphi 0, %s82
      %s99 = sphi 0, %s83
      %s103 = sphi 0, %s103
      %s105 = sphi 0, %s103
      %s106 = sphi 0, %s105
      %s120 = sphi 0, %s106
      %s124 = sphi 0, %s124
      %s126 = sphi 0, %s124
      %s127 = sphi 0, %s126
      %s141 = sphi 0, %s127
      %s145 = sphi 0, %s145
      %s147 = sphi 0, %s145
      %s148 = sphi 0, %s147
      %s162 = sphi 0, %s148
      %s166 = sphi 0, %s166
      %s168 = sphi 0, %s166
      %s169 = sphi 0, %s168
      %s183 = sphi 0, %s169
      %s187 = sphi 0, %s187
      %s189 = sphi 0, %s187
      %s190 = sphi 0, %s189
      %s204 = sphi 0, %s190
      %s210 = sphi 0, %s212
      %s213 = sphi 0, %s210
      %s214 = sphi 0, %s213
      %s230 = sphi 0, %s214
    $region4: #{tpu_custom_call.1} parent=1 // loop_header_branch
      %20 = sbr.rel (%p18) target = $region8
    $region5: #{tpu_custom_call.1} parent=1 // loop_body
      %s22 = ssub.s32 %s17, 1
      %s23 = ssub.s32 %s17, 2
      %s24 = sadd.s32 %s17, 1
      %s25 = ssub.s32 %s17, %s24
      %p26 = scmp.eq.s32.totalorder %s25, 0
      %s28 = sadd.s32 %s27, 1
      %s29 = scalar_select %p26, %s27, %s28
      %p32 = pneg %p26
      %p33 = scmp.eq.s32.totalorder %s17, 1
      %p34 = por %p32, %p33
      %p35 = scmp.ne.s32.totalorder %s27, %s30
      %p36 = scmp.eq.s32.totalorder %s17, 0
      %p37 = por %p35, %p36
      %p38 = scmp.ne.s32.totalorder %s27, %s30
      %p39 = scmp.eq.s32.totalorder %s22, 1
      %p40 = por %p38, %p39
      %p41 = scmp.ne.s32.totalorder %s30, %s31
      %p42 = scmp.eq.s32.totalorder %s22, 0
      %p43 = por %p41, %p42
      %p44 = scmp.ne.s32.totalorder %s30, %s31
      %p45 = scmp.eq.s32.totalorder %s23, 1
      %p46 = por %p44, %p45
      %p48 = scmp.ne.s32.totalorder %s31, %s47
      %p49 = scmp.eq.s32.totalorder %s23, 0
      %p50 = por %p48, %p49
      %s51 = ssub.s32 %s17, %s24
      %p52 = scmp.eq.s32.totalorder %s51, 0
      %s54 = sadd.s32 %s53, 1
      %s55 = scalar_select %p52, %s53, %s54
      %p58 = pneg %p52
      %p59 = scmp.eq.s32.totalorder %s17, 1
      %p60 = por %p58, %p59
      %p61 = scmp.ne.s32.totalorder %s53, %s56
      %p62 = scmp.eq.s32.totalorder %s17, 0
      %p63 = por %p61, %p62
      %p64 = scmp.ne.s32.totalorder %s53, %s56
      %p65 = scmp.eq.s32.totalorder %s22, 1
      %p66 = por %p64, %p65
      %p67 = scmp.ne.s32.totalorder %s56, %s57
      %p68 = scmp.eq.s32.totalorder %s22, 0
      %p69 = por %p67, %p68
      %p70 = scmp.ne.s32.totalorder %s56, %s57
      %p71 = scmp.eq.s32.totalorder %s23, 1
      %p72 = por %p70, %p71
      %p74 = scmp.ne.s32.totalorder %s57, %s73
      %p75 = scmp.eq.s32.totalorder %s23, 0
      %p76 = por %p74, %p75
      %s77 = ssub.s32 %s17, %s24
      %p78 = scmp.eq.s32.totalorder %s77, 0
      %s80 = sadd.s32 %s79, 1
      %s81 = scalar_select %p78, %s79, %s80
      %p84 = pneg %p78
      %p85 = scmp.eq.s32.totalorder %s17, 1
      %p86 = por %p84, %p85
      %p87 = scmp.ne.s32.totalorder %s79, %s82
      %p88 = scmp.eq.s32.totalorder %s17, 0
      %p89 = por %p87, %p88
      %p90 = scmp.ne.s32.totalorder %s79, %s82
      %p91 = scmp.eq.s32.totalorder %s22, 1
      %p92 = por %p90, %p91
      %p93 = scmp.ne.s32.totalorder %s82, %s83
      %p94 = scmp.eq.s32.totalorder %s22, 0
      %p95 = por %p93, %p94
      %p96 = scmp.ne.s32.totalorder %s82, %s83
      %p97 = scmp.eq.s32.totalorder %s23, 1
      %p98 = por %p96, %p97
      %p100 = scmp.ne.s32.totalorder %s83, %s99
      %p101 = scmp.eq.s32.totalorder %s23, 0
      %p102 = por %p100, %p101
      %s104 = sadd.s32 %s103, 1
      %p107 = scmp.eq.s32.totalorder %s17, 1
      %p108 = scmp.ne.s32.totalorder %s103, %s105
      %p109 = scmp.eq.s32.totalorder %s17, 0
      %p110 = por %p108, %p109
      %p111 = scmp.ne.s32.totalorder %s103, %s105
      %p112 = scmp.eq.s32.totalorder %s22, 1
      %p113 = por %p111, %p112
      %p114 = scmp.ne.s32.totalorder %s105, %s106
      %p115 = scmp.eq.s32.totalorder %s22, 0
      %p116 = por %p114, %p115
      %p117 = scmp.ne.s32.totalorder %s105, %s106
      %p118 = scmp.eq.s32.totalorder %s23, 1
      %p119 = por %p117, %p118
      %p121 = scmp.ne.s32.totalorder %s106, %s120
      %p122 = scmp.eq.s32.totalorder %s23, 0
      %p123 = por %p121, %p122
      %s125 = sadd.s32 %s124, 1
      %p128 = scmp.eq.s32.totalorder %s17, 1
      %p129 = scmp.ne.s32.totalorder %s124, %s126
      %p130 = scmp.eq.s32.totalorder %s17, 0
      %p131 = por %p129, %p130
      %p132 = scmp.ne.s32.totalorder %s124, %s126
      %p133 = scmp.eq.s32.totalorder %s22, 1
      %p134 = por %p132, %p133
      %p135 = scmp.ne.s32.totalorder %s126, %s127
      %p136 = scmp.eq.s32.totalorder %s22, 0
      %p137 = por %p135, %p136
      %p138 = scmp.ne.s32.totalorder %s126, %s127
      %p139 = scmp.eq.s32.totalorder %s23, 1
      %p140 = por %p138, %p139
      %p142 = scmp.ne.s32.totalorder %s127, %s141
      %p143 = scmp.eq.s32.totalorder %s23, 0
      %p144 = por %p142, %p143
      %s146 = sadd.s32 %s145, 1
      %p149 = scmp.eq.s32.totalorder %s17, 1
      %p150 = scmp.ne.s32.totalorder %s145, %s147
      %p151 = scmp.eq.s32.totalorder %s17, 0
      %p152 = por %p150, %p151
      %p153 = scmp.ne.s32.totalorder %s145, %s147
      %p154 = scmp.eq.s32.totalorder %s22, 1
      %p155 = por %p153, %p154
      %p156 = scmp.ne.s32.totalorder %s147, %s148
      %p157 = scmp.eq.s32.totalorder %s22, 0
      %p158 = por %p156, %p157
      %p159 = scmp.ne.s32.totalorder %s147, %s148
      %p160 = scmp.eq.s32.totalorder %s23, 1
      %p161 = por %p159, %p160
      %p163 = scmp.ne.s32.totalorder %s148, %s162
      %p164 = scmp.eq.s32.totalorder %s23, 0
      %p165 = por %p163, %p164
      %s167 = sadd.s32 %s166, 1
      %p170 = scmp.eq.s32.totalorder %s17, 1
      %p171 = scmp.ne.s32.totalorder %s166, %s168
      %p172 = scmp.eq.s32.totalorder %s17, 0
      %p173 = por %p171, %p172
      %p174 = scmp.ne.s32.totalorder %s166, %s168
      %p175 = scmp.eq.s32.totalorder %s22, 1
      %p176 = por %p174, %p175
      %p177 = scmp.ne.s32.totalorder %s168, %s169
      %p178 = scmp.eq.s32.totalorder %s22, 0
      %p179 = por %p177, %p178
      %p180 = scmp.ne.s32.totalorder %s168, %s169
      %p181 = scmp.eq.s32.totalorder %s23, 1
      %p182 = por %p180, %p181
      %p184 = scmp.ne.s32.totalorder %s169, %s183
      %p185 = scmp.eq.s32.totalorder %s23, 0
      %p186 = por %p184, %p185
      %s188 = sadd.s32 %s187, 1
      %p191 = scmp.eq.s32.totalorder %s17, 1
      %p192 = scmp.ne.s32.totalorder %s187, %s189
      %p193 = scmp.eq.s32.totalorder %s17, 0
      %p194 = por %p192, %p193
      %p195 = scmp.ne.s32.totalorder %s187, %s189
      %p196 = scmp.eq.s32.totalorder %s22, 1
      %p197 = por %p195, %p196
      %p198 = scmp.ne.s32.totalorder %s189, %s190
      %p199 = scmp.eq.s32.totalorder %s22, 0
      %p200 = por %p198, %p199
      %p201 = scmp.ne.s32.totalorder %s189, %s190
      %p202 = scmp.eq.s32.totalorder %s23, 1
      %p203 = por %p201, %p202
      %p205 = scmp.ne.s32.totalorder %s190, %s204
      %p206 = scmp.eq.s32.totalorder %s23, 0
      %p207 = por %p205, %p206
      %s208 = ssub.s32 %s17, %s24
      %p209 = scmp.eq.s32.totalorder %s208, 0
      %s211 = sadd.s32 %s210, 1
      %s212 = scalar_select %p209, %s210, %s211
      %p215 = pneg %p209
      %p216 = scmp.eq.s32.totalorder %s17, 1
      %p217 = por %p215, %p216
      %p218 = scmp.ne.s32.totalorder %s210, %s213
      %p219 = scmp.eq.s32.totalorder %s17, 0
      %p220 = por %p218, %p219
      %p221 = scmp.ne.s32.totalorder %s210, %s213
      %p222 = scmp.eq.s32.totalorder %s22, 1
      %p223 = por %p221, %p222
      %p224 = scmp.ne.s32.totalorder %s213, %s214
      %p225 = scmp.eq.s32.totalorder %s22, 0
      %p226 = por %p224, %p225
      %p227 = scmp.ne.s32.totalorder %s213, %s214
      %p228 = scmp.eq.s32.totalorder %s23, 1
      %p229 = por %p227, %p228
      %p231 = scmp.ne.s32.totalorder %s214, %s230
      %p232 = scmp.eq.s32.totalorder %s23, 0
      %p233 = por %p231, %p232
      %p234 = scmp.le.s32.totalorder 1, %s17
      %p235 = scmp.lt.s32.totalorder %s17, 3
      %p236 = pnand %p234, %p235
      %p237 = pneg %p236
      // Predicated region
      $region9: #{tpu_custom_call.1} parent=5 // pred_check
        _
      $region10: #{tpu_custom_call.1} parent=5 // pred_check_branch
        %239 = sbr.rel (%p236) target = $region12
      $region11: #{tpu_custom_call.1} parent=5 // pred_region
        %s240 = ssub.s32 %s17, 1
        // Predicated region
        $region13: #{tpu_custom_call.1} parent=11 // pred_check
          %p241 = pneg %p116
        $region14: #{tpu_custom_call.1} parent=11 // pred_check_branch
          %243 = sbr.rel (%p241) target = $region16
        $region15: #{tpu_custom_call.1} parent=11 // pred_region
          _
        $region16: #{tpu_custom_call.1} parent=11 // pred_fallthru
          _
        // Predicated region
        $region17: #{tpu_custom_call.1} parent=11 // pred_check
          %p244 = pneg %p137
        $region18: #{tpu_custom_call.1} parent=11 // pred_check_branch
          %246 = sbr.rel (%p244) target = $region20
        $region19: #{tpu_custom_call.1} parent=11 // pred_region
          _
        $region20: #{tpu_custom_call.1} parent=11 // pred_fallthru
          _
        // Predicated region
        $region21: #{tpu_custom_call.1} parent=11 // pred_check
          %p247 = pneg %p158
        $region22: #{tpu_custom_call.1} parent=11 // pred_check_branch
          %249 = sbr.rel (%p247) target = $region24
        $region23: #{tpu_custom_call.1} parent=11 // pred_region
          _
        $region24: #{tpu_custom_call.1} parent=11 // pred_fallthru
          _
        // Predicated region
        $region25: #{tpu_custom_call.1} parent=11 // pred_check
          %p250 = pneg %p179
        $region26: #{tpu_custom_call.1} parent=11 // pred_check_branch
          %252 = sbr.rel (%p250) target = $region28
        $region27: #{tpu_custom_call.1} parent=11 // pred_region
          _
        $region28: #{tpu_custom_call.1} parent=11 // pred_fallthru
          _
        // Predicated region
        $region29: #{tpu_custom_call.1} parent=11 // pred_check
          %p253 = pneg %p200
        $region30: #{tpu_custom_call.1} parent=11 // pred_check_branch
          %255 = sbr.rel (%p253) target = $region32
        $region31: #{tpu_custom_call.1} parent=11 // pred_region
          _
        $region32: #{tpu_custom_call.1} parent=11 // pred_fallthru
          _
      $region12: #{tpu_custom_call.1} parent=5 // pred_fallthru
        _
      %p256 = scmp.lt.s32.totalorder %s17, 2
      // Predicated region
      $region33: #{tpu_custom_call.1} parent=5 // pred_check
        %p257 = pneg %p256
      $region34: #{tpu_custom_call.1} parent=5 // pred_check_branch
        %259 = sbr.rel (%p257) target = $region36
      $region35: #{tpu_custom_call.1} parent=5 // pred_region
        // Predicated region
        $region37: #{tpu_custom_call.1} parent=35 // pred_check
          %p260 = pneg %p37
        $region38: #{tpu_custom_call.1} parent=35 // pred_check_branch
          %262 = sbr.rel (%p260) target = $region40
        $region39: #{tpu_custom_call.1} parent=35 // pred_region
          %s263 = smul.u32 16, %s17
          %p264 = scmp.lt.s32.totalorder %s263, 31
          %s265 = scalar_select %p264, %s263, 31
          %s266 = smul.addr %s265, 8
          %s267 = scalar_lea.vmem %s0, %s266
          %s268 = smul.u32 16, %s17
        $region40: #{tpu_custom_call.1} parent=35 // pred_fallthru
          _
        // Predicated region
        $region41: #{tpu_custom_call.1} parent=35 // pred_check
          %p269 = pneg %p63
        $region42: #{tpu_custom_call.1} parent=35 // pred_check_branch
          %271 = sbr.rel (%p269) target = $region44
        $region43: #{tpu_custom_call.1} parent=35 // pred_region
          %s272 = smul.u32 16, %s17
          %p273 = scmp.lt.s32.totalorder %s272, 31
          %s274 = scalar_select %p273, %s272, 31
          %s275 = smul.addr %s274, 8
          %s276 = scalar_lea.vmem %s1, %s275
          %s277 = smul.u32 16, %s17
        $region44: #{tpu_custom_call.1} parent=35 // pred_fallthru
          _
        // Predicated region
        $region45: #{tpu_custom_call.1} parent=35 // pred_check
          %p278 = pneg %p89
        $region46: #{tpu_custom_call.1} parent=35 // pred_check_branch
          %280 = sbr.rel (%p278) target = $region48
        $region47: #{tpu_custom_call.1} parent=35 // pred_region
          %s281 = smul.u32 16, %s17
          %p282 = scmp.lt.s32.totalorder %s281, 31
          %s283 = scalar_select %p282, %s281, 31
          %s284 = smul.addr %s283, 8
          %s285 = scalar_lea.vmem %s2, %s284
          %s286 = smul.u32 16, %s17
        $region48: #{tpu_custom_call.1} parent=35 // pred_fallthru
          _
      $region36: #{tpu_custom_call.1} parent=5 // pred_fallthru
        _
      %p287 = scmp.le.s32.totalorder 1, %s17
      %p288 = scmp.lt.s32.totalorder %s17, 3
      %p289 = pnand %p287, %p288
      %p290 = pneg %p289
      // Predicated region
      $region49: #{tpu_custom_call.1} parent=5 // pred_check
        _
      $region50: #{tpu_custom_call.1} parent=5 // pred_check_branch
        %292 = sbr.rel (%p289) target = $region52
      $region51: #{tpu_custom_call.1} parent=5 // pred_region
        %s293 = ssub.s32 %s17, 1
        %s294 = smul.u32 16, %s22
        %p295 = scmp.lt.s32.totalorder %s294, 31
        %s296 = scalar_select %p295, %s294, 31
        %s297 = smul.addr %s296, 8
        %s298 = scalar_lea.vmem %s0, %s297
        %p299 = pneg %p43
        %p300 = pneg %p40
        %s301 = smul.u32 16, %s22
        %p302 = scmp.lt.s32.totalorder %s301, 31
        %s303 = scalar_select %p302, %s301, 31
        %s304 = smul.addr %s303, 8
        %s305 = scalar_lea.vmem %s1, %s304
        %p306 = pneg %p69
        %p307 = pneg %p66
        %s308 = smul.u32 16, %s22
        %p309 = scmp.lt.s32.totalorder %s308, 31
        %s310 = scalar_select %p309, %s308, 31
        %s311 = smul.addr %s310, 8
        %s312 = scalar_lea.vmem %s2, %s311
        %p313 = pneg %p95
        %p314 = pneg %p92
        %p315 = pneg %p116
        %p316 = pneg %p113
        %p317 = pneg %p137
        %p318 = pneg %p134
        %p319 = pneg %p158
        %p320 = pneg %p155
        %p321 = pneg %p179
        %p322 = pneg %p176
        %p323 = pneg %p200
        %p324 = pneg %p197
        %p325 = pneg %p226
        %p326 = pneg %p223
        %s327 = sand.u32 %s213, 1
        %s328 = scalar_lea.sflag [#allocation4], %s327
        %s329 = sand.u32 %s213, 1
        %s330 = smul.addr %s329, 128
        %s331 = scalar_lea.vmem [#allocation3], %s330
        %s332 = smul.u32 16, %s22
        %p333 = scmp.lt.s32.totalorder %s332, 31
        %s334 = scalar_select %p333, %s332, 31
        %s335 = smul.addr %s334, 8
        %s336 = scalar_lea.vmem %s0, %s335
        %s337 = smul.u32 16, %s22
        %s338 = smul.u32 16, %s22
        %p339 = scmp.lt.s32.totalorder %s338, 31
        %s340 = scalar_select %p339, %s338, 31
        %s341 = smul.addr %s340, 8
        %s342 = scalar_lea.vmem %s1, %s341
        %s343 = smul.u32 16, %s22
        %s344 = smul.u32 16, %s22
        %p345 = scmp.lt.s32.totalorder %s344, 31
        %s346 = scalar_select %p345, %s344, 31
        %s347 = smul.addr %s346, 8
        %s348 = scalar_lea.vmem %s2, %s347
        %s349 = smul.u32 16, %s22
        %s350 = smul.u32 16, %s22
        %v351 = vld [vmem:[%s336] sm:$0xff]
        %v352 = vld [vmem:[%s336 + $0x8] sm:$0xff]
        %v353 = vld [vmem:[%s336 + $0x10] sm:$0xff]
        %v354 = vld [vmem:[%s336 + $0x18] sm:$0xff]
        %v355 = vld [vmem:[%s336 + $0x20] sm:$0xff]
        %v356 = vld [vmem:[%s336 + $0x28] sm:$0xff]
        %v357 = vld [vmem:[%s336 + $0x30] sm:$0xff]
        %v358 = vld [vmem:[%s336 + $0x38] sm:$0xff]
        %v359 = vld [vmem:[%s336 + $0x40] sm:$0xff]
        %v360 = vld [vmem:[%s336 + $0x48] sm:$0xff]
        %v361 = vld [vmem:[%s336 + $0x50] sm:$0xff]
        %v362 = vld [vmem:[%s336 + $0x58] sm:$0xff]
        %v363 = vld [vmem:[%s336 + $0x60] sm:$0xff]
        %v364 = vld [vmem:[%s336 + $0x68] sm:$0xff]
        %v365 = vld [vmem:[%s336 + $0x70] sm:$0xff]
        %v366 = vld [vmem:[%s336 + $0x78] sm:$0xff]
        %v367 = vld [vmem:[%s3] sm:$0xff]
        %v368 = vld [vmem:[%s3 + $0x8] sm:$0xff]
        %v369 = vld [vmem:[%s3 + $0x10] sm:$0xff]
        %v370 = vld [vmem:[%s3 + $0x18] sm:$0xff]
        %vm371 = vcmask 261120
        %v373 = vsel %vm371, %v351, 0
        %v376 = vsel %vm371, %v352, 0
        %v379 = vsel %vm371, %v353, 0
        %v382 = vsel %vm371, %v354, 0
        %v385 = vsel %vm371, %v355, 0
        %v388 = vsel %vm371, %v356, 0
        %v391 = vsel %vm371, %v357, 0
        %v394 = vsel %vm371, %v358, 0
        %v397 = vsel %vm371, %v359, 0
        %v400 = vsel %vm371, %v360, 0
        %v403 = vsel %vm371, %v361, 0
        %v406 = vsel %vm371, %v362, 0
        %v409 = vsel %vm371, %v363, 0
        %v412 = vsel %vm371, %v364, 0
        %v415 = vsel %vm371, %v365, 0
        %v418 = vsel %vm371, %v366, 0
        %420 = vmatprep.subr.mxu0 0.0
        %421 = vmatpush1.msra.mxu0 %v367
        %422 = vmatprep.subr.mxu0 0.0
        %423 = vmatpush1.msra.mxu0 %v368
        %424 = vmatprep.subr.mxu0 0.0
        %425 = vmatpush1.msra.mxu0 %v369
        %426 = vmatprep.subr.mxu0 0.0
        %427 = vmatpush1.msra.mxu0 %v370
        %428 = vmatprep.subr.mxu0 0.0
        %429 = vmatpush1.msra.mxu0 0.0
        %430 = vmatprep.subr.mxu0 0.0
        %431 = vmatpush1.msra.mxu0 0.0
        %432 = vmatprep.subr.mxu0 0.0
        %433 = vmatpush1.msra.mxu0 0.0
        %434 = vmatprep.subr.mxu0 0.0
        %435 = vmatpush1.msra.mxu0 0.0
        %436 = vmatprep.subr.mxu0 0.0
        %437 = vmatpush1.msra.mxu0 0.0
        %438 = vmatprep.subr.mxu0 0.0
        %439 = vmatpush1.msra.mxu0 0.0
        %440 = vmatprep.subr.mxu0 0.0
        %441 = vmatpush1.msra.mxu0 0.0
        %442 = vmatprep.subr.mxu0 0.0
        %443 = vmatpush1.msra.mxu0 0.0
        %444 = vmatprep.subr.mxu0 0.0
        %445 = vmatpush1.msra.mxu0 0.0
        %446 = vmatprep.subr.mxu0 0.0
        %447 = vmatpush1.msra.mxu0 0.0
        %448 = vmatprep.subr.mxu0 0.0
        %449 = vmatpush1.msra.mxu0 0.0
        %450 = vmatprep.subr.mxu0 0.0
        %451 = vmatpush1.msra.mxu0 0.0
        %452 = vmatprep.subr.mxu0 0.0
        %453 = vmatpush1.msra.mxu0 0.0
        %454 = vmatprep.subr.mxu0 0.0
        %455 = vmatpush1.msra.mxu0 0.0
        %456 = vmatprep.subr.mxu0 0.0
        %457 = vmatpush1.msra.mxu0 0.0
        %458 = vmatprep.subr.mxu0 0.0
        %459 = vmatpush1.msra.mxu0 0.0
        %460 = vmatprep.subr.mxu0 0.0
        %461 = vmatpush1.msra.mxu0 0.0
        %462 = vmatprep.subr.mxu0 0.0
        %463 = vmatpush1.msra.mxu0 0.0
        %464 = vmatprep.subr.mxu0 0.0
        %465 = vmatpush1.msra.mxu0 0.0
        %466 = vmatprep.subr.mxu0 0.0
        %467 = vmatpush1.msra.mxu0 0.0
        %468 = vmatprep.subr.mxu0 0.0
        %469 = vmatpush1.msra.mxu0 0.0
        %470 = vmatprep.subr.mxu0 0.0
        %471 = vmatpush1.msra.mxu0 0.0
        %472 = vmatprep.subr.mxu0 0.0
        %473 = vmatpush1.msra.mxu0 0.0
        %474 = vmatprep.subr.mxu0 0.0
        %475 = vmatpush1.msra.mxu0 0.0
        %476 = vmatprep.subr.mxu0 0.0
        %477 = vmatpush1.msra.mxu0 0.0
        %478 = vmatprep.subr.mxu0 0.0
        %479 = vmatpush1.msra.mxu0 0.0
        %480 = vmatprep.subr.mxu0 0.0
        %481 = vmatpush1.msra.mxu0 0.0
        %482 = vmatprep.subr.mxu0 0.0
        %483 = vmatpush1.msra.mxu0 0.0
        %484 = vmatprep.mubr.f32.mxu0 0.0
        %485 = vmatmul.mubr.f32.gmra.mrb[0].mxu0 %v373
        %v486 = vpop.f32.mrb[0].mxu0
        %v487 = vadd.f32 0.0, %v486
        %v488 = vpop.f32.mrb[0].mxu0
        %489 = vmatprep.mubr.f32.mxu0 0.0
        %490 = vmatmul.mubr.f32.gmra.mrb[0].mxu0 %v376
        %v491 = vpop.f32.mrb[0].mxu0
        %v492 = vadd.f32 0.0, %v491
        %v493 = vpop.f32.mrb[0].mxu0
        %494 = vmatprep.mubr.f32.mxu0 0.0
        %495 = vmatmul.mubr.f32.gmra.mrb[0].mxu0 %v379
        %v496 = vpop.f32.mrb[0].mxu0
        %v497 = vadd.f32 0.0, %v496
        %v498 = vpop.f32.mrb[0].mxu0
        %499 = vmatprep.mubr.f32.mxu0 0.0
        %500 = vmatmul.mubr.f32.gmra.mrb[0].mxu0 %v382
        %v501 = vpop.f32.mrb[0].mxu0
        %v502 = vadd.f32 0.0, %v501
        %v503 = vpop.f32.mrb[0].mxu0
        %504 = vmatprep.mubr.f32.mxu0 0.0
        %505 = vmatmul.mubr.f32.gmra.mrb[0].mxu0 %v385
        %v506 = vpop.f32.mrb[0].mxu0
        %v507 = vadd.f32 0.0, %v506
        %v508 = vpop.f32.mrb[0].mxu0
        %509 = vmatprep.mubr.f32.mxu0 0.0
        %510 = vmatmul.mubr.f32.gmra.mrb[0].mxu0 %v388
        %v511 = vpop.f32.mrb[0].mxu0
        %v512 = vadd.f32 0.0, %v511
        %v513 = vpop.f32.mrb[0].mxu0
        %514 = vmatprep.mubr.f32.mxu0 0.0
        %515 = vmatmul.mubr.f32.gmra.mrb[0].mxu0 %v391
        %v516 = vpop.f32.mrb[0].mxu0
        %v517 = vadd.f32 0.0, %v516
        %v518 = vpop.f32.mrb[0].mxu0
        %519 = vmatprep.mubr.f32.mxu0 0.0
        %520 = vmatmul.mubr.f32.gmra.mrb[0].mxu0 %v394
        %v521 = vpop.f32.mrb[0].mxu0
        %v522 = vadd.f32 0.0, %v521
        %v523 = vpop.f32.mrb[0].mxu0
        %524 = vmatprep.mubr.f32.mxu0 0.0
        %525 = vmatmul.mubr.f32.gmra.mrb[0].mxu0 %v397
        %v526 = vpop.f32.mrb[0].mxu0
        %v527 = vadd.f32 0.0, %v526
        %v528 = vpop.f32.mrb[0].mxu0
        %529 = vmatprep.mubr.f32.mxu0 0.0
        %530 = vmatmul.mubr.f32.gmra.mrb[0].mxu0 %v400
        %v531 = vpop.f32.mrb[0].mxu0
        %v532 = vadd.f32 0.0, %v531
        %v533 = vpop.f32.mrb[0].mxu0
        %534 = vmatprep.mubr.f32.mxu0 0.0
        %535 = vmatmul.mubr.f32.gmra.mrb[0].mxu0 %v403
        %v536 = vpop.f32.mrb[0].mxu0
        %v537 = vadd.f32 0.0, %v536
        %v538 = vpop.f32.mrb[0].mxu0
        %539 = vmatprep.mubr.f32.mxu0 0.0
        %540 = vmatmul.mubr.f32.gmra.mrb[0].mxu0 %v406
        %v541 = vpop.f32.mrb[0].mxu0
        %v542 = vadd.f32 0.0, %v541
        %v543 = vpop.f32.mrb[0].mxu0
        %544 = vmatprep.mubr.f32.mxu0 0.0
        %545 = vmatmul.mubr.f32.gmra.mrb[0].mxu0 %v409
        %v546 = vpop.f32.mrb[0].mxu0
        %v547 = vadd.f32 0.0, %v546
        %v548 = vpop.f32.mrb[0].mxu0
        %549 = vmatprep.mubr.f32.mxu0 0.0
        %550 = vmatmul.mubr.f32.gmra.mrb[0].mxu0 %v412
        %v551 = vpop.f32.mrb[0].mxu0
        %v552 = vadd.f32 0.0, %v551
        %v553 = vpop.f32.mrb[0].mxu0
        %554 = vmatprep.mubr.f32.mxu0 0.0
        %555 = vmatmul.mubr.f32.gmra.mrb[0].mxu0 %v415
        %v556 = vpop.f32.mrb[0].mxu0
        %v557 = vadd.f32 0.0, %v556
        %v558 = vpop.f32.mrb[0].mxu0
        %559 = vmatprep.mubr.f32.mxu0 0.0
        %560 = vmatmul.mubr.f32.gmra.mrb[0].mxu0 %v418
        %v561 = vpop.f32.mrb[0].mxu0
        %v562 = vadd.f32 0.0, %v561
        %v563 = vpop.f32.mrb[0].mxu0
        %564 = vdwg.mxu0
        %v565 = vld [vmem:[%s342] sm:$0xff]
        %v566 = vld [vmem:[%s342 + $0x8] sm:$0xff]
        %v567 = vld [vmem:[%s342 + $0x10] sm:$0xff]
        %v568 = vld [vmem:[%s342 + $0x18] sm:$0xff]
        %v569 = vld [vmem:[%s342 + $0x20] sm:$0xff]
        %v570 = vld [vmem:[%s342 + $0x28] sm:$0xff]
        %v571 = vld [vmem:[%s342 + $0x30] sm:$0xff]
        %v572 = vld [vmem:[%s342 + $0x38] sm:$0xff]
        %v573 = vld [vmem:[%s342 + $0x40] sm:$0xff]
        %v574 = vld [vmem:[%s342 + $0x48] sm:$0xff]
        %v575 = vld [vmem:[%s342 + $0x50] sm:$0xff]
        %v576 = vld [vmem:[%s342 + $0x58] sm:$0xff]
        %v577 = vld [vmem:[%s342 + $0x60] sm:$0xff]
        %v578 = vld [vmem:[%s342 + $0x68] sm:$0xff]
        %v579 = vld [vmem:[%s342 + $0x70] sm:$0xff]
        %v580 = vld [vmem:[%s342 + $0x78] sm:$0xff]
        %v581 = vld [vmem:[%s4] sm:$0xff]
        %v582 = vld [vmem:[%s4 + $0x8] sm:$0xff]
        %v583 = vld [vmem:[%s4 + $0x10] sm:$0xff]
        %v584 = vld [vmem:[%s4 + $0x18] sm:$0xff]
        %v586 = vsel %vm371, %v565, 0
        %v589 = vsel %vm371, %v566, 0
        %v592 = vsel %vm371, %v567, 0
        %v595 = vsel %vm371, %v568, 0
        %v598 = vsel %vm371, %v569, 0
        %v601 = vsel %vm371, %v570, 0
        %v604 = vsel %vm371, %v571, 0
        %v607 = vsel %vm371, %v572, 0
        %v610 = vsel %vm371, %v573, 0
        %v613 = vsel %vm371, %v574, 0
        %v616 = vsel %vm371, %v575, 0
        %v619 = vsel %vm371, %v576, 0
        %v622 = vsel %vm371, %v577, 0
        %v625 = vsel %vm371, %v578, 0
        %v628 = vsel %vm371, %v579, 0
        %v631 = vsel %vm371, %v580, 0
        %633 = vmatprep.subr.mxu0 0.0
        %634 = vmatpush1.msra.mxu0 %v581
        %635 = vmatprep.subr.mxu0 0.0
        %636 = vmatpush1.msra.mxu0 %v582
        %637 = vmatprep.subr.mxu0 0.0
        %638 = vmatpush1.msra.mxu0 %v583
        %639 = vmatprep.subr.mxu0 0.0
        %640 = vmatpush1.msra.mxu0 %v584
        %641 = vmatprep.subr.mxu0 0.0
        %642 = vmatpush1.msra.mxu0 0.0
        %643 = vmatprep.subr.mxu0 0.0
        %644 = vmatpush1.msra.mxu0 0.0
        %645 = vmatprep.subr.mxu0 0.0
        %646 = vmatpush1.msra.mxu0 0.0
        %647 = vmatprep.subr.mxu0 0.0
        %648 = vmatpush1.msra.mxu0 0.0
        %649 = vmatprep.subr.mxu0 0.0
        %650 = vmatpush1.msra.mxu0 0.0
        %651 = vmatprep.subr.mxu0 0.0
        %652 = vmatpush1.msra.mxu0 0.0
        %653 = vmatprep.subr.mxu0 0.0
        %654 = vmatpush1.msra.mxu0 0.0
        %655 = vmatprep.subr.mxu0 0.0
        %656 = vmatpush1.msra.mxu0 0.0
        %657 = vmatprep.subr.mxu0 0.0
        %658 = vmatpush1.msra.mxu0 0.0
        %659 = vmatprep.subr.mxu0 0.0
        %660 = vmatpush1.msra.mxu0 0.0
        %661 = vmatprep.subr.mxu0 0.0
        %662 = vmatpush1.msra.mxu0 0.0
        %663 = vmatprep.subr.mxu0 0.0
        %664 = vmatpush1.msra.mxu0 0.0
        %665 = vmatprep.subr.mxu0 0.0
        %666 = vmatpush1.msra.mxu0 0.0
        %667 = vmatprep.subr.mxu0 0.0
        %668 = vmatpush1.msra.mxu0 0.0
        %669 = vmatprep.subr.mxu0 0.0
        %670 = vmatpush1.msra.mxu0 0.0
        %671 = vmatprep.subr.mxu0 0.0
        %672 = vmatpush1.msra.mxu0 0.0
        %673 = vmatprep.subr.mxu0 0.0
        %674 = vmatpush1.msra.mxu0 0.0
        %675 = vmatprep.subr.mxu0 0.0
        %676 = vmatpush1.msra.mxu0 0.0
        %677 = vmatprep.subr.mxu0 0.0
        %678 = vmatpush1.msra.mxu0 0.0
        %679 = vmatprep.subr.mxu0 0.0
        %680 = vmatpush1.msra.mxu0 0.0
        %681 = vmatprep.subr.mxu0 0.0
        %682 = vmatpush1.msra.mxu0 0.0
        %683 = vmatprep.subr.mxu0 0.0
        %684 = vmatpush1.msra.mxu0 0.0
        %685 = vmatprep.subr.mxu0 0.0
        %686 = vmatpush1.msra.mxu0 0.0
        %687 = vmatprep.subr.mxu0 0.0
        %688 = vmatpush1.msra.mxu0 0.0
        %689 = vmatprep.subr.mxu0 0.0
        %690 = vmatpush1.msra.mxu0 0.0
        %691 = vmatprep.subr.mxu0 0.0
        %692 = vmatpush1.msra.mxu0 0.0
        %693 = vmatprep.subr.mxu0 0.0
        %694 = vmatpush1.msra.mxu0 0.0
        %695 = vmatprep.subr.mxu0 0.0
        %696 = vmatpush1.msra.mxu0 0.0
        %697 = vmatprep.mubr.f32.mxu0 0.0
        %698 = vmatmul.mubr.f32.gmra.mrb[0].mxu0 %v586
        %v699 = vpop.f32.mrb[0].mxu0
        %v700 = vadd.f32 0.0, %v699
        %v701 = vpop.f32.mrb[0].mxu0
        %702 = vmatprep.mubr.f32.mxu0 0.0
        %703 = vmatmul.mubr.f32.gmra.mrb[0].mxu0 %v589
        %v704 = vpop.f32.mrb[0].mxu0
        %v705 = vadd.f32 0.0, %v704
        %v706 = vpop.f32.mrb[0].mxu0
        %707 = vmatprep.mubr.f32.mxu0 0.0
        %708 = vmatmul.mubr.f32.gmra.mrb[0].mxu0 %v592
        %v709 = vpop.f32.mrb[0].mxu0
        %v710 = vadd.f32 0.0, %v709
        %v711 = vpop.f32.mrb[0].mxu0
        %712 = vmatprep.mubr.f32.mxu0 0.0
        %713 = vmatmul.mubr.f32.gmra.mrb[0].mxu0 %v595
        %v714 = vpop.f32.mrb[0].mxu0
        %v715 = vadd.f32 0.0, %v714
        %v716 = vpop.f32.mrb[0].mxu0
        %717 = vmatprep.mubr.f32.mxu0 0.0
        %718 = vmatmul.mubr.f32.gmra.mrb[0].mxu0 %v598
        %v719 = vpop.f32.mrb[0].mxu0
        %v720 = vadd.f32 0.0, %v719
        %v721 = vpop.f32.mrb[0].mxu0
        %722 = vmatprep.mubr.f32.mxu0 0.0
        %723 = vmatmul.mubr.f32.gmra.mrb[0].mxu0 %v601
        %v724 = vpop.f32.mrb[0].mxu0
        %v725 = vadd.f32 0.0, %v724
        %v726 = vpop.f32.mrb[0].mxu0
        %727 = vmatprep.mubr.f32.mxu0 0.0
        %728 = vmatmul.mubr.f32.gmra.mrb[0].mxu0 %v604
        %v729 = vpop.f32.mrb[0].mxu0
        %v730 = vadd.f32 0.0, %v729
        %v731 = vpop.f32.mrb[0].mxu0
        %732 = vmatprep.mubr.f32.mxu0 0.0
        %733 = vmatmul.mubr.f32.gmra.mrb[0].mxu0 %v607
        %v734 = vpop.f32.mrb[0].mxu0
        %v735 = vadd.f32 0.0, %v734
        %v736 = vpop.f32.mrb[0].mxu0
        %737 = vmatprep.mubr.f32.mxu0 0.0
        %738 = vmatmul.mubr.f32.gmra.mrb[0].mxu0 %v610
        %v739 = vpop.f32.mrb[0].mxu0
        %v740 = vadd.f32 0.0, %v739
        %v741 = vpop.f32.mrb[0].mxu0
        %742 = vmatprep.mubr.f32.mxu0 0.0
        %743 = vmatmul.mubr.f32.gmra.mrb[0].mxu0 %v613
        %v744 = vpop.f32.mrb[0].mxu0
        %v745 = vadd.f32 0.0, %v744
        %v746 = vpop.f32.mrb[0].mxu0
        %747 = vmatprep.mubr.f32.mxu0 0.0
        %748 = vmatmul.mubr.f32.gmra.mrb[0].mxu0 %v616
        %v749 = vpop.f32.mrb[0].mxu0
        %v750 = vadd.f32 0.0, %v749
        %v751 = vpop.f32.mrb[0].mxu0
        %752 = vmatprep.mubr.f32.mxu0 0.0
        %753 = vmatmul.mubr.f32.gmra.mrb[0].mxu0 %v619
        %v754 = vpop.f32.mrb[0].mxu0
        %v755 = vadd.f32 0.0, %v754
        %v756 = vpop.f32.mrb[0].mxu0
        %757 = vmatprep.mubr.f32.mxu0 0.0
        %758 = vmatmul.mubr.f32.gmra.mrb[0].mxu0 %v622
        %v759 = vpop.f32.mrb[0].mxu0
        %v760 = vadd.f32 0.0, %v759
        %v761 = vpop.f32.mrb[0].mxu0
        %762 = vmatprep.mubr.f32.mxu0 0.0
        %763 = vmatmul.mubr.f32.gmra.mrb[0].mxu0 %v625
        %v764 = vpop.f32.mrb[0].mxu0
        %v765 = vadd.f32 0.0, %v764
        %v766 = vpop.f32.mrb[0].mxu0
        %767 = vmatprep.mubr.f32.mxu0 0.0
        %768 = vmatmul.mubr.f32.gmra.mrb[0].mxu0 %v628
        %v769 = vpop.f32.mrb[0].mxu0
        %v770 = vadd.f32 0.0, %v769
        %v771 = vpop.f32.mrb[0].mxu0
        %772 = vmatprep.mubr.f32.mxu0 0.0
        %773 = vmatmul.mubr.f32.gmra.mrb[0].mxu0 %v631
        %v774 = vpop.f32.mrb[0].mxu0
        %v775 = vadd.f32 0.0, %v774
        %v776 = vpop.f32.mrb[0].mxu0
        %777 = vdwg.mxu0
        %v778 = vld [vmem:[%s348] sm:$0xff]
        %v779 = vld [vmem:[%s348 + $0x8] sm:$0xff]
        %v780 = vld [vmem:[%s348 + $0x10] sm:$0xff]
        %v781 = vld [vmem:[%s348 + $0x18] sm:$0xff]
        %v782 = vld [vmem:[%s348 + $0x20] sm:$0xff]
        %v783 = vld [vmem:[%s348 + $0x28] sm:$0xff]
        %v784 = vld [vmem:[%s348 + $0x30] sm:$0xff]
        %v785 = vld [vmem:[%s348 + $0x38] sm:$0xff]
        %v786 = vld [vmem:[%s348 + $0x40] sm:$0xff]
        %v787 = vld [vmem:[%s348 + $0x48] sm:$0xff]
        %v788 = vld [vmem:[%s348 + $0x50] sm:$0xff]
        %v789 = vld [vmem:[%s348 + $0x58] sm:$0xff]
        %v790 = vld [vmem:[%s348 + $0x60] sm:$0xff]
        %v791 = vld [vmem:[%s348 + $0x68] sm:$0xff]
        %v792 = vld [vmem:[%s348 + $0x70] sm:$0xff]
        %v793 = vld [vmem:[%s348 + $0x78] sm:$0xff]
        %v794 = vld [vmem:[%s5] sm:$0xff]
        %v795 = vld [vmem:[%s5 + $0x8] sm:$0xff]
        %v796 = vld [vmem:[%s5 + $0x10] sm:$0xff]
        %v797 = vld [vmem:[%s5 + $0x18] sm:$0xff]
        %v799 = vsel %vm371, %v778, 0
        %v802 = vsel %vm371, %v779, 0
        %v805 = vsel %vm371, %v780, 0
        %v808 = vsel %vm371, %v781, 0
        %v811 = vsel %vm371, %v782, 0
        %v814 = vsel %vm371, %v783, 0
        %v817 = vsel %vm371, %v784, 0
        %v820 = vsel %vm371, %v785, 0
        %v823 = vsel %vm371, %v786, 0
        %v826 = vsel %vm371, %v787, 0
        %v829 = vsel %vm371, %v788, 0
        %v832 = vsel %vm371, %v789, 0
        %v835 = vsel %vm371, %v790, 0
        %v838 = vsel %vm371, %v791, 0
        %v841 = vsel %vm371, %v792, 0
        %v844 = vsel %vm371, %v793, 0
        %846 = vmatprep.subr.mxu0 0.0
        %847 = vmatpush1.msra.mxu0 %v794
        %848 = vmatprep.subr.mxu0 0.0
        %849 = vmatpush1.msra.mxu0 %v795
        %850 = vmatprep.subr.mxu0 0.0
        %851 = vmatpush1.msra.mxu0 %v796
        %852 = vmatprep.subr.mxu0 0.0
        %853 = vmatpush1.msra.mxu0 %v797
        %854 = vmatprep.subr.mxu0 0.0
        %855 = vmatpush1.msra.mxu0 0.0
        %856 = vmatprep.subr.mxu0 0.0
        %857 = vmatpush1.msra.mxu0 0.0
        %858 = vmatprep.subr.mxu0 0.0
        %859 = vmatpush1.msra.mxu0 0.0
        %860 = vmatprep.subr.mxu0 0.0
        %861 = vmatpush1.msra.mxu0 0.0
        %862 = vmatprep.subr.mxu0 0.0
        %863 = vmatpush1.msra.mxu0 0.0
        %864 = vmatprep.subr.mxu0 0.0
        %865 = vmatpush1.msra.mxu0 0.0
        %866 = vmatprep.subr.mxu0 0.0
        %867 = vmatpush1.msra.mxu0 0.0
        %868 = vmatprep.subr.mxu0 0.0
        %869 = vmatpush1.msra.mxu0 0.0
        %870 = vmatprep.subr.mxu0 0.0
        %871 = vmatpush1.msra.mxu0 0.0
        %872 = vmatprep.subr.mxu0 0.0
        %873 = vmatpush1.msra.mxu0 0.0
        %874 = vmatprep.subr.mxu0 0.0
        %875 = vmatpush1.msra.mxu0 0.0
        %876 = vmatprep.subr.mxu0 0.0
        %877 = vmatpush1.msra.mxu0 0.0
        %878 = vmatprep.subr.mxu0 0.0
        %879 = vmatpush1.msra.mxu0 0.0
        %880 = vmatprep.subr.mxu0 0.0
        %881 = vmatpush1.msra.mxu0 0.0
        %882 = vmatprep.subr.mxu0 0.0
        %883 = vmatpush1.msra.mxu0 0.0
        %884 = vmatprep.subr.mxu0 0.0
        %885 = vmatpush1.msra.mxu0 0.0
        %886 = vmatprep.subr.mxu0 0.0
        %887 = vmatpush1.msra.mxu0 0.0
        %888 = vmatprep.subr.mxu0 0.0
        %889 = vmatpush1.msra.mxu0 0.0
        %890 = vmatprep.subr.mxu0 0.0
        %891 = vmatpush1.msra.mxu0 0.0
        %892 = vmatprep.subr.mxu0 0.0
        %893 = vmatpush1.msra.mxu0 0.0
        %894 = vmatprep.subr.mxu0 0.0
        %895 = vmatpush1.msra.mxu0 0.0
        %896 = vmatprep.subr.mxu0 0.0
        %897 = vmatpush1.msra.mxu0 0.0
        %898 = vmatprep.subr.mxu0 0.0
        %899 = vmatpush1.msra.mxu0 0.0
        %900 = vmatprep.subr.mxu0 0.0
        %901 = vmatpush1.msra.mxu0 0.0
        %902 = vmatprep.subr.mxu0 0.0
        %903 = vmatpush1.msra.mxu0 0.0
        %904 = vmatprep.subr.mxu0 0.0
        %905 = vmatpush1.msra.mxu0 0.0
        %906 = vmatprep.subr.mxu0 0.0
        %907 = vmatpush1.msra.mxu0 0.0
        %908 = vmatprep.subr.mxu0 0.0
        %909 = vmatpush1.msra.mxu0 0.0
        %910 = vmatprep.mubr.f32.mxu0 0.0
        %911 = vmatmul.mubr.f32.gmra.mrb[0].mxu0 %v799
        %v912 = vpop.f32.mrb[0].mxu0
        %v913 = vadd.f32 0.0, %v912
        %v914 = vpop.f32.mrb[0].mxu0
        %915 = vmatprep.mubr.f32.mxu0 0.0
        %916 = vmatmul.mubr.f32.gmra.mrb[0].mxu0 %v802
        %v917 = vpop.f32.mrb[0].mxu0
        %v918 = vadd.f32 0.0, %v917
        %v919 = vpop.f32.mrb[0].mxu0
        %920 = vmatprep.mubr.f32.mxu0 0.0
        %921 = vmatmul.mubr.f32.gmra.mrb[0].mxu0 %v805
        %v922 = vpop.f32.mrb[0].mxu0
        %v923 = vadd.f32 0.0, %v922
        %v924 = vpop.f32.mrb[0].mxu0
        %925 = vmatprep.mubr.f32.mxu0 0.0
        %926 = vmatmul.mubr.f32.gmra.mrb[0].mxu0 %v808
        %v927 = vpop.f32.mrb[0].mxu0
        %v928 = vadd.f32 0.0, %v927
        %v929 = vpop.f32.mrb[0].mxu0
        %930 = vmatprep.mubr.f32.mxu0 0.0
        %931 = vmatmul.mubr.f32.gmra.mrb[0].mxu0 %v811
        %v932 = vpop.f32.mrb[0].mxu0
        %v933 = vadd.f32 0.0, %v932
        %v934 = vpop.f32.mrb[0].mxu0
        %935 = vmatprep.mubr.f32.mxu0 0.0
        %936 = vmatmul.mubr.f32.gmra.mrb[0].mxu0 %v814
        %v937 = vpop.f32.mrb[0].mxu0
        %v938 = vadd.f32 0.0, %v937
        %v939 = vpop.f32.mrb[0].mxu0
        %940 = vmatprep.mubr.f32.mxu0 0.0
        %941 = vmatmul.mubr.f32.gmra.mrb[0].mxu0 %v817
        %v942 = vpop.f32.mrb[0].mxu0
        %v943 = vadd.f32 0.0, %v942
        %v944 = vpop.f32.mrb[0].mxu0
        %945 = vmatprep.mubr.f32.mxu0 0.0
        %946 = vmatmul.mubr.f32.gmra.mrb[0].mxu0 %v820
        %v947 = vpop.f32.mrb[0].mxu0
        %v948 = vadd.f32 0.0, %v947
        %v949 = vpop.f32.mrb[0].mxu0
        %950 = vmatprep.mubr.f32.mxu0 0.0
        %951 = vmatmul.mubr.f32.gmra.mrb[0].mxu0 %v823
        %v952 = vpop.f32.mrb[0].mxu0
        %v953 = vadd.f32 0.0, %v952
        %v954 = vpop.f32.mrb[0].mxu0
        %955 = vmatprep.mubr.f32.mxu0 0.0
        %956 = vmatmul.mubr.f32.gmra.mrb[0].mxu0 %v826
        %v957 = vpop.f32.mrb[0].mxu0
        %v958 = vadd.f32 0.0, %v957
        %v959 = vpop.f32.mrb[0].mxu0
        %960 = vmatprep.mubr.f32.mxu0 0.0
        %961 = vmatmul.mubr.f32.gmra.mrb[0].mxu0 %v829
        %v962 = vpop.f32.mrb[0].mxu0
        %v963 = vadd.f32 0.0, %v962
        %v964 = vpop.f32.mrb[0].mxu0
        %965 = vmatprep.mubr.f32.mxu0 0.0
        %966 = vmatmul.mubr.f32.gmra.mrb[0].mxu0 %v832
        %v967 = vpop.f32.mrb[0].mxu0
        %v968 = vadd.f32 0.0, %v967
        %v969 = vpop.f32.mrb[0].mxu0
        %970 = vmatprep.mubr.f32.mxu0 0.0
        %971 = vmatmul.mubr.f32.gmra.mrb[0].mxu0 %v835
        %v972 = vpop.f32.mrb[0].mxu0
        %v973 = vadd.f32 0.0, %v972
        %v974 = vpop.f32.mrb[0].mxu0
        %975 = vmatprep.mubr.f32.mxu0 0.0
        %976 = vmatmul.mubr.f32.gmra.mrb[0].mxu0 %v838
        %v977 = vpop.f32.mrb[0].mxu0
        %v978 = vadd.f32 0.0, %v977
        %v979 = vpop.f32.mrb[0].mxu0
        %980 = vmatprep.mubr.f32.mxu0 0.0
        %981 = vmatmul.mubr.f32.gmra.mrb[0].mxu0 %v841
        %v982 = vpop.f32.mrb[0].mxu0
        %v983 = vadd.f32 0.0, %v982
        %v984 = vpop.f32.mrb[0].mxu0
        %985 = vmatprep.mubr.f32.mxu0 0.0
        %986 = vmatmul.mubr.f32.gmra.mrb[0].mxu0 %v844
        %v987 = vpop.f32.mrb[0].mxu0
        %v988 = vadd.f32 0.0, %v987
        %v989 = vpop.f32.mrb[0].mxu0
        %990 = vdwg.mxu0
        %v991 = vmul.f32 %v487, %v700
        %v992 = vmul.f32 %v492, %v705
        %v993 = vmul.f32 %v497, %v710
        %v994 = vmul.f32 %v502, %v715
        %v995 = vmul.f32 %v507, %v720
        %v996 = vmul.f32 %v512, %v725
        %v997 = vmul.f32 %v517, %v730
        %v998 = vmul.f32 %v522, %v735
        %v999 = vmul.f32 %v527, %v740
        %v1000 = vmul.f32 %v532, %v745
        %v1001 = vmul.f32 %v537, %v750
        %v1002 = vmul.f32 %v542, %v755
        %v1003 = vmul.f32 %v547, %v760
        %v1004 = vmul.f32 %v552, %v765
        %v1005 = vmul.f32 %v557, %v770
        %v1006 = vmul.f32 %v562, %v775
        %v1007 = vsel %vm371, %v991, 0.0
        %1008 = vadd.xlane.f32.xlu0 %v1007
        %v1009 = vpop.xlane.xlu0 %1008
        %v1010 = vsel %vm371, %v992, 0.0
        %1011 = vadd.xlane.f32.xlu0 %v1010
        %v1012 = vpop.xlane.xlu0 %1011
        %v1013 = vsel %vm371, %v993, 0.0
        %1014 = vadd.xlane.f32.xlu0 %v1013
        %v1015 = vpop.xlane.xlu0 %1014
        %v1016 = vsel %vm371, %v994, 0.0
        %1017 = vadd.xlane.f32.xlu0 %v1016
        %v1018 = vpop.xlane.xlu0 %1017
        %v1019 = vsel %vm371, %v995, 0.0
        %1020 = vadd.xlane.f32.xlu0 %v1019
        %v1021 = vpop.xlane.xlu0 %1020
        %v1022 = vsel %vm371, %v996, 0.0
        %1023 = vadd.xlane.f32.xlu0 %v1022
        %v1024 = vpop.xlane.xlu0 %1023
        %v1025 = vsel %vm371, %v997, 0.0
        %1026 = vadd.xlane.f32.xlu0 %v1025
        %v1027 = vpop.xlane.xlu0 %1026
        %v1028 = vsel %vm371, %v998, 0.0
        %1029 = vadd.xlane.f32.xlu0 %v1028
        %v1030 = vpop.xlane.xlu0 %1029
        %v1031 = vsel %vm371, %v999, 0.0
        %1032 = vadd.xlane.f32.xlu0 %v1031
        %v1033 = vpop.xlane.xlu0 %1032
        %v1034 = vsel %vm371, %v1000, 0.0
        %1035 = vadd.xlane.f32.xlu0 %v1034
        %v1036 = vpop.xlane.xlu0 %1035
        %v1037 = vsel %vm371, %v1001, 0.0
        %1038 = vadd.xlane.f32.xlu0 %v1037
        %v1039 = vpop.xlane.xlu0 %1038
        %v1040 = vsel %vm371, %v1002, 0.0
        %1041 = vadd.xlane.f32.xlu0 %v1040
        %v1042 = vpop.xlane.xlu0 %1041
        %v1043 = vsel %vm371, %v1003, 0.0
        %1044 = vadd.xlane.f32.xlu0 %v1043
        %v1045 = vpop.xlane.xlu0 %1044
        %v1046 = vsel %vm371, %v1004, 0.0
        %1047 = vadd.xlane.f32.xlu0 %v1046
        %v1048 = vpop.xlane.xlu0 %1047
        %v1049 = vsel %vm371, %v1005, 0.0
        %1050 = vadd.xlane.f32.xlu0 %v1049
        %v1051 = vpop.xlane.xlu0 %1050
        %v1052 = vsel %vm371, %v1006, 0.0
        %1053 = vadd.xlane.f32.xlu0 %v1052
        %v1054 = vpop.xlane.xlu0 %1053
        %1071 = vrot.lane.b32.xlu0 %v700, 96
        %v1072 = vpop.permute.xlu0 %1071
        %1073 = vrot.lane.b32.xlu0 %v705, 96
        %v1074 = vpop.permute.xlu0 %1073
        %1075 = vrot.lane.b32.xlu0 %v710, 96
        %v1076 = vpop.permute.xlu0 %1075
        %1077 = vrot.lane.b32.xlu0 %v715, 96
        %v1078 = vpop.permute.xlu0 %1077
        %1079 = vrot.lane.b32.xlu0 %v720, 96
        %v1080 = vpop.permute.xlu0 %1079
        %1081 = vrot.lane.b32.xlu0 %v725, 96
        %v1082 = vpop.permute.xlu0 %1081
        %1083 = vrot.lane.b32.xlu0 %v730, 96
        %v1084 = vpop.permute.xlu0 %1083
        %1085 = vrot.lane.b32.xlu0 %v735, 96
        %v1086 = vpop.permute.xlu0 %1085
        %1087 = vrot.lane.b32.xlu0 %v740, 96
        %v1088 = vpop.permute.xlu0 %1087
        %1089 = vrot.lane.b32.xlu0 %v745, 96
        %v1090 = vpop.permute.xlu0 %1089
        %1091 = vrot.lane.b32.xlu0 %v750, 96
        %v1092 = vpop.permute.xlu0 %1091
        %1093 = vrot.lane.b32.xlu0 %v755, 96
        %v1094 = vpop.permute.xlu0 %1093
        %1095 = vrot.lane.b32.xlu0 %v760, 96
        %v1096 = vpop.permute.xlu0 %1095
        %1097 = vrot.lane.b32.xlu0 %v765, 96
        %v1098 = vpop.permute.xlu0 %1097
        %1099 = vrot.lane.b32.xlu0 %v770, 96
        %v1100 = vpop.permute.xlu0 %1099
        %1101 = vrot.lane.b32.xlu0 %v775, 96
        %v1102 = vpop.permute.xlu0 %1101
        %v1119 = vmul.f32 %v487, %v1072
        %v1120 = vmul.f32 %v492, %v1074
        %v1121 = vmul.f32 %v497, %v1076
        %v1122 = vmul.f32 %v502, %v1078
        %v1123 = vmul.f32 %v507, %v1080
        %v1124 = vmul.f32 %v512, %v1082
        %v1125 = vmul.f32 %v517, %v1084
        %v1126 = vmul.f32 %v522, %v1086
        %v1127 = vmul.f32 %v527, %v1088
        %v1128 = vmul.f32 %v532, %v1090
        %v1129 = vmul.f32 %v537, %v1092
        %v1130 = vmul.f32 %v542, %v1094
        %v1131 = vmul.f32 %v547, %v1096
        %v1132 = vmul.f32 %v552, %v1098
        %v1133 = vmul.f32 %v557, %v1100
        %v1134 = vmul.f32 %v562, %v1102
        %v1135 = vsel %vm371, %v1119, 0.0
        %1136 = vadd.xlane.f32.xlu0 %v1135
        %v1137 = vpop.xlane.xlu0 %1136
        %v1138 = vsel %vm371, %v1120, 0.0
        %1139 = vadd.xlane.f32.xlu0 %v1138
        %v1140 = vpop.xlane.xlu0 %1139
        %v1141 = vsel %vm371, %v1121, 0.0
        %1142 = vadd.xlane.f32.xlu0 %v1141
        %v1143 = vpop.xlane.xlu0 %1142
        %v1144 = vsel %vm371, %v1122, 0.0
        %1145 = vadd.xlane.f32.xlu0 %v1144
        %v1146 = vpop.xlane.xlu0 %1145
        %v1147 = vsel %vm371, %v1123, 0.0
        %1148 = vadd.xlane.f32.xlu0 %v1147
        %v1149 = vpop.xlane.xlu0 %1148
        %v1150 = vsel %vm371, %v1124, 0.0
        %1151 = vadd.xlane.f32.xlu0 %v1150
        %v1152 = vpop.xlane.xlu0 %1151
        %v1153 = vsel %vm371, %v1125, 0.0
        %1154 = vadd.xlane.f32.xlu0 %v1153
        %v1155 = vpop.xlane.xlu0 %1154
        %v1156 = vsel %vm371, %v1126, 0.0
        %1157 = vadd.xlane.f32.xlu0 %v1156
        %v1158 = vpop.xlane.xlu0 %1157
        %v1159 = vsel %vm371, %v1127, 0.0
        %1160 = vadd.xlane.f32.xlu0 %v1159
        %v1161 = vpop.xlane.xlu0 %1160
        %v1162 = vsel %vm371, %v1128, 0.0
        %1163 = vadd.xlane.f32.xlu0 %v1162
        %v1164 = vpop.xlane.xlu0 %1163
        %v1165 = vsel %vm371, %v1129, 0.0
        %1166 = vadd.xlane.f32.xlu0 %v1165
        %v1167 = vpop.xlane.xlu0 %1166
        %v1168 = vsel %vm371, %v1130, 0.0
        %1169 = vadd.xlane.f32.xlu0 %v1168
        %v1170 = vpop.xlane.xlu0 %1169
        %v1171 = vsel %vm371, %v1131, 0.0
        %1172 = vadd.xlane.f32.xlu0 %v1171
        %v1173 = vpop.xlane.xlu0 %1172
        %v1174 = vsel %vm371, %v1132, 0.0
        %1175 = vadd.xlane.f32.xlu0 %v1174
        %v1176 = vpop.xlane.xlu0 %1175
        %v1177 = vsel %vm371, %v1133, 0.0
        %1178 = vadd.xlane.f32.xlu0 %v1177
        %v1179 = vpop.xlane.xlu0 %1178
        %v1180 = vsel %vm371, %v1134, 0.0
        %1181 = vadd.xlane.f32.xlu0 %v1180
        %v1182 = vpop.xlane.xlu0 %1181
        %1183 = vrot.lane.b32.xlu0 %v700, 64
        %v1184 = vpop.permute.xlu0 %1183
        %1185 = vrot.lane.b32.xlu0 %v705, 64
        %v1186 = vpop.permute.xlu0 %1185
        %1187 = vrot.lane.b32.xlu0 %v710, 64
        %v1188 = vpop.permute.xlu0 %1187
        %1189 = vrot.lane.b32.xlu0 %v715, 64
        %v1190 = vpop.permute.xlu0 %1189
        %1191 = vrot.lane.b32.xlu0 %v720, 64
        %v1192 = vpop.permute.xlu0 %1191
        %1193 = vrot.lane.b32.xlu0 %v725, 64
        %v1194 = vpop.permute.xlu0 %1193
        %1195 = vrot.lane.b32.xlu0 %v730, 64
        %v1196 = vpop.permute.xlu0 %1195
        %1197 = vrot.lane.b32.xlu0 %v735, 64
        %v1198 = vpop.permute.xlu0 %1197
        %1199 = vrot.lane.b32.xlu0 %v740, 64
        %v1200 = vpop.permute.xlu0 %1199
        %1201 = vrot.lane.b32.xlu0 %v745, 64
        %v1202 = vpop.permute.xlu0 %1201
        %1203 = vrot.lane.b32.xlu0 %v750, 64
        %v1204 = vpop.permute.xlu0 %1203
        %1205 = vrot.lane.b32.xlu0 %v755, 64
        %v1206 = vpop.permute.xlu0 %1205
        %1207 = vrot.lane.b32.xlu0 %v760, 64
        %v1208 = vpop.permute.xlu0 %1207
        %1209 = vrot.lane.b32.xlu0 %v765, 64
        %v1210 = vpop.permute.xlu0 %1209
        %1211 = vrot.lane.b32.xlu0 %v770, 64
        %v1212 = vpop.permute.xlu0 %1211
        %1213 = vrot.lane.b32.xlu0 %v775, 64
        %v1214 = vpop.permute.xlu0 %1213
        %v1231 = vmul.f32 %v487, %v1184
        %v1232 = vmul.f32 %v492, %v1186
        %v1233 = vmul.f32 %v497, %v1188
        %v1234 = vmul.f32 %v502, %v1190
        %v1235 = vmul.f32 %v507, %v1192
        %v1236 = vmul.f32 %v512, %v1194
        %v1237 = vmul.f32 %v517, %v1196
        %v1238 = vmul.f32 %v522, %v1198
        %v1239 = vmul.f32 %v527, %v1200
        %v1240 = vmul.f32 %v532, %v1202
        %v1241 = vmul.f32 %v537, %v1204
        %v1242 = vmul.f32 %v542, %v1206
        %v1243 = vmul.f32 %v547, %v1208
        %v1244 = vmul.f32 %v552, %v1210
        %v1245 = vmul.f32 %v557, %v1212
        %v1246 = vmul.f32 %v562, %v1214
        %v1247 = vsel %vm371, %v1231, 0.0
        %1248 = vadd.xlane.f32.xlu0 %v1247
        %v1249 = vpop.xlane.xlu0 %1248
        %v1250 = vsel %vm371, %v1232, 0.0
        %1251 = vadd.xlane.f32.xlu0 %v1250
        %v1252 = vpop.xlane.xlu0 %1251
        %v1253 = vsel %vm371, %v1233, 0.0
        %1254 = vadd.xlane.f32.xlu0 %v1253
        %v1255 = vpop.xlane.xlu0 %1254
        %v1256 = vsel %vm371, %v1234, 0.0
        %1257 = vadd.xlane.f32.xlu0 %v1256
        %v1258 = vpop.xlane.xlu0 %1257
        %v1259 = vsel %vm371, %v1235, 0.0
        %1260 = vadd.xlane.f32.xlu0 %v1259
        %v1261 = vpop.xlane.xlu0 %1260
        %v1262 = vsel %vm371, %v1236, 0.0
        %1263 = vadd.xlane.f32.xlu0 %v1262
        %v1264 = vpop.xlane.xlu0 %1263
        %v1265 = vsel %vm371, %v1237, 0.0
        %1266 = vadd.xlane.f32.xlu0 %v1265
        %v1267 = vpop.xlane.xlu0 %1266
        %v1268 = vsel %vm371, %v1238, 0.0
        %1269 = vadd.xlane.f32.xlu0 %v1268
        %v1270 = vpop.xlane.xlu0 %1269
        %v1271 = vsel %vm371, %v1239, 0.0
        %1272 = vadd.xlane.f32.xlu0 %v1271
        %v1273 = vpop.xlane.xlu0 %1272
        %v1274 = vsel %vm371, %v1240, 0.0
        %1275 = vadd.xlane.f32.xlu0 %v1274
        %v1276 = vpop.xlane.xlu0 %1275
        %v1277 = vsel %vm371, %v1241, 0.0
        %1278 = vadd.xlane.f32.xlu0 %v1277
        %v1279 = vpop.xlane.xlu0 %1278
        %v1280 = vsel %vm371, %v1242, 0.0
        %1281 = vadd.xlane.f32.xlu0 %v1280
        %v1282 = vpop.xlane.xlu0 %1281
        %v1283 = vsel %vm371, %v1243, 0.0
        %1284 = vadd.xlane.f32.xlu0 %v1283
        %v1285 = vpop.xlane.xlu0 %1284
        %v1286 = vsel %vm371, %v1244, 0.0
        %1287 = vadd.xlane.f32.xlu0 %v1286
        %v1288 = vpop.xlane.xlu0 %1287
        %v1289 = vsel %vm371, %v1245, 0.0
        %1290 = vadd.xlane.f32.xlu0 %v1289
        %v1291 = vpop.xlane.xlu0 %1290
        %v1292 = vsel %vm371, %v1246, 0.0
        %1293 = vadd.xlane.f32.xlu0 %v1292
        %v1294 = vpop.xlane.xlu0 %1293
        %1295 = vrot.lane.b32.xlu0 %v700, 32
        %v1296 = vpop.permute.xlu0 %1295
        %1297 = vrot.lane.b32.xlu0 %v705, 32
        %v1298 = vpop.permute.xlu0 %1297
        %1299 = vrot.lane.b32.xlu0 %v710, 32
        %v1300 = vpop.permute.xlu0 %1299
        %1301 = vrot.lane.b32.xlu0 %v715, 32
        %v1302 = vpop.permute.xlu0 %1301
        %1303 = vrot.lane.b32.xlu0 %v720, 32
        %v1304 = vpop.permute.xlu0 %1303
        %1305 = vrot.lane.b32.xlu0 %v725, 32
        %v1306 = vpop.permute.xlu0 %1305
        %1307 = vrot.lane.b32.xlu0 %v730, 32
        %v1308 = vpop.permute.xlu0 %1307
        %1309 = vrot.lane.b32.xlu0 %v735, 32
        %v1310 = vpop.permute.xlu0 %1309
        %1311 = vrot.lane.b32.xlu0 %v740, 32
        %v1312 = vpop.permute.xlu0 %1311
        %1313 = vrot.lane.b32.xlu0 %v745, 32
        %v1314 = vpop.permute.xlu0 %1313
        %1315 = vrot.lane.b32.xlu0 %v750, 32
        %v1316 = vpop.permute.xlu0 %1315
        %1317 = vrot.lane.b32.xlu0 %v755, 32
        %v1318 = vpop.permute.xlu0 %1317
        %1319 = vrot.lane.b32.xlu0 %v760, 32
        %v1320 = vpop.permute.xlu0 %1319
        %1321 = vrot.lane.b32.xlu0 %v765, 32
        %v1322 = vpop.permute.xlu0 %1321
        %1323 = vrot.lane.b32.xlu0 %v770, 32
        %v1324 = vpop.permute.xlu0 %1323
        %1325 = vrot.lane.b32.xlu0 %v775, 32
        %v1326 = vpop.permute.xlu0 %1325
        %v1343 = vmul.f32 %v487, %v1296
        %v1344 = vmul.f32 %v492, %v1298
        %v1345 = vmul.f32 %v497, %v1300
        %v1346 = vmul.f32 %v502, %v1302
        %v1347 = vmul.f32 %v507, %v1304
        %v1348 = vmul.f32 %v512, %v1306
        %v1349 = vmul.f32 %v517, %v1308
        %v1350 = vmul.f32 %v522, %v1310
        %v1351 = vmul.f32 %v527, %v1312
        %v1352 = vmul.f32 %v532, %v1314
        %v1353 = vmul.f32 %v537, %v1316
        %v1354 = vmul.f32 %v542, %v1318
        %v1355 = vmul.f32 %v547, %v1320
        %v1356 = vmul.f32 %v552, %v1322
        %v1357 = vmul.f32 %v557, %v1324
        %v1358 = vmul.f32 %v562, %v1326
        %v1359 = vsel %vm371, %v1343, 0.0
        %1360 = vadd.xlane.f32.xlu0 %v1359
        %v1361 = vpop.xlane.xlu0 %1360
        %v1362 = vsel %vm371, %v1344, 0.0
        %1363 = vadd.xlane.f32.xlu0 %v1362
        %v1364 = vpop.xlane.xlu0 %1363
        %v1365 = vsel %vm371, %v1345, 0.0
        %1366 = vadd.xlane.f32.xlu0 %v1365
        %v1367 = vpop.xlane.xlu0 %1366
        %v1368 = vsel %vm371, %v1346, 0.0
        %1369 = vadd.xlane.f32.xlu0 %v1368
        %v1370 = vpop.xlane.xlu0 %1369
        %v1371 = vsel %vm371, %v1347, 0.0
        %1372 = vadd.xlane.f32.xlu0 %v1371
        %v1373 = vpop.xlane.xlu0 %1372
        %v1374 = vsel %vm371, %v1348, 0.0
        %1375 = vadd.xlane.f32.xlu0 %v1374
        %v1376 = vpop.xlane.xlu0 %1375
        %v1377 = vsel %vm371, %v1349, 0.0
        %1378 = vadd.xlane.f32.xlu0 %v1377
        %v1379 = vpop.xlane.xlu0 %1378
        %v1380 = vsel %vm371, %v1350, 0.0
        %1381 = vadd.xlane.f32.xlu0 %v1380
        %v1382 = vpop.xlane.xlu0 %1381
        %v1383 = vsel %vm371, %v1351, 0.0
        %1384 = vadd.xlane.f32.xlu0 %v1383
        %v1385 = vpop.xlane.xlu0 %1384
        %v1386 = vsel %vm371, %v1352, 0.0
        %1387 = vadd.xlane.f32.xlu0 %v1386
        %v1388 = vpop.xlane.xlu0 %1387
        %v1389 = vsel %vm371, %v1353, 0.0
        %1390 = vadd.xlane.f32.xlu0 %v1389
        %v1391 = vpop.xlane.xlu0 %1390
        %v1392 = vsel %vm371, %v1354, 0.0
        %1393 = vadd.xlane.f32.xlu0 %v1392
        %v1394 = vpop.xlane.xlu0 %1393
        %v1395 = vsel %vm371, %v1355, 0.0
        %1396 = vadd.xlane.f32.xlu0 %v1395
        %v1397 = vpop.xlane.xlu0 %1396
        %v1398 = vsel %vm371, %v1356, 0.0
        %1399 = vadd.xlane.f32.xlu0 %v1398
        %v1400 = vpop.xlane.xlu0 %1399
        %v1401 = vsel %vm371, %v1357, 0.0
        %1402 = vadd.xlane.f32.xlu0 %v1401
        %v1403 = vpop.xlane.xlu0 %1402
        %v1404 = vsel %vm371, %v1358, 0.0
        %1405 = vadd.xlane.f32.xlu0 %v1404
        %v1406 = vpop.xlane.xlu0 %1405
        %vm1407 = vcmask 7168
        %v1408 = vsel %vm1407, %v1009, %v1137
        %v1409 = vsel %vm1407, %v1012, %v1140
        %v1410 = vsel %vm1407, %v1015, %v1143
        %v1411 = vsel %vm1407, %v1018, %v1146
        %v1412 = vsel %vm1407, %v1021, %v1149
        %v1413 = vsel %vm1407, %v1024, %v1152
        %v1414 = vsel %vm1407, %v1027, %v1155
        %v1415 = vsel %vm1407, %v1030, %v1158
        %v1416 = vsel %vm1407, %v1033, %v1161
        %v1417 = vsel %vm1407, %v1036, %v1164
        %v1418 = vsel %vm1407, %v1039, %v1167
        %v1419 = vsel %vm1407, %v1042, %v1170
        %v1420 = vsel %vm1407, %v1045, %v1173
        %v1421 = vsel %vm1407, %v1048, %v1176
        %v1422 = vsel %vm1407, %v1051, %v1179
        %v1423 = vsel %vm1407, %v1054, %v1182
        %vm1424 = vcmask 15360
        %v1425 = vsel %vm1424, %v1408, %v1249
        %v1426 = vsel %vm1424, %v1409, %v1252
        %v1427 = vsel %vm1424, %v1410, %v1255
        %v1428 = vsel %vm1424, %v1411, %v1258
        %v1429 = vsel %vm1424, %v1412, %v1261
        %v1430 = vsel %vm1424, %v1413, %v1264
        %v1431 = vsel %vm1424, %v1414, %v1267
        %v1432 = vsel %vm1424, %v1415, %v1270
        %v1433 = vsel %vm1424, %v1416, %v1273
        %v1434 = vsel %vm1424, %v1417, %v1276
        %v1435 = vsel %vm1424, %v1418, %v1279
        %v1436 = vsel %vm1424, %v1419, %v1282
        %v1437 = vsel %vm1424, %v1420, %v1285
        %v1438 = vsel %vm1424, %v1421, %v1288
        %v1439 = vsel %vm1424, %v1422, %v1291
        %v1440 = vsel %vm1424, %v1423, %v1294
        %vm1441 = vcmask 23552
        %v1442 = vsel %vm1441, %v1425, %v1361
        %v1443 = vsel %vm1441, %v1426, %v1364
        %v1444 = vsel %vm1441, %v1427, %v1367
        %v1445 = vsel %vm1441, %v1428, %v1370
        %v1446 = vsel %vm1441, %v1429, %v1373
        %v1447 = vsel %vm1441, %v1430, %v1376
        %v1448 = vsel %vm1441, %v1431, %v1379
        %v1449 = vsel %vm1441, %v1432, %v1382
        %v1450 = vsel %vm1441, %v1433, %v1385
        %v1451 = vsel %vm1441, %v1434, %v1388
        %v1452 = vsel %vm1441, %v1435, %v1391
        %v1453 = vsel %vm1441, %v1436, %v1394
        %v1454 = vsel %vm1441, %v1437, %v1397
        %v1455 = vsel %vm1441, %v1438, %v1400
        %v1456 = vsel %vm1441, %v1439, %v1403
        %v1457 = vsel %vm1441, %v1440, %v1406
        %vm1458 = vcmask 31744
        %v1459 = vsel %vm1458, %v1442, -inf
        %1460 = vmax.xlane.f32.xlu0 %v1459
        %v1461 = vpop.xlane.xlu0 %1460
        %v1462 = vsel %vm1458, %v1443, -inf
        %1463 = vmax.xlane.f32.xlu0 %v1462
        %v1464 = vpop.xlane.xlu0 %1463
        %v1465 = vsel %vm1458, %v1444, -inf
        %1466 = vmax.xlane.f32.xlu0 %v1465
        %v1467 = vpop.xlane.xlu0 %1466
        %v1468 = vsel %vm1458, %v1445, -inf
        %1469 = vmax.xlane.f32.xlu0 %v1468
        %v1470 = vpop.xlane.xlu0 %1469
        %v1471 = vsel %vm1458, %v1446, -inf
        %1472 = vmax.xlane.f32.xlu0 %v1471
        %v1473 = vpop.xlane.xlu0 %1472
        %v1474 = vsel %vm1458, %v1447, -inf
        %1475 = vmax.xlane.f32.xlu0 %v1474
        %v1476 = vpop.xlane.xlu0 %1475
        %v1477 = vsel %vm1458, %v1448, -inf
        %1478 = vmax.xlane.f32.xlu0 %v1477
        %v1479 = vpop.xlane.xlu0 %1478
        %v1480 = vsel %vm1458, %v1449, -inf
        %1481 = vmax.xlane.f32.xlu0 %v1480
        %v1482 = vpop.xlane.xlu0 %1481
        %v1483 = vsel %vm1458, %v1450, -inf
        %1484 = vmax.xlane.f32.xlu0 %v1483
        %v1485 = vpop.xlane.xlu0 %1484
        %v1486 = vsel %vm1458, %v1451, -inf
        %1487 = vmax.xlane.f32.xlu0 %v1486
        %v1488 = vpop.xlane.xlu0 %1487
        %v1489 = vsel %vm1458, %v1452, -inf
        %1490 = vmax.xlane.f32.xlu0 %v1489
        %v1491 = vpop.xlane.xlu0 %1490
        %v1492 = vsel %vm1458, %v1453, -inf
        %1493 = vmax.xlane.f32.xlu0 %v1492
        %v1494 = vpop.xlane.xlu0 %1493
        %v1495 = vsel %vm1458, %v1454, -inf
        %1496 = vmax.xlane.f32.xlu0 %v1495
        %v1497 = vpop.xlane.xlu0 %1496
        %v1498 = vsel %vm1458, %v1455, -inf
        %1499 = vmax.xlane.f32.xlu0 %v1498
        %v1500 = vpop.xlane.xlu0 %1499
        %v1501 = vsel %vm1458, %v1456, -inf
        %1502 = vmax.xlane.f32.xlu0 %v1501
        %v1503 = vpop.xlane.xlu0 %1502
        %v1504 = vsel %vm1458, %v1457, -inf
        %1505 = vmax.xlane.f32.xlu0 %v1504
        %v1506 = vpop.xlane.xlu0 %1505
        %v1507 = vsub.f32 %v1442, %v1461
        %v1508 = vsub.f32 %v1443, %v1464
        %v1509 = vsub.f32 %v1444, %v1467
        %v1510 = vsub.f32 %v1445, %v1470
        %v1511 = vsub.f32 %v1446, %v1473
        %v1512 = vsub.f32 %v1447, %v1476
        %v1513 = vsub.f32 %v1448, %v1479
        %v1514 = vsub.f32 %v1449, %v1482
        %v1515 = vsub.f32 %v1450, %v1485
        %v1516 = vsub.f32 %v1451, %v1488
        %v1517 = vsub.f32 %v1452, %v1491
        %v1518 = vsub.f32 %v1453, %v1494
        %v1519 = vsub.f32 %v1454, %v1497
        %v1520 = vsub.f32 %v1455, %v1500
        %v1521 = vsub.f32 %v1456, %v1503
        %v1522 = vsub.f32 %v1457, %v1506
        %v1523 = vmul.f32 %v1507, 1.442695
        %v1524 = vpow.pop %v1523
        %v1525 = vmul.f32 %v1508, 1.442695
        %v1526 = vpow.pop %v1525
        %v1527 = vmul.f32 %v1509, 1.442695
        %v1528 = vpow.pop %v1527
        %v1529 = vmul.f32 %v1510, 1.442695
        %v1530 = vpow.pop %v1529
        %v1531 = vmul.f32 %v1511, 1.442695
        %v1532 = vpow.pop %v1531
        %v1533 = vmul.f32 %v1512, 1.442695
        %v1534 = vpow.pop %v1533
        %v1535 = vmul.f32 %v1513, 1.442695
        %v1536 = vpow.pop %v1535
        %v1537 = vmul.f32 %v1514, 1.442695
        %v1538 = vpow.pop %v1537
        %v1539 = vmul.f32 %v1515, 1.442695
        %v1540 = vpow.pop %v1539
        %v1541 = vmul.f32 %v1516, 1.442695
        %v1542 = vpow.pop %v1541
        %v1543 = vmul.f32 %v1517, 1.442695
        %v1544 = vpow.pop %v1543
        %v1545 = vmul.f32 %v1518, 1.442695
        %v1546 = vpow.pop %v1545
        %v1547 = vmul.f32 %v1519, 1.442695
        %v1548 = vpow.pop %v1547
        %v1549 = vmul.f32 %v1520, 1.442695
        %v1550 = vpow.pop %v1549
        %v1551 = vmul.f32 %v1521, 1.442695
        %v1552 = vpow.pop %v1551
        %v1553 = vmul.f32 %v1522, 1.442695
        %v1554 = vpow.pop %v1553
        %v1555 = vsel %vm1458, %v1524, 0.0
        %1556 = vadd.xlane.f32.xlu0 %v1555
        %v1557 = vpop.xlane.xlu0 %1556
        %v1558 = vsel %vm1458, %v1526, 0.0
        %1559 = vadd.xlane.f32.xlu0 %v1558
        %v1560 = vpop.xlane.xlu0 %1559
        %v1561 = vsel %vm1458, %v1528, 0.0
        %1562 = vadd.xlane.f32.xlu0 %v1561
        %v1563 = vpop.xlane.xlu0 %1562
        %v1564 = vsel %vm1458, %v1530, 0.0
        %1565 = vadd.xlane.f32.xlu0 %v1564
        %v1566 = vpop.xlane.xlu0 %1565
        %v1567 = vsel %vm1458, %v1532, 0.0
        %1568 = vadd.xlane.f32.xlu0 %v1567
        %v1569 = vpop.xlane.xlu0 %1568
        %v1570 = vsel %vm1458, %v1534, 0.0
        %1571 = vadd.xlane.f32.xlu0 %v1570
        %v1572 = vpop.xlane.xlu0 %1571
        %v1573 = vsel %vm1458, %v1536, 0.0
        %1574 = vadd.xlane.f32.xlu0 %v1573
        %v1575 = vpop.xlane.xlu0 %1574
        %v1576 = vsel %vm1458, %v1538, 0.0
        %1577 = vadd.xlane.f32.xlu0 %v1576
        %v1578 = vpop.xlane.xlu0 %1577
        %v1579 = vsel %vm1458, %v1540, 0.0
        %1580 = vadd.xlane.f32.xlu0 %v1579
        %v1581 = vpop.xlane.xlu0 %1580
        %v1582 = vsel %vm1458, %v1542, 0.0
        %1583 = vadd.xlane.f32.xlu0 %v1582
        %v1584 = vpop.xlane.xlu0 %1583
        %v1585 = vsel %vm1458, %v1544, 0.0
        %1586 = vadd.xlane.f32.xlu0 %v1585
        %v1587 = vpop.xlane.xlu0 %1586
        %v1588 = vsel %vm1458, %v1546, 0.0
        %1589 = vadd.xlane.f32.xlu0 %v1588
        %v1590 = vpop.xlane.xlu0 %1589
        %v1591 = vsel %vm1458, %v1548, 0.0
        %1592 = vadd.xlane.f32.xlu0 %v1591
        %v1593 = vpop.xlane.xlu0 %1592
        %v1594 = vsel %vm1458, %v1550, 0.0
        %1595 = vadd.xlane.f32.xlu0 %v1594
        %v1596 = vpop.xlane.xlu0 %1595
        %v1597 = vsel %vm1458, %v1552, 0.0
        %1598 = vadd.xlane.f32.xlu0 %v1597
        %v1599 = vpop.xlane.xlu0 %1598
        %v1600 = vsel %vm1458, %v1554, 0.0
        %1601 = vadd.xlane.f32.xlu0 %v1600
        %v1602 = vpop.xlane.xlu0 %1601
        %v1603 = vrcp.pop %v1557
        %v1604 = vmul.f32 1.0, %v1603
        %v1605 = vrcp.pop %v1560
        %v1606 = vmul.f32 1.0, %v1605
        %v1607 = vrcp.pop %v1563
        %v1608 = vmul.f32 1.0, %v1607
        %v1609 = vrcp.pop %v1566
        %v1610 = vmul.f32 1.0, %v1609
        %v1611 = vrcp.pop %v1569
        %v1612 = vmul.f32 1.0, %v1611
        %v1613 = vrcp.pop %v1572
        %v1614 = vmul.f32 1.0, %v1613
        %v1615 = vrcp.pop %v1575
        %v1616 = vmul.f32 1.0, %v1615
        %v1617 = vrcp.pop %v1578
        %v1618 = vmul.f32 1.0, %v1617
        %v1619 = vrcp.pop %v1581
        %v1620 = vmul.f32 1.0, %v1619
        %v1621 = vrcp.pop %v1584
        %v1622 = vmul.f32 1.0, %v1621
        %v1623 = vrcp.pop %v1587
        %v1624 = vmul.f32 1.0, %v1623
        %v1625 = vrcp.pop %v1590
        %v1626 = vmul.f32 1.0, %v1625
        %v1627 = vrcp.pop %v1593
        %v1628 = vmul.f32 1.0, %v1627
        %v1629 = vrcp.pop %v1596
        %v1630 = vmul.f32 1.0, %v1629
        %v1631 = vrcp.pop %v1599
        %v1632 = vmul.f32 1.0, %v1631
        %v1633 = vrcp.pop %v1602
        %v1634 = vmul.f32 1.0, %v1633
        %1636 = vset.pattern.permute.xlu0 0
        %1637 = vperm.xlu0 %1636, %v1524
        %v1638 = vpop.permute.xlu0 %1637
        %1641 = vset.pattern.permute.xlu0 0
        %1642 = vperm.xlu0 %1641, %v1526
        %v1643 = vpop.permute.xlu0 %1642
        %1646 = vset.pattern.permute.xlu0 0
        %1647 = vperm.xlu0 %1646, %v1528
        %v1648 = vpop.permute.xlu0 %1647
        %1651 = vset.pattern.permute.xlu0 0
        %1652 = vperm.xlu0 %1651, %v1530
        %v1653 = vpop.permute.xlu0 %1652
        %1656 = vset.pattern.permute.xlu0 0
        %1657 = vperm.xlu0 %1656, %v1532
        %v1658 = vpop.permute.xlu0 %1657
        %1661 = vset.pattern.permute.xlu0 0
        %1662 = vperm.xlu0 %1661, %v1534
        %v1663 = vpop.permute.xlu0 %1662
        %1666 = vset.pattern.permute.xlu0 0
        %1667 = vperm.xlu0 %1666, %v1536
        %v1668 = vpop.permute.xlu0 %1667
        %1671 = vset.pattern.permute.xlu0 0
        %1672 = vperm.xlu0 %1671, %v1538
        %v1673 = vpop.permute.xlu0 %1672
        %1676 = vset.pattern.permute.xlu0 0
        %1677 = vperm.xlu0 %1676, %v1540
        %v1678 = vpop.permute.xlu0 %1677
        %1681 = vset.pattern.permute.xlu0 0
        %1682 = vperm.xlu0 %1681, %v1542
        %v1683 = vpop.permute.xlu0 %1682
        %1686 = vset.pattern.permute.xlu0 0
        %1687 = vperm.xlu0 %1686, %v1544
        %v1688 = vpop.permute.xlu0 %1687
        %1691 = vset.pattern.permute.xlu0 0
        %1692 = vperm.xlu0 %1691, %v1546
        %v1693 = vpop.permute.xlu0 %1692
        %1696 = vset.pattern.permute.xlu0 0
        %1697 = vperm.xlu0 %1696, %v1548
        %v1698 = vpop.permute.xlu0 %1697
        %1701 = vset.pattern.permute.xlu0 0
        %1702 = vperm.xlu0 %1701, %v1550
        %v1703 = vpop.permute.xlu0 %1702
        %1706 = vset.pattern.permute.xlu0 0
        %1707 = vperm.xlu0 %1706, %v1552
        %v1708 = vpop.permute.xlu0 %1707
        %1711 = vset.pattern.permute.xlu0 0
        %1712 = vperm.xlu0 %1711, %v1554
        %v1713 = vpop.permute.xlu0 %1712
        %v1715 = vmul.f32 %v1638, %v913
        %v1716 = vmul.f32 %v1643, %v918
        %v1717 = vmul.f32 %v1648, %v923
        %v1718 = vmul.f32 %v1653, %v928
        %v1719 = vmul.f32 %v1658, %v933
        %v1720 = vmul.f32 %v1663, %v938
        %v1721 = vmul.f32 %v1668, %v943
        %v1722 = vmul.f32 %v1673, %v948
        %v1723 = vmul.f32 %v1678, %v953
        %v1724 = vmul.f32 %v1683, %v958
        %v1725 = vmul.f32 %v1688, %v963
        %v1726 = vmul.f32 %v1693, %v968
        %v1727 = vmul.f32 %v1698, %v973
        %v1728 = vmul.f32 %v1703, %v978
        %v1729 = vmul.f32 %v1708, %v983
        %v1730 = vmul.f32 %v1713, %v988
        %1731 = vset.pattern.permute.xlu0 1
        %1732 = vperm.xlu0 %1731, %v1524
        %v1733 = vpop.permute.xlu0 %1732
        %1735 = vset.pattern.permute.xlu0 1
        %1736 = vperm.xlu0 %1735, %v1526
        %v1737 = vpop.permute.xlu0 %1736
        %1739 = vset.pattern.permute.xlu0 1
        %1740 = vperm.xlu0 %1739, %v1528
        %v1741 = vpop.permute.xlu0 %1740
        %1743 = vset.pattern.permute.xlu0 1
        %1744 = vperm.xlu0 %1743, %v1530
        %v1745 = vpop.permute.xlu0 %1744
        %1747 = vset.pattern.permute.xlu0 1
        %1748 = vperm.xlu0 %1747, %v1532
        %v1749 = vpop.permute.xlu0 %1748
        %1751 = vset.pattern.permute.xlu0 1
        %1752 = vperm.xlu0 %1751, %v1534
        %v1753 = vpop.permute.xlu0 %1752
        %1755 = vset.pattern.permute.xlu0 1
        %1756 = vperm.xlu0 %1755, %v1536
        %v1757 = vpop.permute.xlu0 %1756
        %1759 = vset.pattern.permute.xlu0 1
        %1760 = vperm.xlu0 %1759, %v1538
        %v1761 = vpop.permute.xlu0 %1760
        %1763 = vset.pattern.permute.xlu0 1
        %1764 = vperm.xlu0 %1763, %v1540
        %v1765 = vpop.permute.xlu0 %1764
        %1767 = vset.pattern.permute.xlu0 1
        %1768 = vperm.xlu0 %1767, %v1542
        %v1769 = vpop.permute.xlu0 %1768
        %1771 = vset.pattern.permute.xlu0 1
        %1772 = vperm.xlu0 %1771, %v1544
        %v1773 = vpop.permute.xlu0 %1772
        %1775 = vset.pattern.permute.xlu0 1
        %1776 = vperm.xlu0 %1775, %v1546
        %v1777 = vpop.permute.xlu0 %1776
        %1779 = vset.pattern.permute.xlu0 1
        %1780 = vperm.xlu0 %1779, %v1548
        %v1781 = vpop.permute.xlu0 %1780
        %1783 = vset.pattern.permute.xlu0 1
        %1784 = vperm.xlu0 %1783, %v1550
        %v1785 = vpop.permute.xlu0 %1784
        %1787 = vset.pattern.permute.xlu0 1
        %1788 = vperm.xlu0 %1787, %v1552
        %v1789 = vpop.permute.xlu0 %1788
        %1791 = vset.pattern.permute.xlu0 1
        %1792 = vperm.xlu0 %1791, %v1554
        %v1793 = vpop.permute.xlu0 %1792
        %v1795 = vmul.f32 %v1733, %v913
        %v1796 = vmul.f32 %v1737, %v918
        %v1797 = vmul.f32 %v1741, %v923
        %v1798 = vmul.f32 %v1745, %v928
        %v1799 = vmul.f32 %v1749, %v933
        %v1800 = vmul.f32 %v1753, %v938
        %v1801 = vmul.f32 %v1757, %v943
        %v1802 = vmul.f32 %v1761, %v948
        %v1803 = vmul.f32 %v1765, %v953
        %v1804 = vmul.f32 %v1769, %v958
        %v1805 = vmul.f32 %v1773, %v963
        %v1806 = vmul.f32 %v1777, %v968
        %v1807 = vmul.f32 %v1781, %v973
        %v1808 = vmul.f32 %v1785, %v978
        %v1809 = vmul.f32 %v1789, %v983
        %v1810 = vmul.f32 %v1793, %v988
        %1827 = vrot.lane.b32.xlu0 %v1795, 96
        %v1828 = vpop.permute.xlu0 %1827
        %1829 = vrot.lane.b32.xlu0 %v1796, 96
        %v1830 = vpop.permute.xlu0 %1829
        %1831 = vrot.lane.b32.xlu0 %v1797, 96
        %v1832 = vpop.permute.xlu0 %1831
        %1833 = vrot.lane.b32.xlu0 %v1798, 96
        %v1834 = vpop.permute.xlu0 %1833
        %1835 = vrot.lane.b32.xlu0 %v1799, 96
        %v1836 = vpop.permute.xlu0 %1835
        %1837 = vrot.lane.b32.xlu0 %v1800, 96
        %v1838 = vpop.permute.xlu0 %1837
        %1839 = vrot.lane.b32.xlu0 %v1801, 96
        %v1840 = vpop.permute.xlu0 %1839
        %1841 = vrot.lane.b32.xlu0 %v1802, 96
        %v1842 = vpop.permute.xlu0 %1841
        %1843 = vrot.lane.b32.xlu0 %v1803, 96
        %v1844 = vpop.permute.xlu0 %1843
        %1845 = vrot.lane.b32.xlu0 %v1804, 96
        %v1846 = vpop.permute.xlu0 %1845
        %1847 = vrot.lane.b32.xlu0 %v1805, 96
        %v1848 = vpop.permute.xlu0 %1847
        %1849 = vrot.lane.b32.xlu0 %v1806, 96
        %v1850 = vpop.permute.xlu0 %1849
        %1851 = vrot.lane.b32.xlu0 %v1807, 96
        %v1852 = vpop.permute.xlu0 %1851
        %1853 = vrot.lane.b32.xlu0 %v1808, 96
        %v1854 = vpop.permute.xlu0 %1853
        %1855 = vrot.lane.b32.xlu0 %v1809, 96
        %v1856 = vpop.permute.xlu0 %1855
        %1857 = vrot.lane.b32.xlu0 %v1810, 96
        %v1858 = vpop.permute.xlu0 %1857
        %v1875 = vadd.f32 %v1715, %v1828
        %v1876 = vadd.f32 %v1716, %v1830
        %v1877 = vadd.f32 %v1717, %v1832
        %v1878 = vadd.f32 %v1718, %v1834
        %v1879 = vadd.f32 %v1719, %v1836
        %v1880 = vadd.f32 %v1720, %v1838
        %v1881 = vadd.f32 %v1721, %v1840
        %v1882 = vadd.f32 %v1722, %v1842
        %v1883 = vadd.f32 %v1723, %v1844
        %v1884 = vadd.f32 %v1724, %v1846
        %v1885 = vadd.f32 %v1725, %v1848
        %v1886 = vadd.f32 %v1726, %v1850
        %v1887 = vadd.f32 %v1727, %v1852
        %v1888 = vadd.f32 %v1728, %v1854
        %v1889 = vadd.f32 %v1729, %v1856
        %v1890 = vadd.f32 %v1730, %v1858
        %1891 = vset.pattern.permute.xlu0 2
        %1892 = vperm.xlu0 %1891, %v1524
        %v1893 = vpop.permute.xlu0 %1892
        %1895 = vset.pattern.permute.xlu0 2
        %1896 = vperm.xlu0 %1895, %v1526
        %v1897 = vpop.permute.xlu0 %1896
        %1899 = vset.pattern.permute.xlu0 2
        %1900 = vperm.xlu0 %1899, %v1528
        %v1901 = vpop.permute.xlu0 %1900
        %1903 = vset.pattern.permute.xlu0 2
        %1904 = vperm.xlu0 %1903, %v1530
        %v1905 = vpop.permute.xlu0 %1904
        %1907 = vset.pattern.permute.xlu0 2
        %1908 = vperm.xlu0 %1907, %v1532
        %v1909 = vpop.permute.xlu0 %1908
        %1911 = vset.pattern.permute.xlu0 2
        %1912 = vperm.xlu0 %1911, %v1534
        %v1913 = vpop.permute.xlu0 %1912
        %1915 = vset.pattern.permute.xlu0 2
        %1916 = vperm.xlu0 %1915, %v1536
        %v1917 = vpop.permute.xlu0 %1916
        %1919 = vset.pattern.permute.xlu0 2
        %1920 = vperm.xlu0 %1919, %v1538
        %v1921 = vpop.permute.xlu0 %1920
        %1923 = vset.pattern.permute.xlu0 2
        %1924 = vperm.xlu0 %1923, %v1540
        %v1925 = vpop.permute.xlu0 %1924
        %1927 = vset.pattern.permute.xlu0 2
        %1928 = vperm.xlu0 %1927, %v1542
        %v1929 = vpop.permute.xlu0 %1928
        %1931 = vset.pattern.permute.xlu0 2
        %1932 = vperm.xlu0 %1931, %v1544
        %v1933 = vpop.permute.xlu0 %1932
        %1935 = vset.pattern.permute.xlu0 2
        %1936 = vperm.xlu0 %1935, %v1546
        %v1937 = vpop.permute.xlu0 %1936
        %1939 = vset.pattern.permute.xlu0 2
        %1940 = vperm.xlu0 %1939, %v1548
        %v1941 = vpop.permute.xlu0 %1940
        %1943 = vset.pattern.permute.xlu0 2
        %1944 = vperm.xlu0 %1943, %v1550
        %v1945 = vpop.permute.xlu0 %1944
        %1947 = vset.pattern.permute.xlu0 2
        %1948 = vperm.xlu0 %1947, %v1552
        %v1949 = vpop.permute.xlu0 %1948
        %1951 = vset.pattern.permute.xlu0 2
        %1952 = vperm.xlu0 %1951, %v1554
        %v1953 = vpop.permute.xlu0 %1952
        %v1955 = vmul.f32 %v1893, %v913
        %v1956 = vmul.f32 %v1897, %v918
        %v1957 = vmul.f32 %v1901, %v923
        %v1958 = vmul.f32 %v1905, %v928
        %v1959 = vmul.f32 %v1909, %v933
        %v1960 = vmul.f32 %v1913, %v938
        %v1961 = vmul.f32 %v1917, %v943
        %v1962 = vmul.f32 %v1921, %v948
        %v1963 = vmul.f32 %v1925, %v953
        %v1964 = vmul.f32 %v1929, %v958
        %v1965 = vmul.f32 %v1933, %v963
        %v1966 = vmul.f32 %v1937, %v968
        %v1967 = vmul.f32 %v1941, %v973
        %v1968 = vmul.f32 %v1945, %v978
        %v1969 = vmul.f32 %v1949, %v983
        %v1970 = vmul.f32 %v1953, %v988
        %1987 = vrot.lane.b32.xlu0 %v1955, 64
        %v1988 = vpop.permute.xlu0 %1987
        %1989 = vrot.lane.b32.xlu0 %v1956, 64
        %v1990 = vpop.permute.xlu0 %1989
        %1991 = vrot.lane.b32.xlu0 %v1957, 64
        %v1992 = vpop.permute.xlu0 %1991
        %1993 = vrot.lane.b32.xlu0 %v1958, 64
        %v1994 = vpop.permute.xlu0 %1993
        %1995 = vrot.lane.b32.xlu0 %v1959, 64
        %v1996 = vpop.permute.xlu0 %1995
        %1997 = vrot.lane.b32.xlu0 %v1960, 64
        %v1998 = vpop.permute.xlu0 %1997
        %1999 = vrot.lane.b32.xlu0 %v1961, 64
        %v2000 = vpop.permute.xlu0 %1999
        %2001 = vrot.lane.b32.xlu0 %v1962, 64
        %v2002 = vpop.permute.xlu0 %2001
        %2003 = vrot.lane.b32.xlu0 %v1963, 64
        %v2004 = vpop.permute.xlu0 %2003
        %2005 = vrot.lane.b32.xlu0 %v1964, 64
        %v2006 = vpop.permute.xlu0 %2005
        %2007 = vrot.lane.b32.xlu0 %v1965, 64
        %v2008 = vpop.permute.xlu0 %2007
        %2009 = vrot.lane.b32.xlu0 %v1966, 64
        %v2010 = vpop.permute.xlu0 %2009
        %2011 = vrot.lane.b32.xlu0 %v1967, 64
        %v2012 = vpop.permute.xlu0 %2011
        %2013 = vrot.lane.b32.xlu0 %v1968, 64
        %v2014 = vpop.permute.xlu0 %2013
        %2015 = vrot.lane.b32.xlu0 %v1969, 64
        %v2016 = vpop.permute.xlu0 %2015
        %2017 = vrot.lane.b32.xlu0 %v1970, 64
        %v2018 = vpop.permute.xlu0 %2017
        %v2035 = vadd.f32 %v1875, %v1988
        %v2036 = vadd.f32 %v1876, %v1990
        %v2037 = vadd.f32 %v1877, %v1992
        %v2038 = vadd.f32 %v1878, %v1994
        %v2039 = vadd.f32 %v1879, %v1996
        %v2040 = vadd.f32 %v1880, %v1998
        %v2041 = vadd.f32 %v1881, %v2000
        %v2042 = vadd.f32 %v1882, %v2002
        %v2043 = vadd.f32 %v1883, %v2004
        %v2044 = vadd.f32 %v1884, %v2006
        %v2045 = vadd.f32 %v1885, %v2008
        %v2046 = vadd.f32 %v1886, %v2010
        %v2047 = vadd.f32 %v1887, %v2012
        %v2048 = vadd.f32 %v1888, %v2014
        %v2049 = vadd.f32 %v1889, %v2016
        %v2050 = vadd.f32 %v1890, %v2018
        %2051 = vset.pattern.permute.xlu0 3
        %2052 = vperm.xlu0 %2051, %v1524
        %v2053 = vpop.permute.xlu0 %2052
        %2055 = vset.pattern.permute.xlu0 3
        %2056 = vperm.xlu0 %2055, %v1526
        %v2057 = vpop.permute.xlu0 %2056
        %2059 = vset.pattern.permute.xlu0 3
        %2060 = vperm.xlu0 %2059, %v1528
        %v2061 = vpop.permute.xlu0 %2060
        %2063 = vset.pattern.permute.xlu0 3
        %2064 = vperm.xlu0 %2063, %v1530
        %v2065 = vpop.permute.xlu0 %2064
        %2067 = vset.pattern.permute.xlu0 3
        %2068 = vperm.xlu0 %2067, %v1532
        %v2069 = vpop.permute.xlu0 %2068
        %2071 = vset.pattern.permute.xlu0 3
        %2072 = vperm.xlu0 %2071, %v1534
        %v2073 = vpop.permute.xlu0 %2072
        %2075 = vset.pattern.permute.xlu0 3
        %2076 = vperm.xlu0 %2075, %v1536
        %v2077 = vpop.permute.xlu0 %2076
        %2079 = vset.pattern.permute.xlu0 3
        %2080 = vperm.xlu0 %2079, %v1538
        %v2081 = vpop.permute.xlu0 %2080
        %2083 = vset.pattern.permute.xlu0 3
        %2084 = vperm.xlu0 %2083, %v1540
        %v2085 = vpop.permute.xlu0 %2084
        %2087 = vset.pattern.permute.xlu0 3
        %2088 = vperm.xlu0 %2087, %v1542
        %v2089 = vpop.permute.xlu0 %2088
        %2091 = vset.pattern.permute.xlu0 3
        %2092 = vperm.xlu0 %2091, %v1544
        %v2093 = vpop.permute.xlu0 %2092
        %2095 = vset.pattern.permute.xlu0 3
        %2096 = vperm.xlu0 %2095, %v1546
        %v2097 = vpop.permute.xlu0 %2096
        %2099 = vset.pattern.permute.xlu0 3
        %2100 = vperm.xlu0 %2099, %v1548
        %v2101 = vpop.permute.xlu0 %2100
        %2103 = vset.pattern.permute.xlu0 3
        %2104 = vperm.xlu0 %2103, %v1550
        %v2105 = vpop.permute.xlu0 %2104
        %2107 = vset.pattern.permute.xlu0 3
        %2108 = vperm.xlu0 %2107, %v1552
        %v2109 = vpop.permute.xlu0 %2108
        %2111 = vset.pattern.permute.xlu0 3
        %2112 = vperm.xlu0 %2111, %v1554
        %v2113 = vpop.permute.xlu0 %2112
        %v2115 = vmul.f32 %v2053, %v913
        %v2116 = vmul.f32 %v2057, %v918
        %v2117 = vmul.f32 %v2061, %v923
        %v2118 = vmul.f32 %v2065, %v928
        %v2119 = vmul.f32 %v2069, %v933
        %v2120 = vmul.f32 %v2073, %v938
        %v2121 = vmul.f32 %v2077, %v943
        %v2122 = vmul.f32 %v2081, %v948
        %v2123 = vmul.f32 %v2085, %v953
        %v2124 = vmul.f32 %v2089, %v958
        %v2125 = vmul.f32 %v2093, %v963
        %v2126 = vmul.f32 %v2097, %v968
        %v2127 = vmul.f32 %v2101, %v973
        %v2128 = vmul.f32 %v2105, %v978
        %v2129 = vmul.f32 %v2109, %v983
        %v2130 = vmul.f32 %v2113, %v988
        %2147 = vrot.lane.b32.xlu0 %v2115, 32
        %v2148 = vpop.permute.xlu0 %2147
        %2149 = vrot.lane.b32.xlu0 %v2116, 32
        %v2150 = vpop.permute.xlu0 %2149
        %2151 = vrot.lane.b32.xlu0 %v2117, 32
        %v2152 = vpop.permute.xlu0 %2151
        %2153 = vrot.lane.b32.xlu0 %v2118, 32
        %v2154 = vpop.permute.xlu0 %2153
        %2155 = vrot.lane.b32.xlu0 %v2119, 32
        %v2156 = vpop.permute.xlu0 %2155
        %2157 = vrot.lane.b32.xlu0 %v2120, 32
        %v2158 = vpop.permute.xlu0 %2157
        %2159 = vrot.lane.b32.xlu0 %v2121, 32
        %v2160 = vpop.permute.xlu0 %2159
        %2161 = vrot.lane.b32.xlu0 %v2122, 32
        %v2162 = vpop.permute.xlu0 %2161
        %2163 = vrot.lane.b32.xlu0 %v2123, 32
        %v2164 = vpop.permute.xlu0 %2163
        %2165 = vrot.lane.b32.xlu0 %v2124, 32
        %v2166 = vpop.permute.xlu0 %2165
        %2167 = vrot.lane.b32.xlu0 %v2125, 32
        %v2168 = vpop.permute.xlu0 %2167
        %2169 = vrot.lane.b32.xlu0 %v2126, 32
        %v2170 = vpop.permute.xlu0 %2169
        %2171 = vrot.lane.b32.xlu0 %v2127, 32
        %v2172 = vpop.permute.xlu0 %2171
        %2173 = vrot.lane.b32.xlu0 %v2128, 32
        %v2174 = vpop.permute.xlu0 %2173
        %2175 = vrot.lane.b32.xlu0 %v2129, 32
        %v2176 = vpop.permute.xlu0 %2175
        %2177 = vrot.lane.b32.xlu0 %v2130, 32
        %v2178 = vpop.permute.xlu0 %2177
        %v2195 = vadd.f32 %v2035, %v2148
        %v2196 = vadd.f32 %v2036, %v2150
        %v2197 = vadd.f32 %v2037, %v2152
        %v2198 = vadd.f32 %v2038, %v2154
        %v2199 = vadd.f32 %v2039, %v2156
        %v2200 = vadd.f32 %v2040, %v2158
        %v2201 = vadd.f32 %v2041, %v2160
        %v2202 = vadd.f32 %v2042, %v2162
        %v2203 = vadd.f32 %v2043, %v2164
        %v2204 = vadd.f32 %v2044, %v2166
        %v2205 = vadd.f32 %v2045, %v2168
        %v2206 = vadd.f32 %v2046, %v2170
        %v2207 = vadd.f32 %v2047, %v2172
        %v2208 = vadd.f32 %v2048, %v2174
        %v2209 = vadd.f32 %v2049, %v2176
        %v2210 = vadd.f32 %v2050, %v2178
        %v2211 = vmul.f32 %v2195, %v1604
        %v2212 = vmul.f32 %v2196, %v1606
        %v2213 = vmul.f32 %v2197, %v1608
        %v2214 = vmul.f32 %v2198, %v1610
        %v2215 = vmul.f32 %v2199, %v1612
        %v2216 = vmul.f32 %v2200, %v1614
        %v2217 = vmul.f32 %v2201, %v1616
        %v2218 = vmul.f32 %v2202, %v1618
        %v2219 = vmul.f32 %v2203, %v1620
        %v2220 = vmul.f32 %v2204, %v1622
        %v2221 = vmul.f32 %v2205, %v1624
        %v2222 = vmul.f32 %v2206, %v1626
        %v2223 = vmul.f32 %v2207, %v1628
        %v2224 = vmul.f32 %v2208, %v1630
        %v2225 = vmul.f32 %v2209, %v1632
        %v2226 = vmul.f32 %v2210, %v1634
        %2227 = vst.msk [vmem:[#allocation2] sm:$0xff] %vm371, %v2211
        %2228 = vst.msk [vmem:[#allocation2 + $0x8] sm:$0xff] %vm371, %v2212
        %2229 = vst.msk [vmem:[#allocation2 + $0x10] sm:$0xff] %vm371, %v2213
        %2230 = vst.msk [vmem:[#allocation2 + $0x18] sm:$0xff] %vm371, %v2214
        %2231 = vst.msk [vmem:[#allocation2 + $0x20] sm:$0xff] %vm371, %v2215
        %2232 = vst.msk [vmem:[#allocation2 + $0x28] sm:$0xff] %vm371, %v2216
        %2233 = vst.msk [vmem:[#allocation2 + $0x30] sm:$0xff] %vm371, %v2217
        %2234 = vst.msk [vmem:[#allocation2 + $0x38] sm:$0xff] %vm371, %v2218
        %2235 = vst.msk [vmem:[#allocation2 + $0x40] sm:$0xff] %vm371, %v2219
        %2236 = vst.msk [vmem:[#allocation2 + $0x48] sm:$0xff] %vm371, %v2220
        %2237 = vst.msk [vmem:[#allocation2 + $0x50] sm:$0xff] %vm371, %v2221
        %2238 = vst.msk [vmem:[#allocation2 + $0x58] sm:$0xff] %vm371, %v2222
        %2239 = vst.msk [vmem:[#allocation2 + $0x60] sm:$0xff] %vm371, %v2223
        %2240 = vst.msk [vmem:[#allocation2 + $0x68] sm:$0xff] %vm371, %v2224
        %2241 = vst.msk [vmem:[#allocation2 + $0x70] sm:$0xff] %vm371, %v2225
        %2242 = vst.msk [vmem:[#allocation2 + $0x78] sm:$0xff] %vm371, %v2226
        %2259 = vrot.lane.b32.xlu0 %v1343, 96
        %v2260 = vpop.permute.xlu0 %2259
        %2261 = vrot.lane.b32.xlu0 %v1344, 96
        %v2262 = vpop.permute.xlu0 %2261
        %2263 = vrot.lane.b32.xlu0 %v1345, 96
        %v2264 = vpop.permute.xlu0 %2263
        %2265 = vrot.lane.b32.xlu0 %v1346, 96
        %v2266 = vpop.permute.xlu0 %2265
        %2267 = vrot.lane.b32.xlu0 %v1347, 96
        %v2268 = vpop.permute.xlu0 %2267
        %2269 = vrot.lane.b32.xlu0 %v1348, 96
        %v2270 = vpop.permute.xlu0 %2269
        %2271 = vrot.lane.b32.xlu0 %v1349, 96
        %v2272 = vpop.permute.xlu0 %2271
        %2273 = vrot.lane.b32.xlu0 %v1350, 96
        %v2274 = vpop.permute.xlu0 %2273
        %2275 = vrot.lane.b32.xlu0 %v1351, 96
        %v2276 = vpop.permute.xlu0 %2275
        %2277 = vrot.lane.b32.xlu0 %v1352, 96
        %v2278 = vpop.permute.xlu0 %2277
        %2279 = vrot.lane.b32.xlu0 %v1353, 96
        %v2280 = vpop.permute.xlu0 %2279
        %2281 = vrot.lane.b32.xlu0 %v1354, 96
        %v2282 = vpop.permute.xlu0 %2281
        %2283 = vrot.lane.b32.xlu0 %v1355, 96
        %v2284 = vpop.permute.xlu0 %2283
        %2285 = vrot.lane.b32.xlu0 %v1356, 96
        %v2286 = vpop.permute.xlu0 %2285
        %2287 = vrot.lane.b32.xlu0 %v1357, 96
        %v2288 = vpop.permute.xlu0 %2287
        %2289 = vrot.lane.b32.xlu0 %v1358, 96
        %v2290 = vpop.permute.xlu0 %2289
        %v2307 = vsel %vm371, %v2260, 0.0
        %2308 = vadd.xlane.f32.xlu0 %v2307
        %v2309 = vpop.xlane.xlu0 %2308
        %v2310 = vsel %vm371, %v2262, 0.0
        %2311 = vadd.xlane.f32.xlu0 %v2310
        %v2312 = vpop.xlane.xlu0 %2311
        %v2313 = vsel %vm371, %v2264, 0.0
        %2314 = vadd.xlane.f32.xlu0 %v2313
        %v2315 = vpop.xlane.xlu0 %2314
        %v2316 = vsel %vm371, %v2266, 0.0
        %2317 = vadd.xlane.f32.xlu0 %v2316
        %v2318 = vpop.xlane.xlu0 %2317
        %v2319 = vsel %vm371, %v2268, 0.0
        %2320 = vadd.xlane.f32.xlu0 %v2319
        %v2321 = vpop.xlane.xlu0 %2320
        %v2322 = vsel %vm371, %v2270, 0.0
        %2323 = vadd.xlane.f32.xlu0 %v2322
        %v2324 = vpop.xlane.xlu0 %2323
        %v2325 = vsel %vm371, %v2272, 0.0
        %2326 = vadd.xlane.f32.xlu0 %v2325
        %v2327 = vpop.xlane.xlu0 %2326
        %v2328 = vsel %vm371, %v2274, 0.0
        %2329 = vadd.xlane.f32.xlu0 %v2328
        %v2330 = vpop.xlane.xlu0 %2329
        %v2331 = vsel %vm371, %v2276, 0.0
        %2332 = vadd.xlane.f32.xlu0 %v2331
        %v2333 = vpop.xlane.xlu0 %2332
        %v2334 = vsel %vm371, %v2278, 0.0
        %2335 = vadd.xlane.f32.xlu0 %v2334
        %v2336 = vpop.xlane.xlu0 %2335
        %v2337 = vsel %vm371, %v2280, 0.0
        %2338 = vadd.xlane.f32.xlu0 %v2337
        %v2339 = vpop.xlane.xlu0 %2338
        %v2340 = vsel %vm371, %v2282, 0.0
        %2341 = vadd.xlane.f32.xlu0 %v2340
        %v2342 = vpop.xlane.xlu0 %2341
        %v2343 = vsel %vm371, %v2284, 0.0
        %2344 = vadd.xlane.f32.xlu0 %v2343
        %v2345 = vpop.xlane.xlu0 %2344
        %v2346 = vsel %vm371, %v2286, 0.0
        %2347 = vadd.xlane.f32.xlu0 %v2346
        %v2348 = vpop.xlane.xlu0 %2347
        %v2349 = vsel %vm371, %v2288, 0.0
        %2350 = vadd.xlane.f32.xlu0 %v2349
        %v2351 = vpop.xlane.xlu0 %2350
        %v2352 = vsel %vm371, %v2290, 0.0
        %2353 = vadd.xlane.f32.xlu0 %v2352
        %v2354 = vpop.xlane.xlu0 %2353
        %2371 = vrot.lane.b32.xlu0 %v991, 96
        %v2372 = vpop.permute.xlu0 %2371
        %2373 = vrot.lane.b32.xlu0 %v992, 96
        %v2374 = vpop.permute.xlu0 %2373
        %2375 = vrot.lane.b32.xlu0 %v993, 96
        %v2376 = vpop.permute.xlu0 %2375
        %2377 = vrot.lane.b32.xlu0 %v994, 96
        %v2378 = vpop.permute.xlu0 %2377
        %2379 = vrot.lane.b32.xlu0 %v995, 96
        %v2380 = vpop.permute.xlu0 %2379
        %2381 = vrot.lane.b32.xlu0 %v996, 96
        %v2382 = vpop.permute.xlu0 %2381
        %2383 = vrot.lane.b32.xlu0 %v997, 96
        %v2384 = vpop.permute.xlu0 %2383
        %2385 = vrot.lane.b32.xlu0 %v998, 96
        %v2386 = vpop.permute.xlu0 %2385
        %2387 = vrot.lane.b32.xlu0 %v999, 96
        %v2388 = vpop.permute.xlu0 %2387
        %2389 = vrot.lane.b32.xlu0 %v1000, 96
        %v2390 = vpop.permute.xlu0 %2389
        %2391 = vrot.lane.b32.xlu0 %v1001, 96
        %v2392 = vpop.permute.xlu0 %2391
        %2393 = vrot.lane.b32.xlu0 %v1002, 96
        %v2394 = vpop.permute.xlu0 %2393
        %2395 = vrot.lane.b32.xlu0 %v1003, 96
        %v2396 = vpop.permute.xlu0 %2395
        %2397 = vrot.lane.b32.xlu0 %v1004, 96
        %v2398 = vpop.permute.xlu0 %2397
        %2399 = vrot.lane.b32.xlu0 %v1005, 96
        %v2400 = vpop.permute.xlu0 %2399
        %2401 = vrot.lane.b32.xlu0 %v1006, 96
        %v2402 = vpop.permute.xlu0 %2401
        %v2419 = vsel %vm371, %v2372, 0.0
        %2420 = vadd.xlane.f32.xlu0 %v2419
        %v2421 = vpop.xlane.xlu0 %2420
        %v2422 = vsel %vm371, %v2374, 0.0
        %2423 = vadd.xlane.f32.xlu0 %v2422
        %v2424 = vpop.xlane.xlu0 %2423
        %v2425 = vsel %vm371, %v2376, 0.0
        %2426 = vadd.xlane.f32.xlu0 %v2425
        %v2427 = vpop.xlane.xlu0 %2426
        %v2428 = vsel %vm371, %v2378, 0.0
        %2429 = vadd.xlane.f32.xlu0 %v2428
        %v2430 = vpop.xlane.xlu0 %2429
        %v2431 = vsel %vm371, %v2380, 0.0
        %2432 = vadd.xlane.f32.xlu0 %v2431
        %v2433 = vpop.xlane.xlu0 %2432
        %v2434 = vsel %vm371, %v2382, 0.0
        %2435 = vadd.xlane.f32.xlu0 %v2434
        %v2436 = vpop.xlane.xlu0 %2435
        %v2437 = vsel %vm371, %v2384, 0.0
        %2438 = vadd.xlane.f32.xlu0 %v2437
        %v2439 = vpop.xlane.xlu0 %2438
        %v2440 = vsel %vm371, %v2386, 0.0
        %2441 = vadd.xlane.f32.xlu0 %v2440
        %v2442 = vpop.xlane.xlu0 %2441
        %v2443 = vsel %vm371, %v2388, 0.0
        %2444 = vadd.xlane.f32.xlu0 %v2443
        %v2445 = vpop.xlane.xlu0 %2444
        %v2446 = vsel %vm371, %v2390, 0.0
        %2447 = vadd.xlane.f32.xlu0 %v2446
        %v2448 = vpop.xlane.xlu0 %2447
        %v2449 = vsel %vm371, %v2392, 0.0
        %2450 = vadd.xlane.f32.xlu0 %v2449
        %v2451 = vpop.xlane.xlu0 %2450
        %v2452 = vsel %vm371, %v2394, 0.0
        %2453 = vadd.xlane.f32.xlu0 %v2452
        %v2454 = vpop.xlane.xlu0 %2453
        %v2455 = vsel %vm371, %v2396, 0.0
        %2456 = vadd.xlane.f32.xlu0 %v2455
        %v2457 = vpop.xlane.xlu0 %2456
        %v2458 = vsel %vm371, %v2398, 0.0
        %2459 = vadd.xlane.f32.xlu0 %v2458
        %v2460 = vpop.xlane.xlu0 %2459
        %v2461 = vsel %vm371, %v2400, 0.0
        %2462 = vadd.xlane.f32.xlu0 %v2461
        %v2463 = vpop.xlane.xlu0 %2462
        %v2464 = vsel %vm371, %v2402, 0.0
        %2465 = vadd.xlane.f32.xlu0 %v2464
        %v2466 = vpop.xlane.xlu0 %2465
        %2483 = vrot.lane.b32.xlu0 %v1119, 96
        %v2484 = vpop.permute.xlu0 %2483
        %2485 = vrot.lane.b32.xlu0 %v1120, 96
        %v2486 = vpop.permute.xlu0 %2485
        %2487 = vrot.lane.b32.xlu0 %v1121, 96
        %v2488 = vpop.permute.xlu0 %2487
        %2489 = vrot.lane.b32.xlu0 %v1122, 96
        %v2490 = vpop.permute.xlu0 %2489
        %2491 = vrot.lane.b32.xlu0 %v1123, 96
        %v2492 = vpop.permute.xlu0 %2491
        %2493 = vrot.lane.b32.xlu0 %v1124, 96
        %v2494 = vpop.permute.xlu0 %2493
        %2495 = vrot.lane.b32.xlu0 %v1125, 96
        %v2496 = vpop.permute.xlu0 %2495
        %2497 = vrot.lane.b32.xlu0 %v1126, 96
        %v2498 = vpop.permute.xlu0 %2497
        %2499 = vrot.lane.b32.xlu0 %v1127, 96
        %v2500 = vpop.permute.xlu0 %2499
        %2501 = vrot.lane.b32.xlu0 %v1128, 96
        %v2502 = vpop.permute.xlu0 %2501
        %2503 = vrot.lane.b32.xlu0 %v1129, 96
        %v2504 = vpop.permute.xlu0 %2503
        %2505 = vrot.lane.b32.xlu0 %v1130, 96
        %v2506 = vpop.permute.xlu0 %2505
        %2507 = vrot.lane.b32.xlu0 %v1131, 96
        %v2508 = vpop.permute.xlu0 %2507
        %2509 = vrot.lane.b32.xlu0 %v1132, 96
        %v2510 = vpop.permute.xlu0 %2509
        %2511 = vrot.lane.b32.xlu0 %v1133, 96
        %v2512 = vpop.permute.xlu0 %2511
        %2513 = vrot.lane.b32.xlu0 %v1134, 96
        %v2514 = vpop.permute.xlu0 %2513
        %v2531 = vsel %vm371, %v2484, 0.0
        %2532 = vadd.xlane.f32.xlu0 %v2531
        %v2533 = vpop.xlane.xlu0 %2532
        %v2534 = vsel %vm371, %v2486, 0.0
        %2535 = vadd.xlane.f32.xlu0 %v2534
        %v2536 = vpop.xlane.xlu0 %2535
        %v2537 = vsel %vm371, %v2488, 0.0
        %2538 = vadd.xlane.f32.xlu0 %v2537
        %v2539 = vpop.xlane.xlu0 %2538
        %v2540 = vsel %vm371, %v2490, 0.0
        %2541 = vadd.xlane.f32.xlu0 %v2540
        %v2542 = vpop.xlane.xlu0 %2541
        %v2543 = vsel %vm371, %v2492, 0.0
        %2544 = vadd.xlane.f32.xlu0 %v2543
        %v2545 = vpop.xlane.xlu0 %2544
        %v2546 = vsel %vm371, %v2494, 0.0
        %2547 = vadd.xlane.f32.xlu0 %v2546
        %v2548 = vpop.xlane.xlu0 %2547
        %v2549 = vsel %vm371, %v2496, 0.0
        %2550 = vadd.xlane.f32.xlu0 %v2549
        %v2551 = vpop.xlane.xlu0 %2550
        %v2552 = vsel %vm371, %v2498, 0.0
        %2553 = vadd.xlane.f32.xlu0 %v2552
        %v2554 = vpop.xlane.xlu0 %2553
        %v2555 = vsel %vm371, %v2500, 0.0
        %2556 = vadd.xlane.f32.xlu0 %v2555
        %v2557 = vpop.xlane.xlu0 %2556
        %v2558 = vsel %vm371, %v2502, 0.0
        %2559 = vadd.xlane.f32.xlu0 %v2558
        %v2560 = vpop.xlane.xlu0 %2559
        %v2561 = vsel %vm371, %v2504, 0.0
        %2562 = vadd.xlane.f32.xlu0 %v2561
        %v2563 = vpop.xlane.xlu0 %2562
        %v2564 = vsel %vm371, %v2506, 0.0
        %2565 = vadd.xlane.f32.xlu0 %v2564
        %v2566 = vpop.xlane.xlu0 %2565
        %v2567 = vsel %vm371, %v2508, 0.0
        %2568 = vadd.xlane.f32.xlu0 %v2567
        %v2569 = vpop.xlane.xlu0 %2568
        %v2570 = vsel %vm371, %v2510, 0.0
        %2571 = vadd.xlane.f32.xlu0 %v2570
        %v2572 = vpop.xlane.xlu0 %2571
        %v2573 = vsel %vm371, %v2512, 0.0
        %2574 = vadd.xlane.f32.xlu0 %v2573
        %v2575 = vpop.xlane.xlu0 %2574
        %v2576 = vsel %vm371, %v2514, 0.0
        %2577 = vadd.xlane.f32.xlu0 %v2576
        %v2578 = vpop.xlane.xlu0 %2577
        %2595 = vrot.lane.b32.xlu0 %v1231, 96
        %v2596 = vpop.permute.xlu0 %2595
        %2597 = vrot.lane.b32.xlu0 %v1232, 96
        %v2598 = vpop.permute.xlu0 %2597
        %2599 = vrot.lane.b32.xlu0 %v1233, 96
        %v2600 = vpop.permute.xlu0 %2599
        %2601 = vrot.lane.b32.xlu0 %v1234, 96
        %v2602 = vpop.permute.xlu0 %2601
        %2603 = vrot.lane.b32.xlu0 %v1235, 96
        %v2604 = vpop.permute.xlu0 %2603
        %2605 = vrot.lane.b32.xlu0 %v1236, 96
        %v2606 = vpop.permute.xlu0 %2605
        %2607 = vrot.lane.b32.xlu0 %v1237, 96
        %v2608 = vpop.permute.xlu0 %2607
        %2609 = vrot.lane.b32.xlu0 %v1238, 96
        %v2610 = vpop.permute.xlu0 %2609
        %2611 = vrot.lane.b32.xlu0 %v1239, 96
        %v2612 = vpop.permute.xlu0 %2611
        %2613 = vrot.lane.b32.xlu0 %v1240, 96
        %v2614 = vpop.permute.xlu0 %2613
        %2615 = vrot.lane.b32.xlu0 %v1241, 96
        %v2616 = vpop.permute.xlu0 %2615
        %2617 = vrot.lane.b32.xlu0 %v1242, 96
        %v2618 = vpop.permute.xlu0 %2617
        %2619 = vrot.lane.b32.xlu0 %v1243, 96
        %v2620 = vpop.permute.xlu0 %2619
        %2621 = vrot.lane.b32.xlu0 %v1244, 96
        %v2622 = vpop.permute.xlu0 %2621
        %2623 = vrot.lane.b32.xlu0 %v1245, 96
        %v2624 = vpop.permute.xlu0 %2623
        %2625 = vrot.lane.b32.xlu0 %v1246, 96
        %v2626 = vpop.permute.xlu0 %2625
        %v2643 = vsel %vm371, %v2596, 0.0
        %2644 = vadd.xlane.f32.xlu0 %v2643
        %v2645 = vpop.xlane.xlu0 %2644
        %v2646 = vsel %vm371, %v2598, 0.0
        %2647 = vadd.xlane.f32.xlu0 %v2646
        %v2648 = vpop.xlane.xlu0 %2647
        %v2649 = vsel %vm371, %v2600, 0.0
        %2650 = vadd.xlane.f32.xlu0 %v2649
        %v2651 = vpop.xlane.xlu0 %2650
        %v2652 = vsel %vm371, %v2602, 0.0
        %2653 = vadd.xlane.f32.xlu0 %v2652
        %v2654 = vpop.xlane.xlu0 %2653
        %v2655 = vsel %vm371, %v2604, 0.0
        %2656 = vadd.xlane.f32.xlu0 %v2655
        %v2657 = vpop.xlane.xlu0 %2656
        %v2658 = vsel %vm371, %v2606, 0.0
        %2659 = vadd.xlane.f32.xlu0 %v2658
        %v2660 = vpop.xlane.xlu0 %2659
        %v2661 = vsel %vm371, %v2608, 0.0
        %2662 = vadd.xlane.f32.xlu0 %v2661
        %v2663 = vpop.xlane.xlu0 %2662
        %v2664 = vsel %vm371, %v2610, 0.0
        %2665 = vadd.xlane.f32.xlu0 %v2664
        %v2666 = vpop.xlane.xlu0 %2665
        %v2667 = vsel %vm371, %v2612, 0.0
        %2668 = vadd.xlane.f32.xlu0 %v2667
        %v2669 = vpop.xlane.xlu0 %2668
        %v2670 = vsel %vm371, %v2614, 0.0
        %2671 = vadd.xlane.f32.xlu0 %v2670
        %v2672 = vpop.xlane.xlu0 %2671
        %v2673 = vsel %vm371, %v2616, 0.0
        %2674 = vadd.xlane.f32.xlu0 %v2673
        %v2675 = vpop.xlane.xlu0 %2674
        %v2676 = vsel %vm371, %v2618, 0.0
        %2677 = vadd.xlane.f32.xlu0 %v2676
        %v2678 = vpop.xlane.xlu0 %2677
        %v2679 = vsel %vm371, %v2620, 0.0
        %2680 = vadd.xlane.f32.xlu0 %v2679
        %v2681 = vpop.xlane.xlu0 %2680
        %v2682 = vsel %vm371, %v2622, 0.0
        %2683 = vadd.xlane.f32.xlu0 %v2682
        %v2684 = vpop.xlane.xlu0 %2683
        %v2685 = vsel %vm371, %v2624, 0.0
        %2686 = vadd.xlane.f32.xlu0 %v2685
        %v2687 = vpop.xlane.xlu0 %2686
        %v2688 = vsel %vm371, %v2626, 0.0
        %2689 = vadd.xlane.f32.xlu0 %v2688
        %v2690 = vpop.xlane.xlu0 %2689
        %v2691 = vsel %vm1407, %v2309, %v2421
        %v2692 = vsel %vm1407, %v2312, %v2424
        %v2693 = vsel %vm1407, %v2315, %v2427
        %v2694 = vsel %vm1407, %v2318, %v2430
        %v2695 = vsel %vm1407, %v2321, %v2433
        %v2696 = vsel %vm1407, %v2324, %v2436
        %v2697 = vsel %vm1407, %v2327, %v2439
        %v2698 = vsel %vm1407, %v2330, %v2442
        %v2699 = vsel %vm1407, %v2333, %v2445
        %v2700 = vsel %vm1407, %v2336, %v2448
        %v2701 = vsel %vm1407, %v2339, %v2451
        %v2702 = vsel %vm1407, %v2342, %v2454
        %v2703 = vsel %vm1407, %v2345, %v2457
        %v2704 = vsel %vm1407, %v2348, %v2460
        %v2705 = vsel %vm1407, %v2351, %v2463
        %v2706 = vsel %vm1407, %v2354, %v2466
        %v2707 = vsel %vm1424, %v2691, %v2533
        %v2708 = vsel %vm1424, %v2692, %v2536
        %v2709 = vsel %vm1424, %v2693, %v2539
        %v2710 = vsel %vm1424, %v2694, %v2542
        %v2711 = vsel %vm1424, %v2695, %v2545
        %v2712 = vsel %vm1424, %v2696, %v2548
        %v2713 = vsel %vm1424, %v2697, %v2551
        %v2714 = vsel %vm1424, %v2698, %v2554
        %v2715 = vsel %vm1424, %v2699, %v2557
        %v2716 = vsel %vm1424, %v2700, %v2560
        %v2717 = vsel %vm1424, %v2701, %v2563
        %v2718 = vsel %vm1424, %v2702, %v2566
        %v2719 = vsel %vm1424, %v2703, %v2569
        %v2720 = vsel %vm1424, %v2704, %v2572
        %v2721 = vsel %vm1424, %v2705, %v2575
        %v2722 = vsel %vm1424, %v2706, %v2578
        %v2723 = vsel %vm1441, %v2707, %v2645
        %v2724 = vsel %vm1441, %v2708, %v2648
        %v2725 = vsel %vm1441, %v2709, %v2651
        %v2726 = vsel %vm1441, %v2710, %v2654
        %v2727 = vsel %vm1441, %v2711, %v2657
        %v2728 = vsel %vm1441, %v2712, %v2660
        %v2729 = vsel %vm1441, %v2713, %v2663
        %v2730 = vsel %vm1441, %v2714, %v2666
        %v2731 = vsel %vm1441, %v2715, %v2669
        %v2732 = vsel %vm1441, %v2716, %v2672
        %v2733 = vsel %vm1441, %v2717, %v2675
        %v2734 = vsel %vm1441, %v2718, %v2678
        %v2735 = vsel %vm1441, %v2719, %v2681
        %v2736 = vsel %vm1441, %v2720, %v2684
        %v2737 = vsel %vm1441, %v2721, %v2687
        %v2738 = vsel %vm1441, %v2722, %v2690
        %v2739 = vsel %vm1458, %v2723, -inf
        %2740 = vmax.xlane.f32.xlu0 %v2739
        %v2741 = vpop.xlane.xlu0 %2740
        %v2742 = vsel %vm1458, %v2724, -inf
        %2743 = vmax.xlane.f32.xlu0 %v2742
        %v2744 = vpop.xlane.xlu0 %2743
        %v2745 = vsel %vm1458, %v2725, -inf
        %2746 = vmax.xlane.f32.xlu0 %v2745
        %v2747 = vpop.xlane.xlu0 %2746
        %v2748 = vsel %vm1458, %v2726, -inf
        %2749 = vmax.xlane.f32.xlu0 %v2748
        %v2750 = vpop.xlane.xlu0 %2749
        %v2751 = vsel %vm1458, %v2727, -inf
        %2752 = vmax.xlane.f32.xlu0 %v2751
        %v2753 = vpop.xlane.xlu0 %2752
        %v2754 = vsel %vm1458, %v2728, -inf
        %2755 = vmax.xlane.f32.xlu0 %v2754
        %v2756 = vpop.xlane.xlu0 %2755
        %v2757 = vsel %vm1458, %v2729, -inf
        %2758 = vmax.xlane.f32.xlu0 %v2757
        %v2759 = vpop.xlane.xlu0 %2758
        %v2760 = vsel %vm1458, %v2730, -inf
        %2761 = vmax.xlane.f32.xlu0 %v2760
        %v2762 = vpop.xlane.xlu0 %2761
        %v2763 = vsel %vm1458, %v2731, -inf
        %2764 = vmax.xlane.f32.xlu0 %v2763
        %v2765 = vpop.xlane.xlu0 %2764
        %v2766 = vsel %vm1458, %v2732, -inf
        %2767 = vmax.xlane.f32.xlu0 %v2766
        %v2768 = vpop.xlane.xlu0 %2767
        %v2769 = vsel %vm1458, %v2733, -inf
        %2770 = vmax.xlane.f32.xlu0 %v2769
        %v2771 = vpop.xlane.xlu0 %2770
        %v2772 = vsel %vm1458, %v2734, -inf
        %2773 = vmax.xlane.f32.xlu0 %v2772
        %v2774 = vpop.xlane.xlu0 %2773
        %v2775 = vsel %vm1458, %v2735, -inf
        %2776 = vmax.xlane.f32.xlu0 %v2775
        %v2777 = vpop.xlane.xlu0 %2776
        %v2778 = vsel %vm1458, %v2736, -inf
        %2779 = vmax.xlane.f32.xlu0 %v2778
        %v2780 = vpop.xlane.xlu0 %2779
        %v2781 = vsel %vm1458, %v2737, -inf
        %2782 = vmax.xlane.f32.xlu0 %v2781
        %v2783 = vpop.xlane.xlu0 %2782
        %v2784 = vsel %vm1458, %v2738, -inf
        %2785 = vmax.xlane.f32.xlu0 %v2784
        %v2786 = vpop.xlane.xlu0 %2785
        %v2787 = vsub.f32 %v2723, %v2741
        %v2788 = vsub.f32 %v2724, %v2744
        %v2789 = vsub.f32 %v2725, %v2747
        %v2790 = vsub.f32 %v2726, %v2750
        %v2791 = vsub.f32 %v2727, %v2753
        %v2792 = vsub.f32 %v2728, %v2756
        %v2793 = vsub.f32 %v2729, %v2759
        %v2794 = vsub.f32 %v2730, %v2762
        %v2795 = vsub.f32 %v2731, %v2765
        %v2796 = vsub.f32 %v2732, %v2768
        %v2797 = vsub.f32 %v2733, %v2771
        %v2798 = vsub.f32 %v2734, %v2774
        %v2799 = vsub.f32 %v2735, %v2777
        %v2800 = vsub.f32 %v2736, %v2780
        %v2801 = vsub.f32 %v2737, %v2783
        %v2802 = vsub.f32 %v2738, %v2786
        %v2803 = vmul.f32 %v2787, 1.442695
        %v2804 = vpow.pop %v2803
        %v2805 = vmul.f32 %v2788, 1.442695
        %v2806 = vpow.pop %v2805
        %v2807 = vmul.f32 %v2789, 1.442695
        %v2808 = vpow.pop %v2807
        %v2809 = vmul.f32 %v2790, 1.442695
        %v2810 = vpow.pop %v2809
        %v2811 = vmul.f32 %v2791, 1.442695
        %v2812 = vpow.pop %v2811
        %v2813 = vmul.f32 %v2792, 1.442695
        %v2814 = vpow.pop %v2813
        %v2815 = vmul.f32 %v2793, 1.442695
        %v2816 = vpow.pop %v2815
        %v2817 = vmul.f32 %v2794, 1.442695
        %v2818 = vpow.pop %v2817
        %v2819 = vmul.f32 %v2795, 1.442695
        %v2820 = vpow.pop %v2819
        %v2821 = vmul.f32 %v2796, 1.442695
        %v2822 = vpow.pop %v2821
        %v2823 = vmul.f32 %v2797, 1.442695
        %v2824 = vpow.pop %v2823
        %v2825 = vmul.f32 %v2798, 1.442695
        %v2826 = vpow.pop %v2825
        %v2827 = vmul.f32 %v2799, 1.442695
        %v2828 = vpow.pop %v2827
        %v2829 = vmul.f32 %v2800, 1.442695
        %v2830 = vpow.pop %v2829
        %v2831 = vmul.f32 %v2801, 1.442695
        %v2832 = vpow.pop %v2831
        %v2833 = vmul.f32 %v2802, 1.442695
        %v2834 = vpow.pop %v2833
        %v2835 = vsel %vm1458, %v2804, 0.0
        %2836 = vadd.xlane.f32.xlu0 %v2835
        %v2837 = vpop.xlane.xlu0 %2836
        %v2838 = vsel %vm1458, %v2806, 0.0
        %2839 = vadd.xlane.f32.xlu0 %v2838
        %v2840 = vpop.xlane.xlu0 %2839
        %v2841 = vsel %vm1458, %v2808, 0.0
        %2842 = vadd.xlane.f32.xlu0 %v2841
        %v2843 = vpop.xlane.xlu0 %2842
        %v2844 = vsel %vm1458, %v2810, 0.0
        %2845 = vadd.xlane.f32.xlu0 %v2844
        %v2846 = vpop.xlane.xlu0 %2845
        %v2847 = vsel %vm1458, %v2812, 0.0
        %2848 = vadd.xlane.f32.xlu0 %v2847
        %v2849 = vpop.xlane.xlu0 %2848
        %v2850 = vsel %vm1458, %v2814, 0.0
        %2851 = vadd.xlane.f32.xlu0 %v2850
        %v2852 = vpop.xlane.xlu0 %2851
        %v2853 = vsel %vm1458, %v2816, 0.0
        %2854 = vadd.xlane.f32.xlu0 %v2853
        %v2855 = vpop.xlane.xlu0 %2854
        %v2856 = vsel %vm1458, %v2818, 0.0
        %2857 = vadd.xlane.f32.xlu0 %v2856
        %v2858 = vpop.xlane.xlu0 %2857
        %v2859 = vsel %vm1458, %v2820, 0.0
        %2860 = vadd.xlane.f32.xlu0 %v2859
        %v2861 = vpop.xlane.xlu0 %2860
        %v2862 = vsel %vm1458, %v2822, 0.0
        %2863 = vadd.xlane.f32.xlu0 %v2862
        %v2864 = vpop.xlane.xlu0 %2863
        %v2865 = vsel %vm1458, %v2824, 0.0
        %2866 = vadd.xlane.f32.xlu0 %v2865
        %v2867 = vpop.xlane.xlu0 %2866
        %v2868 = vsel %vm1458, %v2826, 0.0
        %2869 = vadd.xlane.f32.xlu0 %v2868
        %v2870 = vpop.xlane.xlu0 %2869
        %v2871 = vsel %vm1458, %v2828, 0.0
        %2872 = vadd.xlane.f32.xlu0 %v2871
        %v2873 = vpop.xlane.xlu0 %2872
        %v2874 = vsel %vm1458, %v2830, 0.0
        %2875 = vadd.xlane.f32.xlu0 %v2874
        %v2876 = vpop.xlane.xlu0 %2875
        %v2877 = vsel %vm1458, %v2832, 0.0
        %2878 = vadd.xlane.f32.xlu0 %v2877
        %v2879 = vpop.xlane.xlu0 %2878
        %v2880 = vsel %vm1458, %v2834, 0.0
        %2881 = vadd.xlane.f32.xlu0 %v2880
        %v2882 = vpop.xlane.xlu0 %2881
        %v2883 = vrcp.pop %v2837
        %v2884 = vmul.f32 1.0, %v2883
        %v2885 = vrcp.pop %v2840
        %v2886 = vmul.f32 1.0, %v2885
        %v2887 = vrcp.pop %v2843
        %v2888 = vmul.f32 1.0, %v2887
        %v2889 = vrcp.pop %v2846
        %v2890 = vmul.f32 1.0, %v2889
        %v2891 = vrcp.pop %v2849
        %v2892 = vmul.f32 1.0, %v2891
        %v2893 = vrcp.pop %v2852
        %v2894 = vmul.f32 1.0, %v2893
        %v2895 = vrcp.pop %v2855
        %v2896 = vmul.f32 1.0, %v2895
        %v2897 = vrcp.pop %v2858
        %v2898 = vmul.f32 1.0, %v2897
        %v2899 = vrcp.pop %v2861
        %v2900 = vmul.f32 1.0, %v2899
        %v2901 = vrcp.pop %v2864
        %v2902 = vmul.f32 1.0, %v2901
        %v2903 = vrcp.pop %v2867
        %v2904 = vmul.f32 1.0, %v2903
        %v2905 = vrcp.pop %v2870
        %v2906 = vmul.f32 1.0, %v2905
        %v2907 = vrcp.pop %v2873
        %v2908 = vmul.f32 1.0, %v2907
        %v2909 = vrcp.pop %v2876
        %v2910 = vmul.f32 1.0, %v2909
        %v2911 = vrcp.pop %v2879
        %v2912 = vmul.f32 1.0, %v2911
        %v2913 = vrcp.pop %v2882
        %v2914 = vmul.f32 1.0, %v2913
        %2916 = vset.pattern.permute.xlu0 0
        %2917 = vperm.xlu0 %2916, %v2804
        %v2918 = vpop.permute.xlu0 %2917
        %2921 = vset.pattern.permute.xlu0 0
        %2922 = vperm.xlu0 %2921, %v2806
        %v2923 = vpop.permute.xlu0 %2922
        %2926 = vset.pattern.permute.xlu0 0
        %2927 = vperm.xlu0 %2926, %v2808
        %v2928 = vpop.permute.xlu0 %2927
        %2931 = vset.pattern.permute.xlu0 0
        %2932 = vperm.xlu0 %2931, %v2810
        %v2933 = vpop.permute.xlu0 %2932
        %2936 = vset.pattern.permute.xlu0 0
        %2937 = vperm.xlu0 %2936, %v2812
        %v2938 = vpop.permute.xlu0 %2937
        %2941 = vset.pattern.permute.xlu0 0
        %2942 = vperm.xlu0 %2941, %v2814
        %v2943 = vpop.permute.xlu0 %2942
        %2946 = vset.pattern.permute.xlu0 0
        %2947 = vperm.xlu0 %2946, %v2816
        %v2948 = vpop.permute.xlu0 %2947
        %2951 = vset.pattern.permute.xlu0 0
        %2952 = vperm.xlu0 %2951, %v2818
        %v2953 = vpop.permute.xlu0 %2952
        %2956 = vset.pattern.permute.xlu0 0
        %2957 = vperm.xlu0 %2956, %v2820
        %v2958 = vpop.permute.xlu0 %2957
        %2961 = vset.pattern.permute.xlu0 0
        %2962 = vperm.xlu0 %2961, %v2822
        %v2963 = vpop.permute.xlu0 %2962
        %2966 = vset.pattern.permute.xlu0 0
        %2967 = vperm.xlu0 %2966, %v2824
        %v2968 = vpop.permute.xlu0 %2967
        %2971 = vset.pattern.permute.xlu0 0
        %2972 = vperm.xlu0 %2971, %v2826
        %v2973 = vpop.permute.xlu0 %2972
        %2976 = vset.pattern.permute.xlu0 0
        %2977 = vperm.xlu0 %2976, %v2828
        %v2978 = vpop.permute.xlu0 %2977
        %2981 = vset.pattern.permute.xlu0 0
        %2982 = vperm.xlu0 %2981, %v2830
        %v2983 = vpop.permute.xlu0 %2982
        %2986 = vset.pattern.permute.xlu0 0
        %2987 = vperm.xlu0 %2986, %v2832
        %v2988 = vpop.permute.xlu0 %2987
        %2991 = vset.pattern.permute.xlu0 0
        %2992 = vperm.xlu0 %2991, %v2834
        %v2993 = vpop.permute.xlu0 %2992
        %v2995 = vmul.f32 %v2918, %v913
        %v2996 = vmul.f32 %v2923, %v918
        %v2997 = vmul.f32 %v2928, %v923
        %v2998 = vmul.f32 %v2933, %v928
        %v2999 = vmul.f32 %v2938, %v933
        %v3000 = vmul.f32 %v2943, %v938
        %v3001 = vmul.f32 %v2948, %v943
        %v3002 = vmul.f32 %v2953, %v948
        %v3003 = vmul.f32 %v2958, %v953
        %v3004 = vmul.f32 %v2963, %v958
        %v3005 = vmul.f32 %v2968, %v963
        %v3006 = vmul.f32 %v2973, %v968
        %v3007 = vmul.f32 %v2978, %v973
        %v3008 = vmul.f32 %v2983, %v978
        %v3009 = vmul.f32 %v2988, %v983
        %v3010 = vmul.f32 %v2993, %v988
        %3011 = vset.pattern.permute.xlu0 1
        %3012 = vperm.xlu0 %3011, %v2804
        %v3013 = vpop.permute.xlu0 %3012
        %3015 = vset.pattern.permute.xlu0 1
        %3016 = vperm.xlu0 %3015, %v2806
        %v3017 = vpop.permute.xlu0 %3016
        %3019 = vset.pattern.permute.xlu0 1
        %3020 = vperm.xlu0 %3019, %v2808
        %v3021 = vpop.permute.xlu0 %3020
        %3023 = vset.pattern.permute.xlu0 1
        %3024 = vperm.xlu0 %3023, %v2810
        %v3025 = vpop.permute.xlu0 %3024
        %3027 = vset.pattern.permute.xlu0 1
        %3028 = vperm.xlu0 %3027, %v2812
        %v3029 = vpop.permute.xlu0 %3028
        %3031 = vset.pattern.permute.xlu0 1
        %3032 = vperm.xlu0 %3031, %v2814
        %v3033 = vpop.permute.xlu0 %3032
        %3035 = vset.pattern.permute.xlu0 1
        %3036 = vperm.xlu0 %3035, %v2816
        %v3037 = vpop.permute.xlu0 %3036
        %3039 = vset.pattern.permute.xlu0 1
        %3040 = vperm.xlu0 %3039, %v2818
        %v3041 = vpop.permute.xlu0 %3040
        %3043 = vset.pattern.permute.xlu0 1
        %3044 = vperm.xlu0 %3043, %v2820
        %v3045 = vpop.permute.xlu0 %3044
        %3047 = vset.pattern.permute.xlu0 1
        %3048 = vperm.xlu0 %3047, %v2822
        %v3049 = vpop.permute.xlu0 %3048
        %3051 = vset.pattern.permute.xlu0 1
        %3052 = vperm.xlu0 %3051, %v2824
        %v3053 = vpop.permute.xlu0 %3052
        %3055 = vset.pattern.permute.xlu0 1
        %3056 = vperm.xlu0 %3055, %v2826
        %v3057 = vpop.permute.xlu0 %3056
        %3059 = vset.pattern.permute.xlu0 1
        %3060 = vperm.xlu0 %3059, %v2828
        %v3061 = vpop.permute.xlu0 %3060
        %3063 = vset.pattern.permute.xlu0 1
        %3064 = vperm.xlu0 %3063, %v2830
        %v3065 = vpop.permute.xlu0 %3064
        %3067 = vset.pattern.permute.xlu0 1
        %3068 = vperm.xlu0 %3067, %v2832
        %v3069 = vpop.permute.xlu0 %3068
        %3071 = vset.pattern.permute.xlu0 1
        %3072 = vperm.xlu0 %3071, %v2834
        %v3073 = vpop.permute.xlu0 %3072
        %v3075 = vmul.f32 %v3013, %v913
        %v3076 = vmul.f32 %v3017, %v918
        %v3077 = vmul.f32 %v3021, %v923
        %v3078 = vmul.f32 %v3025, %v928
        %v3079 = vmul.f32 %v3029, %v933
        %v3080 = vmul.f32 %v3033, %v938
        %v3081 = vmul.f32 %v3037, %v943
        %v3082 = vmul.f32 %v3041, %v948
        %v3083 = vmul.f32 %v3045, %v953
        %v3084 = vmul.f32 %v3049, %v958
        %v3085 = vmul.f32 %v3053, %v963
        %v3086 = vmul.f32 %v3057, %v968
        %v3087 = vmul.f32 %v3061, %v973
        %v3088 = vmul.f32 %v3065, %v978
        %v3089 = vmul.f32 %v3069, %v983
        %v3090 = vmul.f32 %v3073, %v988
        %3107 = vrot.lane.b32.xlu0 %v3075, 96
        %v3108 = vpop.permute.xlu0 %3107
        %3109 = vrot.lane.b32.xlu0 %v3076, 96
        %v3110 = vpop.permute.xlu0 %3109
        %3111 = vrot.lane.b32.xlu0 %v3077, 96
        %v3112 = vpop.permute.xlu0 %3111
        %3113 = vrot.lane.b32.xlu0 %v3078, 96
        %v3114 = vpop.permute.xlu0 %3113
        %3115 = vrot.lane.b32.xlu0 %v3079, 96
        %v3116 = vpop.permute.xlu0 %3115
        %3117 = vrot.lane.b32.xlu0 %v3080, 96
        %v3118 = vpop.permute.xlu0 %3117
        %3119 = vrot.lane.b32.xlu0 %v3081, 96
        %v3120 = vpop.permute.xlu0 %3119
        %3121 = vrot.lane.b32.xlu0 %v3082, 96
        %v3122 = vpop.permute.xlu0 %3121
        %3123 = vrot.lane.b32.xlu0 %v3083, 96
        %v3124 = vpop.permute.xlu0 %3123
        %3125 = vrot.lane.b32.xlu0 %v3084, 96
        %v3126 = vpop.permute.xlu0 %3125
        %3127 = vrot.lane.b32.xlu0 %v3085, 96
        %v3128 = vpop.permute.xlu0 %3127
        %3129 = vrot.lane.b32.xlu0 %v3086, 96
        %v3130 = vpop.permute.xlu0 %3129
        %3131 = vrot.lane.b32.xlu0 %v3087, 96
        %v3132 = vpop.permute.xlu0 %3131
        %3133 = vrot.lane.b32.xlu0 %v3088, 96
        %v3134 = vpop.permute.xlu0 %3133
        %3135 = vrot.lane.b32.xlu0 %v3089, 96
        %v3136 = vpop.permute.xlu0 %3135
        %3137 = vrot.lane.b32.xlu0 %v3090, 96
        %v3138 = vpop.permute.xlu0 %3137
        %v3155 = vadd.f32 %v2995, %v3108
        %v3156 = vadd.f32 %v2996, %v3110
        %v3157 = vadd.f32 %v2997, %v3112
        %v3158 = vadd.f32 %v2998, %v3114
        %v3159 = vadd.f32 %v2999, %v3116
        %v3160 = vadd.f32 %v3000, %v3118
        %v3161 = vadd.f32 %v3001, %v3120
        %v3162 = vadd.f32 %v3002, %v3122
        %v3163 = vadd.f32 %v3003, %v3124
        %v3164 = vadd.f32 %v3004, %v3126
        %v3165 = vadd.f32 %v3005, %v3128
        %v3166 = vadd.f32 %v3006, %v3130
        %v3167 = vadd.f32 %v3007, %v3132
        %v3168 = vadd.f32 %v3008, %v3134
        %v3169 = vadd.f32 %v3009, %v3136
        %v3170 = vadd.f32 %v3010, %v3138
        %3171 = vset.pattern.permute.xlu0 2
        %3172 = vperm.xlu0 %3171, %v2804
        %v3173 = vpop.permute.xlu0 %3172
        %3175 = vset.pattern.permute.xlu0 2
        %3176 = vperm.xlu0 %3175, %v2806
        %v3177 = vpop.permute.xlu0 %3176
        %3179 = vset.pattern.permute.xlu0 2
        %3180 = vperm.xlu0 %3179, %v2808
        %v3181 = vpop.permute.xlu0 %3180
        %3183 = vset.pattern.permute.xlu0 2
        %3184 = vperm.xlu0 %3183, %v2810
        %v3185 = vpop.permute.xlu0 %3184
        %3187 = vset.pattern.permute.xlu0 2
        %3188 = vperm.xlu0 %3187, %v2812
        %v3189 = vpop.permute.xlu0 %3188
        %3191 = vset.pattern.permute.xlu0 2
        %3192 = vperm.xlu0 %3191, %v2814
        %v3193 = vpop.permute.xlu0 %3192
        %3195 = vset.pattern.permute.xlu0 2
        %3196 = vperm.xlu0 %3195, %v2816
        %v3197 = vpop.permute.xlu0 %3196
        %3199 = vset.pattern.permute.xlu0 2
        %3200 = vperm.xlu0 %3199, %v2818
        %v3201 = vpop.permute.xlu0 %3200
        %3203 = vset.pattern.permute.xlu0 2
        %3204 = vperm.xlu0 %3203, %v2820
        %v3205 = vpop.permute.xlu0 %3204
        %3207 = vset.pattern.permute.xlu0 2
        %3208 = vperm.xlu0 %3207, %v2822
        %v3209 = vpop.permute.xlu0 %3208
        %3211 = vset.pattern.permute.xlu0 2
        %3212 = vperm.xlu0 %3211, %v2824
        %v3213 = vpop.permute.xlu0 %3212
        %3215 = vset.pattern.permute.xlu0 2
        %3216 = vperm.xlu0 %3215, %v2826
        %v3217 = vpop.permute.xlu0 %3216
        %3219 = vset.pattern.permute.xlu0 2
        %3220 = vperm.xlu0 %3219, %v2828
        %v3221 = vpop.permute.xlu0 %3220
        %3223 = vset.pattern.permute.xlu0 2
        %3224 = vperm.xlu0 %3223, %v2830
        %v3225 = vpop.permute.xlu0 %3224
        %3227 = vset.pattern.permute.xlu0 2
        %3228 = vperm.xlu0 %3227, %v2832
        %v3229 = vpop.permute.xlu0 %3228
        %3231 = vset.pattern.permute.xlu0 2
        %3232 = vperm.xlu0 %3231, %v2834
        %v3233 = vpop.permute.xlu0 %3232
        %v3235 = vmul.f32 %v3173, %v913
        %v3236 = vmul.f32 %v3177, %v918
        %v3237 = vmul.f32 %v3181, %v923
        %v3238 = vmul.f32 %v3185, %v928
        %v3239 = vmul.f32 %v3189, %v933
        %v3240 = vmul.f32 %v3193, %v938
        %v3241 = vmul.f32 %v3197, %v943
        %v3242 = vmul.f32 %v3201, %v948
        %v3243 = vmul.f32 %v3205, %v953
        %v3244 = vmul.f32 %v3209, %v958
        %v3245 = vmul.f32 %v3213, %v963
        %v3246 = vmul.f32 %v3217, %v968
        %v3247 = vmul.f32 %v3221, %v973
        %v3248 = vmul.f32 %v3225, %v978
        %v3249 = vmul.f32 %v3229, %v983
        %v3250 = vmul.f32 %v3233, %v988
        %3267 = vrot.lane.b32.xlu0 %v3235, 64
        %v3268 = vpop.permute.xlu0 %3267
        %3269 = vrot.lane.b32.xlu0 %v3236, 64
        %v3270 = vpop.permute.xlu0 %3269
        %3271 = vrot.lane.b32.xlu0 %v3237, 64
        %v3272 = vpop.permute.xlu0 %3271
        %3273 = vrot.lane.b32.xlu0 %v3238, 64
        %v3274 = vpop.permute.xlu0 %3273
        %3275 = vrot.lane.b32.xlu0 %v3239, 64
        %v3276 = vpop.permute.xlu0 %3275
        %3277 = vrot.lane.b32.xlu0 %v3240, 64
        %v3278 = vpop.permute.xlu0 %3277
        %3279 = vrot.lane.b32.xlu0 %v3241, 64
        %v3280 = vpop.permute.xlu0 %3279
        %3281 = vrot.lane.b32.xlu0 %v3242, 64
        %v3282 = vpop.permute.xlu0 %3281
        %3283 = vrot.lane.b32.xlu0 %v3243, 64
        %v3284 = vpop.permute.xlu0 %3283
        %3285 = vrot.lane.b32.xlu0 %v3244, 64
        %v3286 = vpop.permute.xlu0 %3285
        %3287 = vrot.lane.b32.xlu0 %v3245, 64
        %v3288 = vpop.permute.xlu0 %3287
        %3289 = vrot.lane.b32.xlu0 %v3246, 64
        %v3290 = vpop.permute.xlu0 %3289
        %3291 = vrot.lane.b32.xlu0 %v3247, 64
        %v3292 = vpop.permute.xlu0 %3291
        %3293 = vrot.lane.b32.xlu0 %v3248, 64
        %v3294 = vpop.permute.xlu0 %3293
        %3295 = vrot.lane.b32.xlu0 %v3249, 64
        %v3296 = vpop.permute.xlu0 %3295
        %3297 = vrot.lane.b32.xlu0 %v3250, 64
        %v3298 = vpop.permute.xlu0 %3297
        %v3315 = vadd.f32 %v3155, %v3268
        %v3316 = vadd.f32 %v3156, %v3270
        %v3317 = vadd.f32 %v3157, %v3272
        %v3318 = vadd.f32 %v3158, %v3274
        %v3319 = vadd.f32 %v3159, %v3276
        %v3320 = vadd.f32 %v3160, %v3278
        %v3321 = vadd.f32 %v3161, %v3280
        %v3322 = vadd.f32 %v3162, %v3282
        %v3323 = vadd.f32 %v3163, %v3284
        %v3324 = vadd.f32 %v3164, %v3286
        %v3325 = vadd.f32 %v3165, %v3288
        %v3326 = vadd.f32 %v3166, %v3290
        %v3327 = vadd.f32 %v3167, %v3292
        %v3328 = vadd.f32 %v3168, %v3294
        %v3329 = vadd.f32 %v3169, %v3296
        %v3330 = vadd.f32 %v3170, %v3298
        %3331 = vset.pattern.permute.xlu0 3
        %3332 = vperm.xlu0 %3331, %v2804
        %v3333 = vpop.permute.xlu0 %3332
        %3335 = vset.pattern.permute.xlu0 3
        %3336 = vperm.xlu0 %3335, %v2806
        %v3337 = vpop.permute.xlu0 %3336
        %3339 = vset.pattern.permute.xlu0 3
        %3340 = vperm.xlu0 %3339, %v2808
        %v3341 = vpop.permute.xlu0 %3340
        %3343 = vset.pattern.permute.xlu0 3
        %3344 = vperm.xlu0 %3343, %v2810
        %v3345 = vpop.permute.xlu0 %3344
        %3347 = vset.pattern.permute.xlu0 3
        %3348 = vperm.xlu0 %3347, %v2812
        %v3349 = vpop.permute.xlu0 %3348
        %3351 = vset.pattern.permute.xlu0 3
        %3352 = vperm.xlu0 %3351, %v2814
        %v3353 = vpop.permute.xlu0 %3352
        %3355 = vset.pattern.permute.xlu0 3
        %3356 = vperm.xlu0 %3355, %v2816
        %v3357 = vpop.permute.xlu0 %3356
        %3359 = vset.pattern.permute.xlu0 3
        %3360 = vperm.xlu0 %3359, %v2818
        %v3361 = vpop.permute.xlu0 %3360
        %3363 = vset.pattern.permute.xlu0 3
        %3364 = vperm.xlu0 %3363, %v2820
        %v3365 = vpop.permute.xlu0 %3364
        %3367 = vset.pattern.permute.xlu0 3
        %3368 = vperm.xlu0 %3367, %v2822
        %v3369 = vpop.permute.xlu0 %3368
        %3371 = vset.pattern.permute.xlu0 3
        %3372 = vperm.xlu0 %3371, %v2824
        %v3373 = vpop.permute.xlu0 %3372
        %3375 = vset.pattern.permute.xlu0 3
        %3376 = vperm.xlu0 %3375, %v2826
        %v3377 = vpop.permute.xlu0 %3376
        %3379 = vset.pattern.permute.xlu0 3
        %3380 = vperm.xlu0 %3379, %v2828
        %v3381 = vpop.permute.xlu0 %3380
        %3383 = vset.pattern.permute.xlu0 3
        %3384 = vperm.xlu0 %3383, %v2830
        %v3385 = vpop.permute.xlu0 %3384
        %3387 = vset.pattern.permute.xlu0 3
        %3388 = vperm.xlu0 %3387, %v2832
        %v3389 = vpop.permute.xlu0 %3388
        %3391 = vset.pattern.permute.xlu0 3
        %3392 = vperm.xlu0 %3391, %v2834
        %v3393 = vpop.permute.xlu0 %3392
        %v3395 = vmul.f32 %v3333, %v913
        %v3396 = vmul.f32 %v3337, %v918
        %v3397 = vmul.f32 %v3341, %v923
        %v3398 = vmul.f32 %v3345, %v928
        %v3399 = vmul.f32 %v3349, %v933
        %v3400 = vmul.f32 %v3353, %v938
        %v3401 = vmul.f32 %v3357, %v943
        %v3402 = vmul.f32 %v3361, %v948
        %v3403 = vmul.f32 %v3365, %v953
        %v3404 = vmul.f32 %v3369, %v958
        %v3405 = vmul.f32 %v3373, %v963
        %v3406 = vmul.f32 %v3377, %v968
        %v3407 = vmul.f32 %v3381, %v973
        %v3408 = vmul.f32 %v3385, %v978
        %v3409 = vmul.f32 %v3389, %v983
        %v3410 = vmul.f32 %v3393, %v988
        %3427 = vrot.lane.b32.xlu0 %v3395, 32
        %v3428 = vpop.permute.xlu0 %3427
        %3429 = vrot.lane.b32.xlu0 %v3396, 32
        %v3430 = vpop.permute.xlu0 %3429
        %3431 = vrot.lane.b32.xlu0 %v3397, 32
        %v3432 = vpop.permute.xlu0 %3431
        %3433 = vrot.lane.b32.xlu0 %v3398, 32
        %v3434 = vpop.permute.xlu0 %3433
        %3435 = vrot.lane.b32.xlu0 %v3399, 32
        %v3436 = vpop.permute.xlu0 %3435
        %3437 = vrot.lane.b32.xlu0 %v3400, 32
        %v3438 = vpop.permute.xlu0 %3437
        %3439 = vrot.lane.b32.xlu0 %v3401, 32
        %v3440 = vpop.permute.xlu0 %3439
        %3441 = vrot.lane.b32.xlu0 %v3402, 32
        %v3442 = vpop.permute.xlu0 %3441
        %3443 = vrot.lane.b32.xlu0 %v3403, 32
        %v3444 = vpop.permute.xlu0 %3443
        %3445 = vrot.lane.b32.xlu0 %v3404, 32
        %v3446 = vpop.permute.xlu0 %3445
        %3447 = vrot.lane.b32.xlu0 %v3405, 32
        %v3448 = vpop.permute.xlu0 %3447
        %3449 = vrot.lane.b32.xlu0 %v3406, 32
        %v3450 = vpop.permute.xlu0 %3449
        %3451 = vrot.lane.b32.xlu0 %v3407, 32
        %v3452 = vpop.permute.xlu0 %3451
        %3453 = vrot.lane.b32.xlu0 %v3408, 32
        %v3454 = vpop.permute.xlu0 %3453
        %3455 = vrot.lane.b32.xlu0 %v3409, 32
        %v3456 = vpop.permute.xlu0 %3455
        %3457 = vrot.lane.b32.xlu0 %v3410, 32
        %v3458 = vpop.permute.xlu0 %3457
        %v3475 = vadd.f32 %v3315, %v3428
        %v3476 = vadd.f32 %v3316, %v3430
        %v3477 = vadd.f32 %v3317, %v3432
        %v3478 = vadd.f32 %v3318, %v3434
        %v3479 = vadd.f32 %v3319, %v3436
        %v3480 = vadd.f32 %v3320, %v3438
        %v3481 = vadd.f32 %v3321, %v3440
        %v3482 = vadd.f32 %v3322, %v3442
        %v3483 = vadd.f32 %v3323, %v3444
        %v3484 = vadd.f32 %v3324, %v3446
        %v3485 = vadd.f32 %v3325, %v3448
        %v3486 = vadd.f32 %v3326, %v3450
        %v3487 = vadd.f32 %v3327, %v3452
        %v3488 = vadd.f32 %v3328, %v3454
        %v3489 = vadd.f32 %v3329, %v3456
        %v3490 = vadd.f32 %v3330, %v3458
        %v3491 = vmul.f32 %v3475, %v2884
        %v3492 = vmul.f32 %v3476, %v2886
        %v3493 = vmul.f32 %v3477, %v2888
        %v3494 = vmul.f32 %v3478, %v2890
        %v3495 = vmul.f32 %v3479, %v2892
        %v3496 = vmul.f32 %v3480, %v2894
        %v3497 = vmul.f32 %v3481, %v2896
        %v3498 = vmul.f32 %v3482, %v2898
        %v3499 = vmul.f32 %v3483, %v2900
        %v3500 = vmul.f32 %v3484, %v2902
        %v3501 = vmul.f32 %v3485, %v2904
        %v3502 = vmul.f32 %v3486, %v2906
        %v3503 = vmul.f32 %v3487, %v2908
        %v3504 = vmul.f32 %v3488, %v2910
        %v3505 = vmul.f32 %v3489, %v2912
        %v3506 = vmul.f32 %v3490, %v2914
        %3523 = vrot.lane.b32.xlu0 %v3491, 32
        %v3524 = vpop.permute.xlu0 %3523
        %3525 = vrot.lane.b32.xlu0 %v3492, 32
        %v3526 = vpop.permute.xlu0 %3525
        %3527 = vrot.lane.b32.xlu0 %v3493, 32
        %v3528 = vpop.permute.xlu0 %3527
        %3529 = vrot.lane.b32.xlu0 %v3494, 32
        %v3530 = vpop.permute.xlu0 %3529
        %3531 = vrot.lane.b32.xlu0 %v3495, 32
        %v3532 = vpop.permute.xlu0 %3531
        %3533 = vrot.lane.b32.xlu0 %v3496, 32
        %v3534 = vpop.permute.xlu0 %3533
        %3535 = vrot.lane.b32.xlu0 %v3497, 32
        %v3536 = vpop.permute.xlu0 %3535
        %3537 = vrot.lane.b32.xlu0 %v3498, 32
        %v3538 = vpop.permute.xlu0 %3537
        %3539 = vrot.lane.b32.xlu0 %v3499, 32
        %v3540 = vpop.permute.xlu0 %3539
        %3541 = vrot.lane.b32.xlu0 %v3500, 32
        %v3542 = vpop.permute.xlu0 %3541
        %3543 = vrot.lane.b32.xlu0 %v3501, 32
        %v3544 = vpop.permute.xlu0 %3543
        %3545 = vrot.lane.b32.xlu0 %v3502, 32
        %v3546 = vpop.permute.xlu0 %3545
        %3547 = vrot.lane.b32.xlu0 %v3503, 32
        %v3548 = vpop.permute.xlu0 %3547
        %3549 = vrot.lane.b32.xlu0 %v3504, 32
        %v3550 = vpop.permute.xlu0 %3549
        %3551 = vrot.lane.b32.xlu0 %v3505, 32
        %v3552 = vpop.permute.xlu0 %3551
        %3553 = vrot.lane.b32.xlu0 %v3506, 32
        %v3554 = vpop.permute.xlu0 %3553
        %vm3571 = vcmask 523520
        %3572 = vst.msk [vmem:[#allocation2] sm:$0xff] %vm3571, %v3524
        %3573 = vst.msk [vmem:[#allocation2 + $0x8] sm:$0xff] %vm3571, %v3526
        %3574 = vst.msk [vmem:[#allocation2 + $0x10] sm:$0xff] %vm3571, %v3528
        %3575 = vst.msk [vmem:[#allocation2 + $0x18] sm:$0xff] %vm3571, %v3530
        %3576 = vst.msk [vmem:[#allocation2 + $0x20] sm:$0xff] %vm3571, %v3532
        %3577 = vst.msk [vmem:[#allocation2 + $0x28] sm:$0xff] %vm3571, %v3534
        %3578 = vst.msk [vmem:[#allocation2 + $0x30] sm:$0xff] %vm3571, %v3536
        %3579 = vst.msk [vmem:[#allocation2 + $0x38] sm:$0xff] %vm3571, %v3538
        %3580 = vst.msk [vmem:[#allocation2 + $0x40] sm:$0xff] %vm3571, %v3540
        %3581 = vst.msk [vmem:[#allocation2 + $0x48] sm:$0xff] %vm3571, %v3542
        %3582 = vst.msk [vmem:[#allocation2 + $0x50] sm:$0xff] %vm3571, %v3544
        %3583 = vst.msk [vmem:[#allocation2 + $0x58] sm:$0xff] %vm3571, %v3546
        %3584 = vst.msk [vmem:[#allocation2 + $0x60] sm:$0xff] %vm3571, %v3548
        %3585 = vst.msk [vmem:[#allocation2 + $0x68] sm:$0xff] %vm3571, %v3550
        %3586 = vst.msk [vmem:[#allocation2 + $0x70] sm:$0xff] %vm3571, %v3552
        %3587 = vst.msk [vmem:[#allocation2 + $0x78] sm:$0xff] %vm3571, %v3554
        %3588 = vrot.lane.b32.xlu0 %v1231, 64
        %v3589 = vpop.permute.xlu0 %3588
        %3590 = vrot.lane.b32.xlu0 %v1232, 64
        %v3591 = vpop.permute.xlu0 %3590
        %3592 = vrot.lane.b32.xlu0 %v1233, 64
        %v3593 = vpop.permute.xlu0 %3592
        %3594 = vrot.lane.b32.xlu0 %v1234, 64
        %v3595 = vpop.permute.xlu0 %3594
        %3596 = vrot.lane.b32.xlu0 %v1235, 64
        %v3597 = vpop.permute.xlu0 %3596
        %3598 = vrot.lane.b32.xlu0 %v1236, 64
        %v3599 = vpop.permute.xlu0 %3598
        %3600 = vrot.lane.b32.xlu0 %v1237, 64
        %v3601 = vpop.permute.xlu0 %3600
        %3602 = vrot.lane.b32.xlu0 %v1238, 64
        %v3603 = vpop.permute.xlu0 %3602
        %3604 = vrot.lane.b32.xlu0 %v1239, 64
        %v3605 = vpop.permute.xlu0 %3604
        %3606 = vrot.lane.b32.xlu0 %v1240, 64
        %v3607 = vpop.permute.xlu0 %3606
        %3608 = vrot.lane.b32.xlu0 %v1241, 64
        %v3609 = vpop.permute.xlu0 %3608
        %3610 = vrot.lane.b32.xlu0 %v1242, 64
        %v3611 = vpop.permute.xlu0 %3610
        %3612 = vrot.lane.b32.xlu0 %v1243, 64
        %v3613 = vpop.permute.xlu0 %3612
        %3614 = vrot.lane.b32.xlu0 %v1244, 64
        %v3615 = vpop.permute.xlu0 %3614
        %3616 = vrot.lane.b32.xlu0 %v1245, 64
        %v3617 = vpop.permute.xlu0 %3616
        %3618 = vrot.lane.b32.xlu0 %v1246, 64
        %v3619 = vpop.permute.xlu0 %3618
        %v3636 = vsel %vm371, %v3589, 0.0
        %3637 = vadd.xlane.f32.xlu0 %v3636
        %v3638 = vpop.xlane.xlu0 %3637
        %v3639 = vsel %vm371, %v3591, 0.0
        %3640 = vadd.xlane.f32.xlu0 %v3639
        %v3641 = vpop.xlane.xlu0 %3640
        %v3642 = vsel %vm371, %v3593, 0.0
        %3643 = vadd.xlane.f32.xlu0 %v3642
        %v3644 = vpop.xlane.xlu0 %3643
        %v3645 = vsel %vm371, %v3595, 0.0
        %3646 = vadd.xlane.f32.xlu0 %v3645
        %v3647 = vpop.xlane.xlu0 %3646
        %v3648 = vsel %vm371, %v3597, 0.0
        %3649 = vadd.xlane.f32.xlu0 %v3648
        %v3650 = vpop.xlane.xlu0 %3649
        %v3651 = vsel %vm371, %v3599, 0.0
        %3652 = vadd.xlane.f32.xlu0 %v3651
        %v3653 = vpop.xlane.xlu0 %3652
        %v3654 = vsel %vm371, %v3601, 0.0
        %3655 = vadd.xlane.f32.xlu0 %v3654
        %v3656 = vpop.xlane.xlu0 %3655
        %v3657 = vsel %vm371, %v3603, 0.0
        %3658 = vadd.xlane.f32.xlu0 %v3657
        %v3659 = vpop.xlane.xlu0 %3658
        %v3660 = vsel %vm371, %v3605, 0.0
        %3661 = vadd.xlane.f32.xlu0 %v3660
        %v3662 = vpop.xlane.xlu0 %3661
        %v3663 = vsel %vm371, %v3607, 0.0
        %3664 = vadd.xlane.f32.xlu0 %v3663
        %v3665 = vpop.xlane.xlu0 %3664
        %v3666 = vsel %vm371, %v3609, 0.0
        %3667 = vadd.xlane.f32.xlu0 %v3666
        %v3668 = vpop.xlane.xlu0 %3667
        %v3669 = vsel %vm371, %v3611, 0.0
        %3670 = vadd.xlane.f32.xlu0 %v3669
        %v3671 = vpop.xlane.xlu0 %3670
        %v3672 = vsel %vm371, %v3613, 0.0
        %3673 = vadd.xlane.f32.xlu0 %v3672
        %v3674 = vpop.xlane.xlu0 %3673
        %v3675 = vsel %vm371, %v3615, 0.0
        %3676 = vadd.xlane.f32.xlu0 %v3675
        %v3677 = vpop.xlane.xlu0 %3676
        %v3678 = vsel %vm371, %v3617, 0.0
        %3679 = vadd.xlane.f32.xlu0 %v3678
        %v3680 = vpop.xlane.xlu0 %3679
        %v3681 = vsel %vm371, %v3619, 0.0
        %3682 = vadd.xlane.f32.xlu0 %v3681
        %v3683 = vpop.xlane.xlu0 %3682
        %3684 = vrot.lane.b32.xlu0 %v1343, 64
        %v3685 = vpop.permute.xlu0 %3684
        %3686 = vrot.lane.b32.xlu0 %v1344, 64
        %v3687 = vpop.permute.xlu0 %3686
        %3688 = vrot.lane.b32.xlu0 %v1345, 64
        %v3689 = vpop.permute.xlu0 %3688
        %3690 = vrot.lane.b32.xlu0 %v1346, 64
        %v3691 = vpop.permute.xlu0 %3690
        %3692 = vrot.lane.b32.xlu0 %v1347, 64
        %v3693 = vpop.permute.xlu0 %3692
        %3694 = vrot.lane.b32.xlu0 %v1348, 64
        %v3695 = vpop.permute.xlu0 %3694
        %3696 = vrot.lane.b32.xlu0 %v1349, 64
        %v3697 = vpop.permute.xlu0 %3696
        %3698 = vrot.lane.b32.xlu0 %v1350, 64
        %v3699 = vpop.permute.xlu0 %3698
        %3700 = vrot.lane.b32.xlu0 %v1351, 64
        %v3701 = vpop.permute.xlu0 %3700
        %3702 = vrot.lane.b32.xlu0 %v1352, 64
        %v3703 = vpop.permute.xlu0 %3702
        %3704 = vrot.lane.b32.xlu0 %v1353, 64
        %v3705 = vpop.permute.xlu0 %3704
        %3706 = vrot.lane.b32.xlu0 %v1354, 64
        %v3707 = vpop.permute.xlu0 %3706
        %3708 = vrot.lane.b32.xlu0 %v1355, 64
        %v3709 = vpop.permute.xlu0 %3708
        %3710 = vrot.lane.b32.xlu0 %v1356, 64
        %v3711 = vpop.permute.xlu0 %3710
        %3712 = vrot.lane.b32.xlu0 %v1357, 64
        %v3713 = vpop.permute.xlu0 %3712
        %3714 = vrot.lane.b32.xlu0 %v1358, 64
        %v3715 = vpop.permute.xlu0 %3714
        %v3732 = vsel %vm371, %v3685, 0.0
        %3733 = vadd.xlane.f32.xlu0 %v3732
        %v3734 = vpop.xlane.xlu0 %3733
        %v3735 = vsel %vm371, %v3687, 0.0
        %3736 = vadd.xlane.f32.xlu0 %v3735
        %v3737 = vpop.xlane.xlu0 %3736
        %v3738 = vsel %vm371, %v3689, 0.0
        %3739 = vadd.xlane.f32.xlu0 %v3738
        %v3740 = vpop.xlane.xlu0 %3739
        %v3741 = vsel %vm371, %v3691, 0.0
        %3742 = vadd.xlane.f32.xlu0 %v3741
        %v3743 = vpop.xlane.xlu0 %3742
        %v3744 = vsel %vm371, %v3693, 0.0
        %3745 = vadd.xlane.f32.xlu0 %v3744
        %v3746 = vpop.xlane.xlu0 %3745
        %v3747 = vsel %vm371, %v3695, 0.0
        %3748 = vadd.xlane.f32.xlu0 %v3747
        %v3749 = vpop.xlane.xlu0 %3748
        %v3750 = vsel %vm371, %v3697, 0.0
        %3751 = vadd.xlane.f32.xlu0 %v3750
        %v3752 = vpop.xlane.xlu0 %3751
        %v3753 = vsel %vm371, %v3699, 0.0
        %3754 = vadd.xlane.f32.xlu0 %v3753
        %v3755 = vpop.xlane.xlu0 %3754
        %v3756 = vsel %vm371, %v3701, 0.0
        %3757 = vadd.xlane.f32.xlu0 %v3756
        %v3758 = vpop.xlane.xlu0 %3757
        %v3759 = vsel %vm371, %v3703, 0.0
        %3760 = vadd.xlane.f32.xlu0 %v3759
        %v3761 = vpop.xlane.xlu0 %3760
        %v3762 = vsel %vm371, %v3705, 0.0
        %3763 = vadd.xlane.f32.xlu0 %v3762
        %v3764 = vpop.xlane.xlu0 %3763
        %v3765 = vsel %vm371, %v3707, 0.0
        %3766 = vadd.xlane.f32.xlu0 %v3765
        %v3767 = vpop.xlane.xlu0 %3766
        %v3768 = vsel %vm371, %v3709, 0.0
        %3769 = vadd.xlane.f32.xlu0 %v3768
        %v3770 = vpop.xlane.xlu0 %3769
        %v3771 = vsel %vm371, %v3711, 0.0
        %3772 = vadd.xlane.f32.xlu0 %v3771
        %v3773 = vpop.xlane.xlu0 %3772
        %v3774 = vsel %vm371, %v3713, 0.0
        %3775 = vadd.xlane.f32.xlu0 %v3774
        %v3776 = vpop.xlane.xlu0 %3775
        %v3777 = vsel %vm371, %v3715, 0.0
        %3778 = vadd.xlane.f32.xlu0 %v3777
        %v3779 = vpop.xlane.xlu0 %3778
        %3780 = vrot.lane.b32.xlu0 %v991, 64
        %v3781 = vpop.permute.xlu0 %3780
        %3782 = vrot.lane.b32.xlu0 %v992, 64
        %v3783 = vpop.permute.xlu0 %3782
        %3784 = vrot.lane.b32.xlu0 %v993, 64
        %v3785 = vpop.permute.xlu0 %3784
        %3786 = vrot.lane.b32.xlu0 %v994, 64
        %v3787 = vpop.permute.xlu0 %3786
        %3788 = vrot.lane.b32.xlu0 %v995, 64
        %v3789 = vpop.permute.xlu0 %3788
        %3790 = vrot.lane.b32.xlu0 %v996, 64
        %v3791 = vpop.permute.xlu0 %3790
        %3792 = vrot.lane.b32.xlu0 %v997, 64
        %v3793 = vpop.permute.xlu0 %3792
        %3794 = vrot.lane.b32.xlu0 %v998, 64
        %v3795 = vpop.permute.xlu0 %3794
        %3796 = vrot.lane.b32.xlu0 %v999, 64
        %v3797 = vpop.permute.xlu0 %3796
        %3798 = vrot.lane.b32.xlu0 %v1000, 64
        %v3799 = vpop.permute.xlu0 %3798
        %3800 = vrot.lane.b32.xlu0 %v1001, 64
        %v3801 = vpop.permute.xlu0 %3800
        %3802 = vrot.lane.b32.xlu0 %v1002, 64
        %v3803 = vpop.permute.xlu0 %3802
        %3804 = vrot.lane.b32.xlu0 %v1003, 64
        %v3805 = vpop.permute.xlu0 %3804
        %3806 = vrot.lane.b32.xlu0 %v1004, 64
        %v3807 = vpop.permute.xlu0 %3806
        %3808 = vrot.lane.b32.xlu0 %v1005, 64
        %v3809 = vpop.permute.xlu0 %3808
        %3810 = vrot.lane.b32.xlu0 %v1006, 64
        %v3811 = vpop.permute.xlu0 %3810
        %v3828 = vsel %vm371, %v3781, 0.0
        %3829 = vadd.xlane.f32.xlu0 %v3828
        %v3830 = vpop.xlane.xlu0 %3829
        %v3831 = vsel %vm371, %v3783, 0.0
        %3832 = vadd.xlane.f32.xlu0 %v3831
        %v3833 = vpop.xlane.xlu0 %3832
        %v3834 = vsel %vm371, %v3785, 0.0
        %3835 = vadd.xlane.f32.xlu0 %v3834
        %v3836 = vpop.xlane.xlu0 %3835
        %v3837 = vsel %vm371, %v3787, 0.0
        %3838 = vadd.xlane.f32.xlu0 %v3837
        %v3839 = vpop.xlane.xlu0 %3838
        %v3840 = vsel %vm371, %v3789, 0.0
        %3841 = vadd.xlane.f32.xlu0 %v3840
        %v3842 = vpop.xlane.xlu0 %3841
        %v3843 = vsel %vm371, %v3791, 0.0
        %3844 = vadd.xlane.f32.xlu0 %v3843
        %v3845 = vpop.xlane.xlu0 %3844
        %v3846 = vsel %vm371, %v3793, 0.0
        %3847 = vadd.xlane.f32.xlu0 %v3846
        %v3848 = vpop.xlane.xlu0 %3847
        %v3849 = vsel %vm371, %v3795, 0.0
        %3850 = vadd.xlane.f32.xlu0 %v3849
        %v3851 = vpop.xlane.xlu0 %3850
        %v3852 = vsel %vm371, %v3797, 0.0
        %3853 = vadd.xlane.f32.xlu0 %v3852
        %v3854 = vpop.xlane.xlu0 %3853
        %v3855 = vsel %vm371, %v3799, 0.0
        %3856 = vadd.xlane.f32.xlu0 %v3855
        %v3857 = vpop.xlane.xlu0 %3856
        %v3858 = vsel %vm371, %v3801, 0.0
        %3859 = vadd.xlane.f32.xlu0 %v3858
        %v3860 = vpop.xlane.xlu0 %3859
        %v3861 = vsel %vm371, %v3803, 0.0
        %3862 = vadd.xlane.f32.xlu0 %v3861
        %v3863 = vpop.xlane.xlu0 %3862
        %v3864 = vsel %vm371, %v3805, 0.0
        %3865 = vadd.xlane.f32.xlu0 %v3864
        %v3866 = vpop.xlane.xlu0 %3865
        %v3867 = vsel %vm371, %v3807, 0.0
        %3868 = vadd.xlane.f32.xlu0 %v3867
        %v3869 = vpop.xlane.xlu0 %3868
        %v3870 = vsel %vm371, %v3809, 0.0
        %3871 = vadd.xlane.f32.xlu0 %v3870
        %v3872 = vpop.xlane.xlu0 %3871
        %v3873 = vsel %vm371, %v3811, 0.0
        %3874 = vadd.xlane.f32.xlu0 %v3873
        %v3875 = vpop.xlane.xlu0 %3874
        %3876 = vrot.lane.b32.xlu0 %v1119, 64
        %v3877 = vpop.permute.xlu0 %3876
        %3878 = vrot.lane.b32.xlu0 %v1120, 64
        %v3879 = vpop.permute.xlu0 %3878
        %3880 = vrot.lane.b32.xlu0 %v1121, 64
        %v3881 = vpop.permute.xlu0 %3880
        %3882 = vrot.lane.b32.xlu0 %v1122, 64
        %v3883 = vpop.permute.xlu0 %3882
        %3884 = vrot.lane.b32.xlu0 %v1123, 64
        %v3885 = vpop.permute.xlu0 %3884
        %3886 = vrot.lane.b32.xlu0 %v1124, 64
        %v3887 = vpop.permute.xlu0 %3886
        %3888 = vrot.lane.b32.xlu0 %v1125, 64
        %v3889 = vpop.permute.xlu0 %3888
        %3890 = vrot.lane.b32.xlu0 %v1126, 64
        %v3891 = vpop.permute.xlu0 %3890
        %3892 = vrot.lane.b32.xlu0 %v1127, 64
        %v3893 = vpop.permute.xlu0 %3892
        %3894 = vrot.lane.b32.xlu0 %v1128, 64
        %v3895 = vpop.permute.xlu0 %3894
        %3896 = vrot.lane.b32.xlu0 %v1129, 64
        %v3897 = vpop.permute.xlu0 %3896
        %3898 = vrot.lane.b32.xlu0 %v1130, 64
        %v3899 = vpop.permute.xlu0 %3898
        %3900 = vrot.lane.b32.xlu0 %v1131, 64
        %v3901 = vpop.permute.xlu0 %3900
        %3902 = vrot.lane.b32.xlu0 %v1132, 64
        %v3903 = vpop.permute.xlu0 %3902
        %3904 = vrot.lane.b32.xlu0 %v1133, 64
        %v3905 = vpop.permute.xlu0 %3904
        %3906 = vrot.lane.b32.xlu0 %v1134, 64
        %v3907 = vpop.permute.xlu0 %3906
        %v3924 = vsel %vm371, %v3877, 0.0
        %3925 = vadd.xlane.f32.xlu0 %v3924
        %v3926 = vpop.xlane.xlu0 %3925
        %v3927 = vsel %vm371, %v3879, 0.0
        %3928 = vadd.xlane.f32.xlu0 %v3927
        %v3929 = vpop.xlane.xlu0 %3928
        %v3930 = vsel %vm371, %v3881, 0.0
        %3931 = vadd.xlane.f32.xlu0 %v3930
        %v3932 = vpop.xlane.xlu0 %3931
        %v3933 = vsel %vm371, %v3883, 0.0
        %3934 = vadd.xlane.f32.xlu0 %v3933
        %v3935 = vpop.xlane.xlu0 %3934
        %v3936 = vsel %vm371, %v3885, 0.0
        %3937 = vadd.xlane.f32.xlu0 %v3936
        %v3938 = vpop.xlane.xlu0 %3937
        %v3939 = vsel %vm371, %v3887, 0.0
        %3940 = vadd.xlane.f32.xlu0 %v3939
        %v3941 = vpop.xlane.xlu0 %3940
        %v3942 = vsel %vm371, %v3889, 0.0
        %3943 = vadd.xlane.f32.xlu0 %v3942
        %v3944 = vpop.xlane.xlu0 %3943
        %v3945 = vsel %vm371, %v3891, 0.0
        %3946 = vadd.xlane.f32.xlu0 %v3945
        %v3947 = vpop.xlane.xlu0 %3946
        %v3948 = vsel %vm371, %v3893, 0.0
        %3949 = vadd.xlane.f32.xlu0 %v3948
        %v3950 = vpop.xlane.xlu0 %3949
        %v3951 = vsel %vm371, %v3895, 0.0
        %3952 = vadd.xlane.f32.xlu0 %v3951
        %v3953 = vpop.xlane.xlu0 %3952
        %v3954 = vsel %vm371, %v3897, 0.0
        %3955 = vadd.xlane.f32.xlu0 %v3954
        %v3956 = vpop.xlane.xlu0 %3955
        %v3957 = vsel %vm371, %v3899, 0.0
        %3958 = vadd.xlane.f32.xlu0 %v3957
        %v3959 = vpop.xlane.xlu0 %3958
        %v3960 = vsel %vm371, %v3901, 0.0
        %3961 = vadd.xlane.f32.xlu0 %v3960
        %v3962 = vpop.xlane.xlu0 %3961
        %v3963 = vsel %vm371, %v3903, 0.0
        %3964 = vadd.xlane.f32.xlu0 %v3963
        %v3965 = vpop.xlane.xlu0 %3964
        %v3966 = vsel %vm371, %v3905, 0.0
        %3967 = vadd.xlane.f32.xlu0 %v3966
        %v3968 = vpop.xlane.xlu0 %3967
        %v3969 = vsel %vm371, %v3907, 0.0
        %3970 = vadd.xlane.f32.xlu0 %v3969
        %v3971 = vpop.xlane.xlu0 %3970
        %v3972 = vsel %vm1407, %v3638, %v3734
        %v3973 = vsel %vm1407, %v3641, %v3737
        %v3974 = vsel %vm1407, %v3644, %v3740
        %v3975 = vsel %vm1407, %v3647, %v3743
        %v3976 = vsel %vm1407, %v3650, %v3746
        %v3977 = vsel %vm1407, %v3653, %v3749
        %v3978 = vsel %vm1407, %v3656, %v3752
        %v3979 = vsel %vm1407, %v3659, %v3755
        %v3980 = vsel %vm1407, %v3662, %v3758
        %v3981 = vsel %vm1407, %v3665, %v3761
        %v3982 = vsel %vm1407, %v3668, %v3764
        %v3983 = vsel %vm1407, %v3671, %v3767
        %v3984 = vsel %vm1407, %v3674, %v3770
        %v3985 = vsel %vm1407, %v3677, %v3773
        %v3986 = vsel %vm1407, %v3680, %v3776
        %v3987 = vsel %vm1407, %v3683, %v3779
        %v3988 = vsel %vm1424, %v3972, %v3830
        %v3989 = vsel %vm1424, %v3973, %v3833
        %v3990 = vsel %vm1424, %v3974, %v3836
        %v3991 = vsel %vm1424, %v3975, %v3839
        %v3992 = vsel %vm1424, %v3976, %v3842
        %v3993 = vsel %vm1424, %v3977, %v3845
        %v3994 = vsel %vm1424, %v3978, %v3848
        %v3995 = vsel %vm1424, %v3979, %v3851
        %v3996 = vsel %vm1424, %v3980, %v3854
        %v3997 = vsel %vm1424, %v3981, %v3857
        %v3998 = vsel %vm1424, %v3982, %v3860
        %v3999 = vsel %vm1424, %v3983, %v3863
        %v4000 = vsel %vm1424, %v3984, %v3866
        %v4001 = vsel %vm1424, %v3985, %v3869
        %v4002 = vsel %vm1424, %v3986, %v3872
        %v4003 = vsel %vm1424, %v3987, %v3875
        %v4004 = vsel %vm1441, %v3988, %v3926
        %v4005 = vsel %vm1441, %v3989, %v3929
        %v4006 = vsel %vm1441, %v3990, %v3932
        %v4007 = vsel %vm1441, %v3991, %v3935
        %v4008 = vsel %vm1441, %v3992, %v3938
        %v4009 = vsel %vm1441, %v3993, %v3941
        %v4010 = vsel %vm1441, %v3994, %v3944
        %v4011 = vsel %vm1441, %v3995, %v3947
        %v4012 = vsel %vm1441, %v3996, %v3950
        %v4013 = vsel %vm1441, %v3997, %v3953
        %v4014 = vsel %vm1441, %v3998, %v3956
        %v4015 = vsel %vm1441, %v3999, %v3959
        %v4016 = vsel %vm1441, %v4000, %v3962
        %v4017 = vsel %vm1441, %v4001, %v3965
        %v4018 = vsel %vm1441, %v4002, %v3968
        %v4019 = vsel %vm1441, %v4003, %v3971
        %v4020 = vsel %vm1458, %v4004, -inf
        %4021 = vmax.xlane.f32.xlu0 %v4020
        %v4022 = vpop.xlane.xlu0 %4021
        %v4023 = vsel %vm1458, %v4005, -inf
        %4024 = vmax.xlane.f32.xlu0 %v4023
        %v4025 = vpop.xlane.xlu0 %4024
        %v4026 = vsel %vm1458, %v4006, -inf
        %4027 = vmax.xlane.f32.xlu0 %v4026
        %v4028 = vpop.xlane.xlu0 %4027
        %v4029 = vsel %vm1458, %v4007, -inf
        %4030 = vmax.xlane.f32.xlu0 %v4029
        %v4031 = vpop.xlane.xlu0 %4030
        %v4032 = vsel %vm1458, %v4008, -inf
        %4033 = vmax.xlane.f32.xlu0 %v4032
        %v4034 = vpop.xlane.xlu0 %4033
        %v4035 = vsel %vm1458, %v4009, -inf
        %4036 = vmax.xlane.f32.xlu0 %v4035
        %v4037 = vpop.xlane.xlu0 %4036
        %v4038 = vsel %vm1458, %v4010, -inf
        %4039 = vmax.xlane.f32.xlu0 %v4038
        %v4040 = vpop.xlane.xlu0 %4039
        %v4041 = vsel %vm1458, %v4011, -inf
        %4042 = vmax.xlane.f32.xlu0 %v4041
        %v4043 = vpop.xlane.xlu0 %4042
        %v4044 = vsel %vm1458, %v4012, -inf
        %4045 = vmax.xlane.f32.xlu0 %v4044
        %v4046 = vpop.xlane.xlu0 %4045
        %v4047 = vsel %vm1458, %v4013, -inf
        %4048 = vmax.xlane.f32.xlu0 %v4047
        %v4049 = vpop.xlane.xlu0 %4048
        %v4050 = vsel %vm1458, %v4014, -inf
        %4051 = vmax.xlane.f32.xlu0 %v4050
        %v4052 = vpop.xlane.xlu0 %4051
        %v4053 = vsel %vm1458, %v4015, -inf
        %4054 = vmax.xlane.f32.xlu0 %v4053
        %v4055 = vpop.xlane.xlu0 %4054
        %v4056 = vsel %vm1458, %v4016, -inf
        %4057 = vmax.xlane.f32.xlu0 %v4056
        %v4058 = vpop.xlane.xlu0 %4057
        %v4059 = vsel %vm1458, %v4017, -inf
        %4060 = vmax.xlane.f32.xlu0 %v4059
        %v4061 = vpop.xlane.xlu0 %4060
        %v4062 = vsel %vm1458, %v4018, -inf
        %4063 = vmax.xlane.f32.xlu0 %v4062
        %v4064 = vpop.xlane.xlu0 %4063
        %v4065 = vsel %vm1458, %v4019, -inf
        %4066 = vmax.xlane.f32.xlu0 %v4065
        %v4067 = vpop.xlane.xlu0 %4066
        %v4068 = vsub.f32 %v4004, %v4022
        %v4069 = vsub.f32 %v4005, %v4025
        %v4070 = vsub.f32 %v4006, %v4028
        %v4071 = vsub.f32 %v4007, %v4031
        %v4072 = vsub.f32 %v4008, %v4034
        %v4073 = vsub.f32 %v4009, %v4037
        %v4074 = vsub.f32 %v4010, %v4040
        %v4075 = vsub.f32 %v4011, %v4043
        %v4076 = vsub.f32 %v4012, %v4046
        %v4077 = vsub.f32 %v4013, %v4049
        %v4078 = vsub.f32 %v4014, %v4052
        %v4079 = vsub.f32 %v4015, %v4055
        %v4080 = vsub.f32 %v4016, %v4058
        %v4081 = vsub.f32 %v4017, %v4061
        %v4082 = vsub.f32 %v4018, %v4064
        %v4083 = vsub.f32 %v4019, %v4067
        %v4084 = vmul.f32 %v4068, 1.442695
        %v4085 = vpow.pop %v4084
        %v4086 = vmul.f32 %v4069, 1.442695
        %v4087 = vpow.pop %v4086
        %v4088 = vmul.f32 %v4070, 1.442695
        %v4089 = vpow.pop %v4088
        %v4090 = vmul.f32 %v4071, 1.442695
        %v4091 = vpow.pop %v4090
        %v4092 = vmul.f32 %v4072, 1.442695
        %v4093 = vpow.pop %v4092
        %v4094 = vmul.f32 %v4073, 1.442695
        %v4095 = vpow.pop %v4094
        %v4096 = vmul.f32 %v4074, 1.442695
        %v4097 = vpow.pop %v4096
        %v4098 = vmul.f32 %v4075, 1.442695
        %v4099 = vpow.pop %v4098
        %v4100 = vmul.f32 %v4076, 1.442695
        %v4101 = vpow.pop %v4100
        %v4102 = vmul.f32 %v4077, 1.442695
        %v4103 = vpow.pop %v4102
        %v4104 = vmul.f32 %v4078, 1.442695
        %v4105 = vpow.pop %v4104
        %v4106 = vmul.f32 %v4079, 1.442695
        %v4107 = vpow.pop %v4106
        %v4108 = vmul.f32 %v4080, 1.442695
        %v4109 = vpow.pop %v4108
        %v4110 = vmul.f32 %v4081, 1.442695
        %v4111 = vpow.pop %v4110
        %v4112 = vmul.f32 %v4082, 1.442695
        %v4113 = vpow.pop %v4112
        %v4114 = vmul.f32 %v4083, 1.442695
        %v4115 = vpow.pop %v4114
        %v4116 = vsel %vm1458, %v4085, 0.0
        %4117 = vadd.xlane.f32.xlu0 %v4116
        %v4118 = vpop.xlane.xlu0 %4117
        %v4119 = vsel %vm1458, %v4087, 0.0
        %4120 = vadd.xlane.f32.xlu0 %v4119
        %v4121 = vpop.xlane.xlu0 %4120
        %v4122 = vsel %vm1458, %v4089, 0.0
        %4123 = vadd.xlane.f32.xlu0 %v4122
        %v4124 = vpop.xlane.xlu0 %4123
        %v4125 = vsel %vm1458, %v4091, 0.0
        %4126 = vadd.xlane.f32.xlu0 %v4125
        %v4127 = vpop.xlane.xlu0 %4126
        %v4128 = vsel %vm1458, %v4093, 0.0
        %4129 = vadd.xlane.f32.xlu0 %v4128
        %v4130 = vpop.xlane.xlu0 %4129
        %v4131 = vsel %vm1458, %v4095, 0.0
        %4132 = vadd.xlane.f32.xlu0 %v4131
        %v4133 = vpop.xlane.xlu0 %4132
        %v4134 = vsel %vm1458, %v4097, 0.0
        %4135 = vadd.xlane.f32.xlu0 %v4134
        %v4136 = vpop.xlane.xlu0 %4135
        %v4137 = vsel %vm1458, %v4099, 0.0
        %4138 = vadd.xlane.f32.xlu0 %v4137
        %v4139 = vpop.xlane.xlu0 %4138
        %v4140 = vsel %vm1458, %v4101, 0.0
        %4141 = vadd.xlane.f32.xlu0 %v4140
        %v4142 = vpop.xlane.xlu0 %4141
        %v4143 = vsel %vm1458, %v4103, 0.0
        %4144 = vadd.xlane.f32.xlu0 %v4143
        %v4145 = vpop.xlane.xlu0 %4144
        %v4146 = vsel %vm1458, %v4105, 0.0
        %4147 = vadd.xlane.f32.xlu0 %v4146
        %v4148 = vpop.xlane.xlu0 %4147
        %v4149 = vsel %vm1458, %v4107, 0.0
        %4150 = vadd.xlane.f32.xlu0 %v4149
        %v4151 = vpop.xlane.xlu0 %4150
        %v4152 = vsel %vm1458, %v4109, 0.0
        %4153 = vadd.xlane.f32.xlu0 %v4152
        %v4154 = vpop.xlane.xlu0 %4153
        %v4155 = vsel %vm1458, %v4111, 0.0
        %4156 = vadd.xlane.f32.xlu0 %v4155
        %v4157 = vpop.xlane.xlu0 %4156
        %v4158 = vsel %vm1458, %v4113, 0.0
        %4159 = vadd.xlane.f32.xlu0 %v4158
        %v4160 = vpop.xlane.xlu0 %4159
        %v4161 = vsel %vm1458, %v4115, 0.0
        %4162 = vadd.xlane.f32.xlu0 %v4161
        %v4163 = vpop.xlane.xlu0 %4162
        %v4164 = vrcp.pop %v4118
        %v4165 = vmul.f32 1.0, %v4164
        %v4166 = vrcp.pop %v4121
        %v4167 = vmul.f32 1.0, %v4166
        %v4168 = vrcp.pop %v4124
        %v4169 = vmul.f32 1.0, %v4168
        %v4170 = vrcp.pop %v4127
        %v4171 = vmul.f32 1.0, %v4170
        %v4172 = vrcp.pop %v4130
        %v4173 = vmul.f32 1.0, %v4172
        %v4174 = vrcp.pop %v4133
        %v4175 = vmul.f32 1.0, %v4174
        %v4176 = vrcp.pop %v4136
        %v4177 = vmul.f32 1.0, %v4176
        %v4178 = vrcp.pop %v4139
        %v4179 = vmul.f32 1.0, %v4178
        %v4180 = vrcp.pop %v4142
        %v4181 = vmul.f32 1.0, %v4180
        %v4182 = vrcp.pop %v4145
        %v4183 = vmul.f32 1.0, %v4182
        %v4184 = vrcp.pop %v4148
        %v4185 = vmul.f32 1.0, %v4184
        %v4186 = vrcp.pop %v4151
        %v4187 = vmul.f32 1.0, %v4186
        %v4188 = vrcp.pop %v4154
        %v4189 = vmul.f32 1.0, %v4188
        %v4190 = vrcp.pop %v4157
        %v4191 = vmul.f32 1.0, %v4190
        %v4192 = vrcp.pop %v4160
        %v4193 = vmul.f32 1.0, %v4192
        %v4194 = vrcp.pop %v4163
        %v4195 = vmul.f32 1.0, %v4194
        %4197 = vset.pattern.permute.xlu0 0
        %4198 = vperm.xlu0 %4197, %v4085
        %v4199 = vpop.permute.xlu0 %4198
        %4202 = vset.pattern.permute.xlu0 0
        %4203 = vperm.xlu0 %4202, %v4087
        %v4204 = vpop.permute.xlu0 %4203
        %4207 = vset.pattern.permute.xlu0 0
        %4208 = vperm.xlu0 %4207, %v4089
        %v4209 = vpop.permute.xlu0 %4208
        %4212 = vset.pattern.permute.xlu0 0
        %4213 = vperm.xlu0 %4212, %v4091
        %v4214 = vpop.permute.xlu0 %4213
        %4217 = vset.pattern.permute.xlu0 0
        %4218 = vperm.xlu0 %4217, %v4093
        %v4219 = vpop.permute.xlu0 %4218
        %4222 = vset.pattern.permute.xlu0 0
        %4223 = vperm.xlu0 %4222, %v4095
        %v4224 = vpop.permute.xlu0 %4223
        %4227 = vset.pattern.permute.xlu0 0
        %4228 = vperm.xlu0 %4227, %v4097
        %v4229 = vpop.permute.xlu0 %4228
        %4232 = vset.pattern.permute.xlu0 0
        %4233 = vperm.xlu0 %4232, %v4099
        %v4234 = vpop.permute.xlu0 %4233
        %4237 = vset.pattern.permute.xlu0 0
        %4238 = vperm.xlu0 %4237, %v4101
        %v4239 = vpop.permute.xlu0 %4238
        %4242 = vset.pattern.permute.xlu0 0
        %4243 = vperm.xlu0 %4242, %v4103
        %v4244 = vpop.permute.xlu0 %4243
        %4247 = vset.pattern.permute.xlu0 0
        %4248 = vperm.xlu0 %4247, %v4105
        %v4249 = vpop.permute.xlu0 %4248
        %4252 = vset.pattern.permute.xlu0 0
        %4253 = vperm.xlu0 %4252, %v4107
        %v4254 = vpop.permute.xlu0 %4253
        %4257 = vset.pattern.permute.xlu0 0
        %4258 = vperm.xlu0 %4257, %v4109
        %v4259 = vpop.permute.xlu0 %4258
        %4262 = vset.pattern.permute.xlu0 0
        %4263 = vperm.xlu0 %4262, %v4111
        %v4264 = vpop.permute.xlu0 %4263
        %4267 = vset.pattern.permute.xlu0 0
        %4268 = vperm.xlu0 %4267, %v4113
        %v4269 = vpop.permute.xlu0 %4268
        %4272 = vset.pattern.permute.xlu0 0
        %4273 = vperm.xlu0 %4272, %v4115
        %v4274 = vpop.permute.xlu0 %4273
        %v4276 = vmul.f32 %v4199, %v913
        %v4277 = vmul.f32 %v4204, %v918
        %v4278 = vmul.f32 %v4209, %v923
        %v4279 = vmul.f32 %v4214, %v928
        %v4280 = vmul.f32 %v4219, %v933
        %v4281 = vmul.f32 %v4224, %v938
        %v4282 = vmul.f32 %v4229, %v943
        %v4283 = vmul.f32 %v4234, %v948
        %v4284 = vmul.f32 %v4239, %v953
        %v4285 = vmul.f32 %v4244, %v958
        %v4286 = vmul.f32 %v4249, %v963
        %v4287 = vmul.f32 %v4254, %v968
        %v4288 = vmul.f32 %v4259, %v973
        %v4289 = vmul.f32 %v4264, %v978
        %v4290 = vmul.f32 %v4269, %v983
        %v4291 = vmul.f32 %v4274, %v988
        %4292 = vset.pattern.permute.xlu0 1
        %4293 = vperm.xlu0 %4292, %v4085
        %v4294 = vpop.permute.xlu0 %4293
        %4296 = vset.pattern.permute.xlu0 1
        %4297 = vperm.xlu0 %4296, %v4087
        %v4298 = vpop.permute.xlu0 %4297
        %4300 = vset.pattern.permute.xlu0 1
        %4301 = vperm.xlu0 %4300, %v4089
        %v4302 = vpop.permute.xlu0 %4301
        %4304 = vset.pattern.permute.xlu0 1
        %4305 = vperm.xlu0 %4304, %v4091
        %v4306 = vpop.permute.xlu0 %4305
        %4308 = vset.pattern.permute.xlu0 1
        %4309 = vperm.xlu0 %4308, %v4093
        %v4310 = vpop.permute.xlu0 %4309
        %4312 = vset.pattern.permute.xlu0 1
        %4313 = vperm.xlu0 %4312, %v4095
        %v4314 = vpop.permute.xlu0 %4313
        %4316 = vset.pattern.permute.xlu0 1
        %4317 = vperm.xlu0 %4316, %v4097
        %v4318 = vpop.permute.xlu0 %4317
        %4320 = vset.pattern.permute.xlu0 1
        %4321 = vperm.xlu0 %4320, %v4099
        %v4322 = vpop.permute.xlu0 %4321
        %4324 = vset.pattern.permute.xlu0 1
        %4325 = vperm.xlu0 %4324, %v4101
        %v4326 = vpop.permute.xlu0 %4325
        %4328 = vset.pattern.permute.xlu0 1
        %4329 = vperm.xlu0 %4328, %v4103
        %v4330 = vpop.permute.xlu0 %4329
        %4332 = vset.pattern.permute.xlu0 1
        %4333 = vperm.xlu0 %4332, %v4105
        %v4334 = vpop.permute.xlu0 %4333
        %4336 = vset.pattern.permute.xlu0 1
        %4337 = vperm.xlu0 %4336, %v4107
        %v4338 = vpop.permute.xlu0 %4337
        %4340 = vset.pattern.permute.xlu0 1
        %4341 = vperm.xlu0 %4340, %v4109
        %v4342 = vpop.permute.xlu0 %4341
        %4344 = vset.pattern.permute.xlu0 1
        %4345 = vperm.xlu0 %4344, %v4111
        %v4346 = vpop.permute.xlu0 %4345
        %4348 = vset.pattern.permute.xlu0 1
        %4349 = vperm.xlu0 %4348, %v4113
        %v4350 = vpop.permute.xlu0 %4349
        %4352 = vset.pattern.permute.xlu0 1
        %4353 = vperm.xlu0 %4352, %v4115
        %v4354 = vpop.permute.xlu0 %4353
        %v4356 = vmul.f32 %v4294, %v913
        %v4357 = vmul.f32 %v4298, %v918
        %v4358 = vmul.f32 %v4302, %v923
        %v4359 = vmul.f32 %v4306, %v928
        %v4360 = vmul.f32 %v4310, %v933
        %v4361 = vmul.f32 %v4314, %v938
        %v4362 = vmul.f32 %v4318, %v943
        %v4363 = vmul.f32 %v4322, %v948
        %v4364 = vmul.f32 %v4326, %v953
        %v4365 = vmul.f32 %v4330, %v958
        %v4366 = vmul.f32 %v4334, %v963
        %v4367 = vmul.f32 %v4338, %v968
        %v4368 = vmul.f32 %v4342, %v973
        %v4369 = vmul.f32 %v4346, %v978
        %v4370 = vmul.f32 %v4350, %v983
        %v4371 = vmul.f32 %v4354, %v988
        %4388 = vrot.lane.b32.xlu0 %v4356, 96
        %v4389 = vpop.permute.xlu0 %4388
        %4390 = vrot.lane.b32.xlu0 %v4357, 96
        %v4391 = vpop.permute.xlu0 %4390
        %4392 = vrot.lane.b32.xlu0 %v4358, 96
        %v4393 = vpop.permute.xlu0 %4392
        %4394 = vrot.lane.b32.xlu0 %v4359, 96
        %v4395 = vpop.permute.xlu0 %4394
        %4396 = vrot.lane.b32.xlu0 %v4360, 96
        %v4397 = vpop.permute.xlu0 %4396
        %4398 = vrot.lane.b32.xlu0 %v4361, 96
        %v4399 = vpop.permute.xlu0 %4398
        %4400 = vrot.lane.b32.xlu0 %v4362, 96
        %v4401 = vpop.permute.xlu0 %4400
        %4402 = vrot.lane.b32.xlu0 %v4363, 96
        %v4403 = vpop.permute.xlu0 %4402
        %4404 = vrot.lane.b32.xlu0 %v4364, 96
        %v4405 = vpop.permute.xlu0 %4404
        %4406 = vrot.lane.b32.xlu0 %v4365, 96
        %v4407 = vpop.permute.xlu0 %4406
        %4408 = vrot.lane.b32.xlu0 %v4366, 96
        %v4409 = vpop.permute.xlu0 %4408
        %4410 = vrot.lane.b32.xlu0 %v4367, 96
        %v4411 = vpop.permute.xlu0 %4410
        %4412 = vrot.lane.b32.xlu0 %v4368, 96
        %v4413 = vpop.permute.xlu0 %4412
        %4414 = vrot.lane.b32.xlu0 %v4369, 96
        %v4415 = vpop.permute.xlu0 %4414
        %4416 = vrot.lane.b32.xlu0 %v4370, 96
        %v4417 = vpop.permute.xlu0 %4416
        %4418 = vrot.lane.b32.xlu0 %v4371, 96
        %v4419 = vpop.permute.xlu0 %4418
        %v4436 = vadd.f32 %v4276, %v4389
        %v4437 = vadd.f32 %v4277, %v4391
        %v4438 = vadd.f32 %v4278, %v4393
        %v4439 = vadd.f32 %v4279, %v4395
        %v4440 = vadd.f32 %v4280, %v4397
        %v4441 = vadd.f32 %v4281, %v4399
        %v4442 = vadd.f32 %v4282, %v4401
        %v4443 = vadd.f32 %v4283, %v4403
        %v4444 = vadd.f32 %v4284, %v4405
        %v4445 = vadd.f32 %v4285, %v4407
        %v4446 = vadd.f32 %v4286, %v4409
        %v4447 = vadd.f32 %v4287, %v4411
        %v4448 = vadd.f32 %v4288, %v4413
        %v4449 = vadd.f32 %v4289, %v4415
        %v4450 = vadd.f32 %v4290, %v4417
        %v4451 = vadd.f32 %v4291, %v4419
        %4452 = vset.pattern.permute.xlu0 2
        %4453 = vperm.xlu0 %4452, %v4085
        %v4454 = vpop.permute.xlu0 %4453
        %4456 = vset.pattern.permute.xlu0 2
        %4457 = vperm.xlu0 %4456, %v4087
        %v4458 = vpop.permute.xlu0 %4457
        %4460 = vset.pattern.permute.xlu0 2
        %4461 = vperm.xlu0 %4460, %v4089
        %v4462 = vpop.permute.xlu0 %4461
        %4464 = vset.pattern.permute.xlu0 2
        %4465 = vperm.xlu0 %4464, %v4091
        %v4466 = vpop.permute.xlu0 %4465
        %4468 = vset.pattern.permute.xlu0 2
        %4469 = vperm.xlu0 %4468, %v4093
        %v4470 = vpop.permute.xlu0 %4469
        %4472 = vset.pattern.permute.xlu0 2
        %4473 = vperm.xlu0 %4472, %v4095
        %v4474 = vpop.permute.xlu0 %4473
        %4476 = vset.pattern.permute.xlu0 2
        %4477 = vperm.xlu0 %4476, %v4097
        %v4478 = vpop.permute.xlu0 %4477
        %4480 = vset.pattern.permute.xlu0 2
        %4481 = vperm.xlu0 %4480, %v4099
        %v4482 = vpop.permute.xlu0 %4481
        %4484 = vset.pattern.permute.xlu0 2
        %4485 = vperm.xlu0 %4484, %v4101
        %v4486 = vpop.permute.xlu0 %4485
        %4488 = vset.pattern.permute.xlu0 2
        %4489 = vperm.xlu0 %4488, %v4103
        %v4490 = vpop.permute.xlu0 %4489
        %4492 = vset.pattern.permute.xlu0 2
        %4493 = vperm.xlu0 %4492, %v4105
        %v4494 = vpop.permute.xlu0 %4493
        %4496 = vset.pattern.permute.xlu0 2
        %4497 = vperm.xlu0 %4496, %v4107
        %v4498 = vpop.permute.xlu0 %4497
        %4500 = vset.pattern.permute.xlu0 2
        %4501 = vperm.xlu0 %4500, %v4109
        %v4502 = vpop.permute.xlu0 %4501
        %4504 = vset.pattern.permute.xlu0 2
        %4505 = vperm.xlu0 %4504, %v4111
        %v4506 = vpop.permute.xlu0 %4505
        %4508 = vset.pattern.permute.xlu0 2
        %4509 = vperm.xlu0 %4508, %v4113
        %v4510 = vpop.permute.xlu0 %4509
        %4512 = vset.pattern.permute.xlu0 2
        %4513 = vperm.xlu0 %4512, %v4115
        %v4514 = vpop.permute.xlu0 %4513
        %v4516 = vmul.f32 %v4454, %v913
        %v4517 = vmul.f32 %v4458, %v918
        %v4518 = vmul.f32 %v4462, %v923
        %v4519 = vmul.f32 %v4466, %v928
        %v4520 = vmul.f32 %v4470, %v933
        %v4521 = vmul.f32 %v4474, %v938
        %v4522 = vmul.f32 %v4478, %v943
        %v4523 = vmul.f32 %v4482, %v948
        %v4524 = vmul.f32 %v4486, %v953
        %v4525 = vmul.f32 %v4490, %v958
        %v4526 = vmul.f32 %v4494, %v963
        %v4527 = vmul.f32 %v4498, %v968
        %v4528 = vmul.f32 %v4502, %v973
        %v4529 = vmul.f32 %v4506, %v978
        %v4530 = vmul.f32 %v4510, %v983
        %v4531 = vmul.f32 %v4514, %v988
        %4548 = vrot.lane.b32.xlu0 %v4516, 64
        %v4549 = vpop.permute.xlu0 %4548
        %4550 = vrot.lane.b32.xlu0 %v4517, 64
        %v4551 = vpop.permute.xlu0 %4550
        %4552 = vrot.lane.b32.xlu0 %v4518, 64
        %v4553 = vpop.permute.xlu0 %4552
        %4554 = vrot.lane.b32.xlu0 %v4519, 64
        %v4555 = vpop.permute.xlu0 %4554
        %4556 = vrot.lane.b32.xlu0 %v4520, 64
        %v4557 = vpop.permute.xlu0 %4556
        %4558 = vrot.lane.b32.xlu0 %v4521, 64
        %v4559 = vpop.permute.xlu0 %4558
        %4560 = vrot.lane.b32.xlu0 %v4522, 64
        %v4561 = vpop.permute.xlu0 %4560
        %4562 = vrot.lane.b32.xlu0 %v4523, 64
        %v4563 = vpop.permute.xlu0 %4562
        %4564 = vrot.lane.b32.xlu0 %v4524, 64
        %v4565 = vpop.permute.xlu0 %4564
        %4566 = vrot.lane.b32.xlu0 %v4525, 64
        %v4567 = vpop.permute.xlu0 %4566
        %4568 = vrot.lane.b32.xlu0 %v4526, 64
        %v4569 = vpop.permute.xlu0 %4568
        %4570 = vrot.lane.b32.xlu0 %v4527, 64
        %v4571 = vpop.permute.xlu0 %4570
        %4572 = vrot.lane.b32.xlu0 %v4528, 64
        %v4573 = vpop.permute.xlu0 %4572
        %4574 = vrot.lane.b32.xlu0 %v4529, 64
        %v4575 = vpop.permute.xlu0 %4574
        %4576 = vrot.lane.b32.xlu0 %v4530, 64
        %v4577 = vpop.permute.xlu0 %4576
        %4578 = vrot.lane.b32.xlu0 %v4531, 64
        %v4579 = vpop.permute.xlu0 %4578
        %v4596 = vadd.f32 %v4436, %v4549
        %v4597 = vadd.f32 %v4437, %v4551
        %v4598 = vadd.f32 %v4438, %v4553
        %v4599 = vadd.f32 %v4439, %v4555
        %v4600 = vadd.f32 %v4440, %v4557
        %v4601 = vadd.f32 %v4441, %v4559
        %v4602 = vadd.f32 %v4442, %v4561
        %v4603 = vadd.f32 %v4443, %v4563
        %v4604 = vadd.f32 %v4444, %v4565
        %v4605 = vadd.f32 %v4445, %v4567
        %v4606 = vadd.f32 %v4446, %v4569
        %v4607 = vadd.f32 %v4447, %v4571
        %v4608 = vadd.f32 %v4448, %v4573
        %v4609 = vadd.f32 %v4449, %v4575
        %v4610 = vadd.f32 %v4450, %v4577
        %v4611 = vadd.f32 %v4451, %v4579
        %4612 = vset.pattern.permute.xlu0 3
        %4613 = vperm.xlu0 %4612, %v4085
        %v4614 = vpop.permute.xlu0 %4613
        %4616 = vset.pattern.permute.xlu0 3
        %4617 = vperm.xlu0 %4616, %v4087
        %v4618 = vpop.permute.xlu0 %4617
        %4620 = vset.pattern.permute.xlu0 3
        %4621 = vperm.xlu0 %4620, %v4089
        %v4622 = vpop.permute.xlu0 %4621
        %4624 = vset.pattern.permute.xlu0 3
        %4625 = vperm.xlu0 %4624, %v4091
        %v4626 = vpop.permute.xlu0 %4625
        %4628 = vset.pattern.permute.xlu0 3
        %4629 = vperm.xlu0 %4628, %v4093
        %v4630 = vpop.permute.xlu0 %4629
        %4632 = vset.pattern.permute.xlu0 3
        %4633 = vperm.xlu0 %4632, %v4095
        %v4634 = vpop.permute.xlu0 %4633
        %4636 = vset.pattern.permute.xlu0 3
        %4637 = vperm.xlu0 %4636, %v4097
        %v4638 = vpop.permute.xlu0 %4637
        %4640 = vset.pattern.permute.xlu0 3
        %4641 = vperm.xlu0 %4640, %v4099
        %v4642 = vpop.permute.xlu0 %4641
        %4644 = vset.pattern.permute.xlu0 3
        %4645 = vperm.xlu0 %4644, %v4101
        %v4646 = vpop.permute.xlu0 %4645
        %4648 = vset.pattern.permute.xlu0 3
        %4649 = vperm.xlu0 %4648, %v4103
        %v4650 = vpop.permute.xlu0 %4649
        %4652 = vset.pattern.permute.xlu0 3
        %4653 = vperm.xlu0 %4652, %v4105
        %v4654 = vpop.permute.xlu0 %4653
        %4656 = vset.pattern.permute.xlu0 3
        %4657 = vperm.xlu0 %4656, %v4107
        %v4658 = vpop.permute.xlu0 %4657
        %4660 = vset.pattern.permute.xlu0 3
        %4661 = vperm.xlu0 %4660, %v4109
        %v4662 = vpop.permute.xlu0 %4661
        %4664 = vset.pattern.permute.xlu0 3
        %4665 = vperm.xlu0 %4664, %v4111
        %v4666 = vpop.permute.xlu0 %4665
        %4668 = vset.pattern.permute.xlu0 3
        %4669 = vperm.xlu0 %4668, %v4113
        %v4670 = vpop.permute.xlu0 %4669
        %4672 = vset.pattern.permute.xlu0 3
        %4673 = vperm.xlu0 %4672, %v4115
        %v4674 = vpop.permute.xlu0 %4673
        %v4676 = vmul.f32 %v4614, %v913
        %v4677 = vmul.f32 %v4618, %v918
        %v4678 = vmul.f32 %v4622, %v923
        %v4679 = vmul.f32 %v4626, %v928
        %v4680 = vmul.f32 %v4630, %v933
        %v4681 = vmul.f32 %v4634, %v938
        %v4682 = vmul.f32 %v4638, %v943
        %v4683 = vmul.f32 %v4642, %v948
        %v4684 = vmul.f32 %v4646, %v953
        %v4685 = vmul.f32 %v4650, %v958
        %v4686 = vmul.f32 %v4654, %v963
        %v4687 = vmul.f32 %v4658, %v968
        %v4688 = vmul.f32 %v4662, %v973
        %v4689 = vmul.f32 %v4666, %v978
        %v4690 = vmul.f32 %v4670, %v983
        %v4691 = vmul.f32 %v4674, %v988
        %4708 = vrot.lane.b32.xlu0 %v4676, 32
        %v4709 = vpop.permute.xlu0 %4708
        %4710 = vrot.lane.b32.xlu0 %v4677, 32
        %v4711 = vpop.permute.xlu0 %4710
        %4712 = vrot.lane.b32.xlu0 %v4678, 32
        %v4713 = vpop.permute.xlu0 %4712
        %4714 = vrot.lane.b32.xlu0 %v4679, 32
        %v4715 = vpop.permute.xlu0 %4714
        %4716 = vrot.lane.b32.xlu0 %v4680, 32
        %v4717 = vpop.permute.xlu0 %4716
        %4718 = vrot.lane.b32.xlu0 %v4681, 32
        %v4719 = vpop.permute.xlu0 %4718
        %4720 = vrot.lane.b32.xlu0 %v4682, 32
        %v4721 = vpop.permute.xlu0 %4720
        %4722 = vrot.lane.b32.xlu0 %v4683, 32
        %v4723 = vpop.permute.xlu0 %4722
        %4724 = vrot.lane.b32.xlu0 %v4684, 32
        %v4725 = vpop.permute.xlu0 %4724
        %4726 = vrot.lane.b32.xlu0 %v4685, 32
        %v4727 = vpop.permute.xlu0 %4726
        %4728 = vrot.lane.b32.xlu0 %v4686, 32
        %v4729 = vpop.permute.xlu0 %4728
        %4730 = vrot.lane.b32.xlu0 %v4687, 32
        %v4731 = vpop.permute.xlu0 %4730
        %4732 = vrot.lane.b32.xlu0 %v4688, 32
        %v4733 = vpop.permute.xlu0 %4732
        %4734 = vrot.lane.b32.xlu0 %v4689, 32
        %v4735 = vpop.permute.xlu0 %4734
        %4736 = vrot.lane.b32.xlu0 %v4690, 32
        %v4737 = vpop.permute.xlu0 %4736
        %4738 = vrot.lane.b32.xlu0 %v4691, 32
        %v4739 = vpop.permute.xlu0 %4738
        %v4756 = vadd.f32 %v4596, %v4709
        %v4757 = vadd.f32 %v4597, %v4711
        %v4758 = vadd.f32 %v4598, %v4713
        %v4759 = vadd.f32 %v4599, %v4715
        %v4760 = vadd.f32 %v4600, %v4717
        %v4761 = vadd.f32 %v4601, %v4719
        %v4762 = vadd.f32 %v4602, %v4721
        %v4763 = vadd.f32 %v4603, %v4723
        %v4764 = vadd.f32 %v4604, %v4725
        %v4765 = vadd.f32 %v4605, %v4727
        %v4766 = vadd.f32 %v4606, %v4729
        %v4767 = vadd.f32 %v4607, %v4731
        %v4768 = vadd.f32 %v4608, %v4733
        %v4769 = vadd.f32 %v4609, %v4735
        %v4770 = vadd.f32 %v4610, %v4737
        %v4771 = vadd.f32 %v4611, %v4739
        %v4772 = vmul.f32 %v4756, %v4165
        %v4773 = vmul.f32 %v4757, %v4167
        %v4774 = vmul.f32 %v4758, %v4169
        %v4775 = vmul.f32 %v4759, %v4171
        %v4776 = vmul.f32 %v4760, %v4173
        %v4777 = vmul.f32 %v4761, %v4175
        %v4778 = vmul.f32 %v4762, %v4177
        %v4779 = vmul.f32 %v4763, %v4179
        %v4780 = vmul.f32 %v4764, %v4181
        %v4781 = vmul.f32 %v4765, %v4183
        %v4782 = vmul.f32 %v4766, %v4185
        %v4783 = vmul.f32 %v4767, %v4187
        %v4784 = vmul.f32 %v4768, %v4189
        %v4785 = vmul.f32 %v4769, %v4191
        %v4786 = vmul.f32 %v4770, %v4193
        %v4787 = vmul.f32 %v4771, %v4195
        %4804 = vrot.lane.b32.xlu0 %v4772, 64
        %v4805 = vpop.permute.xlu0 %4804
        %4806 = vrot.lane.b32.xlu0 %v4773, 64
        %v4807 = vpop.permute.xlu0 %4806
        %4808 = vrot.lane.b32.xlu0 %v4774, 64
        %v4809 = vpop.permute.xlu0 %4808
        %4810 = vrot.lane.b32.xlu0 %v4775, 64
        %v4811 = vpop.permute.xlu0 %4810
        %4812 = vrot.lane.b32.xlu0 %v4776, 64
        %v4813 = vpop.permute.xlu0 %4812
        %4814 = vrot.lane.b32.xlu0 %v4777, 64
        %v4815 = vpop.permute.xlu0 %4814
        %4816 = vrot.lane.b32.xlu0 %v4778, 64
        %v4817 = vpop.permute.xlu0 %4816
        %4818 = vrot.lane.b32.xlu0 %v4779, 64
        %v4819 = vpop.permute.xlu0 %4818
        %4820 = vrot.lane.b32.xlu0 %v4780, 64
        %v4821 = vpop.permute.xlu0 %4820
        %4822 = vrot.lane.b32.xlu0 %v4781, 64
        %v4823 = vpop.permute.xlu0 %4822
        %4824 = vrot.lane.b32.xlu0 %v4782, 64
        %v4825 = vpop.permute.xlu0 %4824
        %4826 = vrot.lane.b32.xlu0 %v4783, 64
        %v4827 = vpop.permute.xlu0 %4826
        %4828 = vrot.lane.b32.xlu0 %v4784, 64
        %v4829 = vpop.permute.xlu0 %4828
        %4830 = vrot.lane.b32.xlu0 %v4785, 64
        %v4831 = vpop.permute.xlu0 %4830
        %4832 = vrot.lane.b32.xlu0 %v4786, 64
        %v4833 = vpop.permute.xlu0 %4832
        %4834 = vrot.lane.b32.xlu0 %v4787, 64
        %v4835 = vpop.permute.xlu0 %4834
        %vm4852 = vcmask 785920
        %4853 = vst.msk [vmem:[#allocation2] sm:$0xff] %vm4852, %v4805
        %4854 = vst.msk [vmem:[#allocation2 + $0x8] sm:$0xff] %vm4852, %v4807
        %4855 = vst.msk [vmem:[#allocation2 + $0x10] sm:$0xff] %vm4852, %v4809
        %4856 = vst.msk [vmem:[#allocation2 + $0x18] sm:$0xff] %vm4852, %v4811
        %4857 = vst.msk [vmem:[#allocation2 + $0x20] sm:$0xff] %vm4852, %v4813
        %4858 = vst.msk [vmem:[#allocation2 + $0x28] sm:$0xff] %vm4852, %v4815
        %4859 = vst.msk [vmem:[#allocation2 + $0x30] sm:$0xff] %vm4852, %v4817
        %4860 = vst.msk [vmem:[#allocation2 + $0x38] sm:$0xff] %vm4852, %v4819
        %4861 = vst.msk [vmem:[#allocation2 + $0x40] sm:$0xff] %vm4852, %v4821
        %4862 = vst.msk [vmem:[#allocation2 + $0x48] sm:$0xff] %vm4852, %v4823
        %4863 = vst.msk [vmem:[#allocation2 + $0x50] sm:$0xff] %vm4852, %v4825
        %4864 = vst.msk [vmem:[#allocation2 + $0x58] sm:$0xff] %vm4852, %v4827
        %4865 = vst.msk [vmem:[#allocation2 + $0x60] sm:$0xff] %vm4852, %v4829
        %4866 = vst.msk [vmem:[#allocation2 + $0x68] sm:$0xff] %vm4852, %v4831
        %4867 = vst.msk [vmem:[#allocation2 + $0x70] sm:$0xff] %vm4852, %v4833
        %4868 = vst.msk [vmem:[#allocation2 + $0x78] sm:$0xff] %vm4852, %v4835
        %4869 = vrot.lane.b32.xlu0 %v1119, 32
        %v4870 = vpop.permute.xlu0 %4869
        %4871 = vrot.lane.b32.xlu0 %v1120, 32
        %v4872 = vpop.permute.xlu0 %4871
        %4873 = vrot.lane.b32.xlu0 %v1121, 32
        %v4874 = vpop.permute.xlu0 %4873
        %4875 = vrot.lane.b32.xlu0 %v1122, 32
        %v4876 = vpop.permute.xlu0 %4875
        %4877 = vrot.lane.b32.xlu0 %v1123, 32
        %v4878 = vpop.permute.xlu0 %4877
        %4879 = vrot.lane.b32.xlu0 %v1124, 32
        %v4880 = vpop.permute.xlu0 %4879
        %4881 = vrot.lane.b32.xlu0 %v1125, 32
        %v4882 = vpop.permute.xlu0 %4881
        %4883 = vrot.lane.b32.xlu0 %v1126, 32
        %v4884 = vpop.permute.xlu0 %4883
        %4885 = vrot.lane.b32.xlu0 %v1127, 32
        %v4886 = vpop.permute.xlu0 %4885
        %4887 = vrot.lane.b32.xlu0 %v1128, 32
        %v4888 = vpop.permute.xlu0 %4887
        %4889 = vrot.lane.b32.xlu0 %v1129, 32
        %v4890 = vpop.permute.xlu0 %4889
        %4891 = vrot.lane.b32.xlu0 %v1130, 32
        %v4892 = vpop.permute.xlu0 %4891
        %4893 = vrot.lane.b32.xlu0 %v1131, 32
        %v4894 = vpop.permute.xlu0 %4893
        %4895 = vrot.lane.b32.xlu0 %v1132, 32
        %v4896 = vpop.permute.xlu0 %4895
        %4897 = vrot.lane.b32.xlu0 %v1133, 32
        %v4898 = vpop.permute.xlu0 %4897
        %4899 = vrot.lane.b32.xlu0 %v1134, 32
        %v4900 = vpop.permute.xlu0 %4899
        %v4917 = vsel %vm371, %v4870, 0.0
        %4918 = vadd.xlane.f32.xlu0 %v4917
        %v4919 = vpop.xlane.xlu0 %4918
        %v4920 = vsel %vm371, %v4872, 0.0
        %4921 = vadd.xlane.f32.xlu0 %v4920
        %v4922 = vpop.xlane.xlu0 %4921
        %v4923 = vsel %vm371, %v4874, 0.0
        %4924 = vadd.xlane.f32.xlu0 %v4923
        %v4925 = vpop.xlane.xlu0 %4924
        %v4926 = vsel %vm371, %v4876, 0.0
        %4927 = vadd.xlane.f32.xlu0 %v4926
        %v4928 = vpop.xlane.xlu0 %4927
        %v4929 = vsel %vm371, %v4878, 0.0
        %4930 = vadd.xlane.f32.xlu0 %v4929
        %v4931 = vpop.xlane.xlu0 %4930
        %v4932 = vsel %vm371, %v4880, 0.0
        %4933 = vadd.xlane.f32.xlu0 %v4932
        %v4934 = vpop.xlane.xlu0 %4933
        %v4935 = vsel %vm371, %v4882, 0.0
        %4936 = vadd.xlane.f32.xlu0 %v4935
        %v4937 = vpop.xlane.xlu0 %4936
        %v4938 = vsel %vm371, %v4884, 0.0
        %4939 = vadd.xlane.f32.xlu0 %v4938
        %v4940 = vpop.xlane.xlu0 %4939
        %v4941 = vsel %vm371, %v4886, 0.0
        %4942 = vadd.xlane.f32.xlu0 %v4941
        %v4943 = vpop.xlane.xlu0 %4942
        %v4944 = vsel %vm371, %v4888, 0.0
        %4945 = vadd.xlane.f32.xlu0 %v4944
        %v4946 = vpop.xlane.xlu0 %4945
        %v4947 = vsel %vm371, %v4890, 0.0
        %4948 = vadd.xlane.f32.xlu0 %v4947
        %v4949 = vpop.xlane.xlu0 %4948
        %v4950 = vsel %vm371, %v4892, 0.0
        %4951 = vadd.xlane.f32.xlu0 %v4950
        %v4952 = vpop.xlane.xlu0 %4951
        %v4953 = vsel %vm371, %v4894, 0.0
        %4954 = vadd.xlane.f32.xlu0 %v4953
        %v4955 = vpop.xlane.xlu0 %4954
        %v4956 = vsel %vm371, %v4896, 0.0
        %4957 = vadd.xlane.f32.xlu0 %v4956
        %v4958 = vpop.xlane.xlu0 %4957
        %v4959 = vsel %vm371, %v4898, 0.0
        %4960 = vadd.xlane.f32.xlu0 %v4959
        %v4961 = vpop.xlane.xlu0 %4960
        %v4962 = vsel %vm371, %v4900, 0.0
        %4963 = vadd.xlane.f32.xlu0 %v4962
        %v4964 = vpop.xlane.xlu0 %4963
        %4965 = vrot.lane.b32.xlu0 %v1231, 32
        %v4966 = vpop.permute.xlu0 %4965
        %4967 = vrot.lane.b32.xlu0 %v1232, 32
        %v4968 = vpop.permute.xlu0 %4967
        %4969 = vrot.lane.b32.xlu0 %v1233, 32
        %v4970 = vpop.permute.xlu0 %4969
        %4971 = vrot.lane.b32.xlu0 %v1234, 32
        %v4972 = vpop.permute.xlu0 %4971
        %4973 = vrot.lane.b32.xlu0 %v1235, 32
        %v4974 = vpop.permute.xlu0 %4973
        %4975 = vrot.lane.b32.xlu0 %v1236, 32
        %v4976 = vpop.permute.xlu0 %4975
        %4977 = vrot.lane.b32.xlu0 %v1237, 32
        %v4978 = vpop.permute.xlu0 %4977
        %4979 = vrot.lane.b32.xlu0 %v1238, 32
        %v4980 = vpop.permute.xlu0 %4979
        %4981 = vrot.lane.b32.xlu0 %v1239, 32
        %v4982 = vpop.permute.xlu0 %4981
        %4983 = vrot.lane.b32.xlu0 %v1240, 32
        %v4984 = vpop.permute.xlu0 %4983
        %4985 = vrot.lane.b32.xlu0 %v1241, 32
        %v4986 = vpop.permute.xlu0 %4985
        %4987 = vrot.lane.b32.xlu0 %v1242, 32
        %v4988 = vpop.permute.xlu0 %4987
        %4989 = vrot.lane.b32.xlu0 %v1243, 32
        %v4990 = vpop.permute.xlu0 %4989
        %4991 = vrot.lane.b32.xlu0 %v1244, 32
        %v4992 = vpop.permute.xlu0 %4991
        %4993 = vrot.lane.b32.xlu0 %v1245, 32
        %v4994 = vpop.permute.xlu0 %4993
        %4995 = vrot.lane.b32.xlu0 %v1246, 32
        %v4996 = vpop.permute.xlu0 %4995
        %v5013 = vsel %vm371, %v4966, 0.0
        %5014 = vadd.xlane.f32.xlu0 %v5013
        %v5015 = vpop.xlane.xlu0 %5014
        %v5016 = vsel %vm371, %v4968, 0.0
        %5017 = vadd.xlane.f32.xlu0 %v5016
        %v5018 = vpop.xlane.xlu0 %5017
        %v5019 = vsel %vm371, %v4970, 0.0
        %5020 = vadd.xlane.f32.xlu0 %v5019
        %v5021 = vpop.xlane.xlu0 %5020
        %v5022 = vsel %vm371, %v4972, 0.0
        %5023 = vadd.xlane.f32.xlu0 %v5022
        %v5024 = vpop.xlane.xlu0 %5023
        %v5025 = vsel %vm371, %v4974, 0.0
        %5026 = vadd.xlane.f32.xlu0 %v5025
        %v5027 = vpop.xlane.xlu0 %5026
        %v5028 = vsel %vm371, %v4976, 0.0
        %5029 = vadd.xlane.f32.xlu0 %v5028
        %v5030 = vpop.xlane.xlu0 %5029
        %v5031 = vsel %vm371, %v4978, 0.0
        %5032 = vadd.xlane.f32.xlu0 %v5031
        %v5033 = vpop.xlane.xlu0 %5032
        %v5034 = vsel %vm371, %v4980, 0.0
        %5035 = vadd.xlane.f32.xlu0 %v5034
        %v5036 = vpop.xlane.xlu0 %5035
        %v5037 = vsel %vm371, %v4982, 0.0
        %5038 = vadd.xlane.f32.xlu0 %v5037
        %v5039 = vpop.xlane.xlu0 %5038
        %v5040 = vsel %vm371, %v4984, 0.0
        %5041 = vadd.xlane.f32.xlu0 %v5040
        %v5042 = vpop.xlane.xlu0 %5041
        %v5043 = vsel %vm371, %v4986, 0.0
        %5044 = vadd.xlane.f32.xlu0 %v5043
        %v5045 = vpop.xlane.xlu0 %5044
        %v5046 = vsel %vm371, %v4988, 0.0
        %5047 = vadd.xlane.f32.xlu0 %v5046
        %v5048 = vpop.xlane.xlu0 %5047
        %v5049 = vsel %vm371, %v4990, 0.0
        %5050 = vadd.xlane.f32.xlu0 %v5049
        %v5051 = vpop.xlane.xlu0 %5050
        %v5052 = vsel %vm371, %v4992, 0.0
        %5053 = vadd.xlane.f32.xlu0 %v5052
        %v5054 = vpop.xlane.xlu0 %5053
        %v5055 = vsel %vm371, %v4994, 0.0
        %5056 = vadd.xlane.f32.xlu0 %v5055
        %v5057 = vpop.xlane.xlu0 %5056
        %v5058 = vsel %vm371, %v4996, 0.0
        %5059 = vadd.xlane.f32.xlu0 %v5058
        %v5060 = vpop.xlane.xlu0 %5059
        %5061 = vrot.lane.b32.xlu0 %v1343, 32
        %v5062 = vpop.permute.xlu0 %5061
        %5063 = vrot.lane.b32.xlu0 %v1344, 32
        %v5064 = vpop.permute.xlu0 %5063
        %5065 = vrot.lane.b32.xlu0 %v1345, 32
        %v5066 = vpop.permute.xlu0 %5065
        %5067 = vrot.lane.b32.xlu0 %v1346, 32
        %v5068 = vpop.permute.xlu0 %5067
        %5069 = vrot.lane.b32.xlu0 %v1347, 32
        %v5070 = vpop.permute.xlu0 %5069
        %5071 = vrot.lane.b32.xlu0 %v1348, 32
        %v5072 = vpop.permute.xlu0 %5071
        %5073 = vrot.lane.b32.xlu0 %v1349, 32
        %v5074 = vpop.permute.xlu0 %5073
        %5075 = vrot.lane.b32.xlu0 %v1350, 32
        %v5076 = vpop.permute.xlu0 %5075
        %5077 = vrot.lane.b32.xlu0 %v1351, 32
        %v5078 = vpop.permute.xlu0 %5077
        %5079 = vrot.lane.b32.xlu0 %v1352, 32
        %v5080 = vpop.permute.xlu0 %5079
        %5081 = vrot.lane.b32.xlu0 %v1353, 32
        %v5082 = vpop.permute.xlu0 %5081
        %5083 = vrot.lane.b32.xlu0 %v1354, 32
        %v5084 = vpop.permute.xlu0 %5083
        %5085 = vrot.lane.b32.xlu0 %v1355, 32
        %v5086 = vpop.permute.xlu0 %5085
        %5087 = vrot.lane.b32.xlu0 %v1356, 32
        %v5088 = vpop.permute.xlu0 %5087
        %5089 = vrot.lane.b32.xlu0 %v1357, 32
        %v5090 = vpop.permute.xlu0 %5089
        %5091 = vrot.lane.b32.xlu0 %v1358, 32
        %v5092 = vpop.permute.xlu0 %5091
        %v5109 = vsel %vm371, %v5062, 0.0
        %5110 = vadd.xlane.f32.xlu0 %v5109
        %v5111 = vpop.xlane.xlu0 %5110
        %v5112 = vsel %vm371, %v5064, 0.0
        %5113 = vadd.xlane.f32.xlu0 %v5112
        %v5114 = vpop.xlane.xlu0 %5113
        %v5115 = vsel %vm371, %v5066, 0.0
        %5116 = vadd.xlane.f32.xlu0 %v5115
        %v5117 = vpop.xlane.xlu0 %5116
        %v5118 = vsel %vm371, %v5068, 0.0
        %5119 = vadd.xlane.f32.xlu0 %v5118
        %v5120 = vpop.xlane.xlu0 %5119
        %v5121 = vsel %vm371, %v5070, 0.0
        %5122 = vadd.xlane.f32.xlu0 %v5121
        %v5123 = vpop.xlane.xlu0 %5122
        %v5124 = vsel %vm371, %v5072, 0.0
        %5125 = vadd.xlane.f32.xlu0 %v5124
        %v5126 = vpop.xlane.xlu0 %5125
        %v5127 = vsel %vm371, %v5074, 0.0
        %5128 = vadd.xlane.f32.xlu0 %v5127
        %v5129 = vpop.xlane.xlu0 %5128
        %v5130 = vsel %vm371, %v5076, 0.0
        %5131 = vadd.xlane.f32.xlu0 %v5130
        %v5132 = vpop.xlane.xlu0 %5131
        %v5133 = vsel %vm371, %v5078, 0.0
        %5134 = vadd.xlane.f32.xlu0 %v5133
        %v5135 = vpop.xlane.xlu0 %5134
        %v5136 = vsel %vm371, %v5080, 0.0
        %5137 = vadd.xlane.f32.xlu0 %v5136
        %v5138 = vpop.xlane.xlu0 %5137
        %v5139 = vsel %vm371, %v5082, 0.0
        %5140 = vadd.xlane.f32.xlu0 %v5139
        %v5141 = vpop.xlane.xlu0 %5140
        %v5142 = vsel %vm371, %v5084, 0.0
        %5143 = vadd.xlane.f32.xlu0 %v5142
        %v5144 = vpop.xlane.xlu0 %5143
        %v5145 = vsel %vm371, %v5086, 0.0
        %5146 = vadd.xlane.f32.xlu0 %v5145
        %v5147 = vpop.xlane.xlu0 %5146
        %v5148 = vsel %vm371, %v5088, 0.0
        %5149 = vadd.xlane.f32.xlu0 %v5148
        %v5150 = vpop.xlane.xlu0 %5149
        %v5151 = vsel %vm371, %v5090, 0.0
        %5152 = vadd.xlane.f32.xlu0 %v5151
        %v5153 = vpop.xlane.xlu0 %5152
        %v5154 = vsel %vm371, %v5092, 0.0
        %5155 = vadd.xlane.f32.xlu0 %v5154
        %v5156 = vpop.xlane.xlu0 %5155
        %5157 = vrot.lane.b32.xlu0 %v991, 32
        %v5158 = vpop.permute.xlu0 %5157
        %5159 = vrot.lane.b32.xlu0 %v992, 32
        %v5160 = vpop.permute.xlu0 %5159
        %5161 = vrot.lane.b32.xlu0 %v993, 32
        %v5162 = vpop.permute.xlu0 %5161
        %5163 = vrot.lane.b32.xlu0 %v994, 32
        %v5164 = vpop.permute.xlu0 %5163
        %5165 = vrot.lane.b32.xlu0 %v995, 32
        %v5166 = vpop.permute.xlu0 %5165
        %5167 = vrot.lane.b32.xlu0 %v996, 32
        %v5168 = vpop.permute.xlu0 %5167
        %5169 = vrot.lane.b32.xlu0 %v997, 32
        %v5170 = vpop.permute.xlu0 %5169
        %5171 = vrot.lane.b32.xlu0 %v998, 32
        %v5172 = vpop.permute.xlu0 %5171
        %5173 = vrot.lane.b32.xlu0 %v999, 32
        %v5174 = vpop.permute.xlu0 %5173
        %5175 = vrot.lane.b32.xlu0 %v1000, 32
        %v5176 = vpop.permute.xlu0 %5175
        %5177 = vrot.lane.b32.xlu0 %v1001, 32
        %v5178 = vpop.permute.xlu0 %5177
        %5179 = vrot.lane.b32.xlu0 %v1002, 32
        %v5180 = vpop.permute.xlu0 %5179
        %5181 = vrot.lane.b32.xlu0 %v1003, 32
        %v5182 = vpop.permute.xlu0 %5181
        %5183 = vrot.lane.b32.xlu0 %v1004, 32
        %v5184 = vpop.permute.xlu0 %5183
        %5185 = vrot.lane.b32.xlu0 %v1005, 32
        %v5186 = vpop.permute.xlu0 %5185
        %5187 = vrot.lane.b32.xlu0 %v1006, 32
        %v5188 = vpop.permute.xlu0 %5187
        %v5205 = vsel %vm371, %v5158, 0.0
        %5206 = vadd.xlane.f32.xlu0 %v5205
        %v5207 = vpop.xlane.xlu0 %5206
        %v5208 = vsel %vm371, %v5160, 0.0
        %5209 = vadd.xlane.f32.xlu0 %v5208
        %v5210 = vpop.xlane.xlu0 %5209
        %v5211 = vsel %vm371, %v5162, 0.0
        %5212 = vadd.xlane.f32.xlu0 %v5211
        %v5213 = vpop.xlane.xlu0 %5212
        %v5214 = vsel %vm371, %v5164, 0.0
        %5215 = vadd.xlane.f32.xlu0 %v5214
        %v5216 = vpop.xlane.xlu0 %5215
        %v5217 = vsel %vm371, %v5166, 0.0
        %5218 = vadd.xlane.f32.xlu0 %v5217
        %v5219 = vpop.xlane.xlu0 %5218
        %v5220 = vsel %vm371, %v5168, 0.0
        %5221 = vadd.xlane.f32.xlu0 %v5220
        %v5222 = vpop.xlane.xlu0 %5221
        %v5223 = vsel %vm371, %v5170, 0.0
        %5224 = vadd.xlane.f32.xlu0 %v5223
        %v5225 = vpop.xlane.xlu0 %5224
        %v5226 = vsel %vm371, %v5172, 0.0
        %5227 = vadd.xlane.f32.xlu0 %v5226
        %v5228 = vpop.xlane.xlu0 %5227
        %v5229 = vsel %vm371, %v5174, 0.0
        %5230 = vadd.xlane.f32.xlu0 %v5229
        %v5231 = vpop.xlane.xlu0 %5230
        %v5232 = vsel %vm371, %v5176, 0.0
        %5233 = vadd.xlane.f32.xlu0 %v5232
        %v5234 = vpop.xlane.xlu0 %5233
        %v5235 = vsel %vm371, %v5178, 0.0
        %5236 = vadd.xlane.f32.xlu0 %v5235
        %v5237 = vpop.xlane.xlu0 %5236
        %v5238 = vsel %vm371, %v5180, 0.0
        %5239 = vadd.xlane.f32.xlu0 %v5238
        %v5240 = vpop.xlane.xlu0 %5239
        %v5241 = vsel %vm371, %v5182, 0.0
        %5242 = vadd.xlane.f32.xlu0 %v5241
        %v5243 = vpop.xlane.xlu0 %5242
        %v5244 = vsel %vm371, %v5184, 0.0
        %5245 = vadd.xlane.f32.xlu0 %v5244
        %v5246 = vpop.xlane.xlu0 %5245
        %v5247 = vsel %vm371, %v5186, 0.0
        %5248 = vadd.xlane.f32.xlu0 %v5247
        %v5249 = vpop.xlane.xlu0 %5248
        %v5250 = vsel %vm371, %v5188, 0.0
        %5251 = vadd.xlane.f32.xlu0 %v5250
        %v5252 = vpop.xlane.xlu0 %5251
        %v5253 = vsel %vm1407, %v4919, %v5015
        %v5254 = vsel %vm1407, %v4922, %v5018
        %v5255 = vsel %vm1407, %v4925, %v5021
        %v5256 = vsel %vm1407, %v4928, %v5024
        %v5257 = vsel %vm1407, %v4931, %v5027
        %v5258 = vsel %vm1407, %v4934, %v5030
        %v5259 = vsel %vm1407, %v4937, %v5033
        %v5260 = vsel %vm1407, %v4940, %v5036
        %v5261 = vsel %vm1407, %v4943, %v5039
        %v5262 = vsel %vm1407, %v4946, %v5042
        %v5263 = vsel %vm1407, %v4949, %v5045
        %v5264 = vsel %vm1407, %v4952, %v5048
        %v5265 = vsel %vm1407, %v4955, %v5051
        %v5266 = vsel %vm1407, %v4958, %v5054
        %v5267 = vsel %vm1407, %v4961, %v5057
        %v5268 = vsel %vm1407, %v4964, %v5060
        %v5269 = vsel %vm1424, %v5253, %v5111
        %v5270 = vsel %vm1424, %v5254, %v5114
        %v5271 = vsel %vm1424, %v5255, %v5117
        %v5272 = vsel %vm1424, %v5256, %v5120
        %v5273 = vsel %vm1424, %v5257, %v5123
        %v5274 = vsel %vm1424, %v5258, %v5126
        %v5275 = vsel %vm1424, %v5259, %v5129
        %v5276 = vsel %vm1424, %v5260, %v5132
        %v5277 = vsel %vm1424, %v5261, %v5135
        %v5278 = vsel %vm1424, %v5262, %v5138
        %v5279 = vsel %vm1424, %v5263, %v5141
        %v5280 = vsel %vm1424, %v5264, %v5144
        %v5281 = vsel %vm1424, %v5265, %v5147
        %v5282 = vsel %vm1424, %v5266, %v5150
        %v5283 = vsel %vm1424, %v5267, %v5153
        %v5284 = vsel %vm1424, %v5268, %v5156
        %v5285 = vsel %vm1441, %v5269, %v5207
        %v5286 = vsel %vm1441, %v5270, %v5210
        %v5287 = vsel %vm1441, %v5271, %v5213
        %v5288 = vsel %vm1441, %v5272, %v5216
        %v5289 = vsel %vm1441, %v5273, %v5219
        %v5290 = vsel %vm1441, %v5274, %v5222
        %v5291 = vsel %vm1441, %v5275, %v5225
        %v5292 = vsel %vm1441, %v5276, %v5228
        %v5293 = vsel %vm1441, %v5277, %v5231
        %v5294 = vsel %vm1441, %v5278, %v5234
        %v5295 = vsel %vm1441, %v5279, %v5237
        %v5296 = vsel %vm1441, %v5280, %v5240
        %v5297 = vsel %vm1441, %v5281, %v5243
        %v5298 = vsel %vm1441, %v5282, %v5246
        %v5299 = vsel %vm1441, %v5283, %v5249
        %v5300 = vsel %vm1441, %v5284, %v5252
        %v5301 = vsel %vm1458, %v5285, -inf
        %5302 = vmax.xlane.f32.xlu0 %v5301
        %v5303 = vpop.xlane.xlu0 %5302
        %v5304 = vsel %vm1458, %v5286, -inf
        %5305 = vmax.xlane.f32.xlu0 %v5304
        %v5306 = vpop.xlane.xlu0 %5305
        %v5307 = vsel %vm1458, %v5287, -inf
        %5308 = vmax.xlane.f32.xlu0 %v5307
        %v5309 = vpop.xlane.xlu0 %5308
        %v5310 = vsel %vm1458, %v5288, -inf
        %5311 = vmax.xlane.f32.xlu0 %v5310
        %v5312 = vpop.xlane.xlu0 %5311
        %v5313 = vsel %vm1458, %v5289, -inf
        %5314 = vmax.xlane.f32.xlu0 %v5313
        %v5315 = vpop.xlane.xlu0 %5314
        %v5316 = vsel %vm1458, %v5290, -inf
        %5317 = vmax.xlane.f32.xlu0 %v5316
        %v5318 = vpop.xlane.xlu0 %5317
        %v5319 = vsel %vm1458, %v5291, -inf
        %5320 = vmax.xlane.f32.xlu0 %v5319
        %v5321 = vpop.xlane.xlu0 %5320
        %v5322 = vsel %vm1458, %v5292, -inf
        %5323 = vmax.xlane.f32.xlu0 %v5322
        %v5324 = vpop.xlane.xlu0 %5323
        %v5325 = vsel %vm1458, %v5293, -inf
        %5326 = vmax.xlane.f32.xlu0 %v5325
        %v5327 = vpop.xlane.xlu0 %5326
        %v5328 = vsel %vm1458, %v5294, -inf
        %5329 = vmax.xlane.f32.xlu0 %v5328
        %v5330 = vpop.xlane.xlu0 %5329
        %v5331 = vsel %vm1458, %v5295, -inf
        %5332 = vmax.xlane.f32.xlu0 %v5331
        %v5333 = vpop.xlane.xlu0 %5332
        %v5334 = vsel %vm1458, %v5296, -inf
        %5335 = vmax.xlane.f32.xlu0 %v5334
        %v5336 = vpop.xlane.xlu0 %5335
        %v5337 = vsel %vm1458, %v5297, -inf
        %5338 = vmax.xlane.f32.xlu0 %v5337
        %v5339 = vpop.xlane.xlu0 %5338
        %v5340 = vsel %vm1458, %v5298, -inf
        %5341 = vmax.xlane.f32.xlu0 %v5340
        %v5342 = vpop.xlane.xlu0 %5341
        %v5343 = vsel %vm1458, %v5299, -inf
        %5344 = vmax.xlane.f32.xlu0 %v5343
        %v5345 = vpop.xlane.xlu0 %5344
        %v5346 = vsel %vm1458, %v5300, -inf
        %5347 = vmax.xlane.f32.xlu0 %v5346
        %v5348 = vpop.xlane.xlu0 %5347
        %v5349 = vsub.f32 %v5285, %v5303
        %v5350 = vsub.f32 %v5286, %v5306
        %v5351 = vsub.f32 %v5287, %v5309
        %v5352 = vsub.f32 %v5288, %v5312
        %v5353 = vsub.f32 %v5289, %v5315
        %v5354 = vsub.f32 %v5290, %v5318
        %v5355 = vsub.f32 %v5291, %v5321
        %v5356 = vsub.f32 %v5292, %v5324
        %v5357 = vsub.f32 %v5293, %v5327
        %v5358 = vsub.f32 %v5294, %v5330
        %v5359 = vsub.f32 %v5295, %v5333
        %v5360 = vsub.f32 %v5296, %v5336
        %v5361 = vsub.f32 %v5297, %v5339
        %v5362 = vsub.f32 %v5298, %v5342
        %v5363 = vsub.f32 %v5299, %v5345
        %v5364 = vsub.f32 %v5300, %v5348
        %v5365 = vmul.f32 %v5349, 1.442695
        %v5366 = vpow.pop %v5365
        %v5367 = vmul.f32 %v5350, 1.442695
        %v5368 = vpow.pop %v5367
        %v5369 = vmul.f32 %v5351, 1.442695
        %v5370 = vpow.pop %v5369
        %v5371 = vmul.f32 %v5352, 1.442695
        %v5372 = vpow.pop %v5371
        %v5373 = vmul.f32 %v5353, 1.442695
        %v5374 = vpow.pop %v5373
        %v5375 = vmul.f32 %v5354, 1.442695
        %v5376 = vpow.pop %v5375
        %v5377 = vmul.f32 %v5355, 1.442695
        %v5378 = vpow.pop %v5377
        %v5379 = vmul.f32 %v5356, 1.442695
        %v5380 = vpow.pop %v5379
        %v5381 = vmul.f32 %v5357, 1.442695
        %v5382 = vpow.pop %v5381
        %v5383 = vmul.f32 %v5358, 1.442695
        %v5384 = vpow.pop %v5383
        %v5385 = vmul.f32 %v5359, 1.442695
        %v5386 = vpow.pop %v5385
        %v5387 = vmul.f32 %v5360, 1.442695
        %v5388 = vpow.pop %v5387
        %v5389 = vmul.f32 %v5361, 1.442695
        %v5390 = vpow.pop %v5389
        %v5391 = vmul.f32 %v5362, 1.442695
        %v5392 = vpow.pop %v5391
        %v5393 = vmul.f32 %v5363, 1.442695
        %v5394 = vpow.pop %v5393
        %v5395 = vmul.f32 %v5364, 1.442695
        %v5396 = vpow.pop %v5395
        %v5397 = vsel %vm1458, %v5366, 0.0
        %5398 = vadd.xlane.f32.xlu0 %v5397
        %v5399 = vpop.xlane.xlu0 %5398
        %v5400 = vsel %vm1458, %v5368, 0.0
        %5401 = vadd.xlane.f32.xlu0 %v5400
        %v5402 = vpop.xlane.xlu0 %5401
        %v5403 = vsel %vm1458, %v5370, 0.0
        %5404 = vadd.xlane.f32.xlu0 %v5403
        %v5405 = vpop.xlane.xlu0 %5404
        %v5406 = vsel %vm1458, %v5372, 0.0
        %5407 = vadd.xlane.f32.xlu0 %v5406
        %v5408 = vpop.xlane.xlu0 %5407
        %v5409 = vsel %vm1458, %v5374, 0.0
        %5410 = vadd.xlane.f32.xlu0 %v5409
        %v5411 = vpop.xlane.xlu0 %5410
        %v5412 = vsel %vm1458, %v5376, 0.0
        %5413 = vadd.xlane.f32.xlu0 %v5412
        %v5414 = vpop.xlane.xlu0 %5413
        %v5415 = vsel %vm1458, %v5378, 0.0
        %5416 = vadd.xlane.f32.xlu0 %v5415
        %v5417 = vpop.xlane.xlu0 %5416
        %v5418 = vsel %vm1458, %v5380, 0.0
        %5419 = vadd.xlane.f32.xlu0 %v5418
        %v5420 = vpop.xlane.xlu0 %5419
        %v5421 = vsel %vm1458, %v5382, 0.0
        %5422 = vadd.xlane.f32.xlu0 %v5421
        %v5423 = vpop.xlane.xlu0 %5422
        %v5424 = vsel %vm1458, %v5384, 0.0
        %5425 = vadd.xlane.f32.xlu0 %v5424
        %v5426 = vpop.xlane.xlu0 %5425
        %v5427 = vsel %vm1458, %v5386, 0.0
        %5428 = vadd.xlane.f32.xlu0 %v5427
        %v5429 = vpop.xlane.xlu0 %5428
        %v5430 = vsel %vm1458, %v5388, 0.0
        %5431 = vadd.xlane.f32.xlu0 %v5430
        %v5432 = vpop.xlane.xlu0 %5431
        %v5433 = vsel %vm1458, %v5390, 0.0
        %5434 = vadd.xlane.f32.xlu0 %v5433
        %v5435 = vpop.xlane.xlu0 %5434
        %v5436 = vsel %vm1458, %v5392, 0.0
        %5437 = vadd.xlane.f32.xlu0 %v5436
        %v5438 = vpop.xlane.xlu0 %5437
        %v5439 = vsel %vm1458, %v5394, 0.0
        %5440 = vadd.xlane.f32.xlu0 %v5439
        %v5441 = vpop.xlane.xlu0 %5440
        %v5442 = vsel %vm1458, %v5396, 0.0
        %5443 = vadd.xlane.f32.xlu0 %v5442
        %v5444 = vpop.xlane.xlu0 %5443
        %v5445 = vrcp.pop %v5399
        %v5446 = vmul.f32 1.0, %v5445
        %v5447 = vrcp.pop %v5402
        %v5448 = vmul.f32 1.0, %v5447
        %v5449 = vrcp.pop %v5405
        %v5450 = vmul.f32 1.0, %v5449
        %v5451 = vrcp.pop %v5408
        %v5452 = vmul.f32 1.0, %v5451
        %v5453 = vrcp.pop %v5411
        %v5454 = vmul.f32 1.0, %v5453
        %v5455 = vrcp.pop %v5414
        %v5456 = vmul.f32 1.0, %v5455
        %v5457 = vrcp.pop %v5417
        %v5458 = vmul.f32 1.0, %v5457
        %v5459 = vrcp.pop %v5420
        %v5460 = vmul.f32 1.0, %v5459
        %v5461 = vrcp.pop %v5423
        %v5462 = vmul.f32 1.0, %v5461
        %v5463 = vrcp.pop %v5426
        %v5464 = vmul.f32 1.0, %v5463
        %v5465 = vrcp.pop %v5429
        %v5466 = vmul.f32 1.0, %v5465
        %v5467 = vrcp.pop %v5432
        %v5468 = vmul.f32 1.0, %v5467
        %v5469 = vrcp.pop %v5435
        %v5470 = vmul.f32 1.0, %v5469
        %v5471 = vrcp.pop %v5438
        %v5472 = vmul.f32 1.0, %v5471
        %v5473 = vrcp.pop %v5441
        %v5474 = vmul.f32 1.0, %v5473
        %v5475 = vrcp.pop %v5444
        %v5476 = vmul.f32 1.0, %v5475
        %5478 = vset.pattern.permute.xlu0 0
        %5479 = vperm.xlu0 %5478, %v5366
        %v5480 = vpop.permute.xlu0 %5479
        %5483 = vset.pattern.permute.xlu0 0
        %5484 = vperm.xlu0 %5483, %v5368
        %v5485 = vpop.permute.xlu0 %5484
        %5488 = vset.pattern.permute.xlu0 0
        %5489 = vperm.xlu0 %5488, %v5370
        %v5490 = vpop.permute.xlu0 %5489
        %5493 = vset.pattern.permute.xlu0 0
        %5494 = vperm.xlu0 %5493, %v5372
        %v5495 = vpop.permute.xlu0 %5494
        %5498 = vset.pattern.permute.xlu0 0
        %5499 = vperm.xlu0 %5498, %v5374
        %v5500 = vpop.permute.xlu0 %5499
        %5503 = vset.pattern.permute.xlu0 0
        %5504 = vperm.xlu0 %5503, %v5376
        %v5505 = vpop.permute.xlu0 %5504
        %5508 = vset.pattern.permute.xlu0 0
        %5509 = vperm.xlu0 %5508, %v5378
        %v5510 = vpop.permute.xlu0 %5509
        %5513 = vset.pattern.permute.xlu0 0
        %5514 = vperm.xlu0 %5513, %v5380
        %v5515 = vpop.permute.xlu0 %5514
        %5518 = vset.pattern.permute.xlu0 0
        %5519 = vperm.xlu0 %5518, %v5382
        %v5520 = vpop.permute.xlu0 %5519
        %5523 = vset.pattern.permute.xlu0 0
        %5524 = vperm.xlu0 %5523, %v5384
        %v5525 = vpop.permute.xlu0 %5524
        %5528 = vset.pattern.permute.xlu0 0
        %5529 = vperm.xlu0 %5528, %v5386
        %v5530 = vpop.permute.xlu0 %5529
        %5533 = vset.pattern.permute.xlu0 0
        %5534 = vperm.xlu0 %5533, %v5388
        %v5535 = vpop.permute.xlu0 %5534
        %5538 = vset.pattern.permute.xlu0 0
        %5539 = vperm.xlu0 %5538, %v5390
        %v5540 = vpop.permute.xlu0 %5539
        %5543 = vset.pattern.permute.xlu0 0
        %5544 = vperm.xlu0 %5543, %v5392
        %v5545 = vpop.permute.xlu0 %5544
        %5548 = vset.pattern.permute.xlu0 0
        %5549 = vperm.xlu0 %5548, %v5394
        %v5550 = vpop.permute.xlu0 %5549
        %5553 = vset.pattern.permute.xlu0 0
        %5554 = vperm.xlu0 %5553, %v5396
        %v5555 = vpop.permute.xlu0 %5554
        %v5557 = vmul.f32 %v5480, %v913
        %v5558 = vmul.f32 %v5485, %v918
        %v5559 = vmul.f32 %v5490, %v923
        %v5560 = vmul.f32 %v5495, %v928
        %v5561 = vmul.f32 %v5500, %v933
        %v5562 = vmul.f32 %v5505, %v938
        %v5563 = vmul.f32 %v5510, %v943
        %v5564 = vmul.f32 %v5515, %v948
        %v5565 = vmul.f32 %v5520, %v953
        %v5566 = vmul.f32 %v5525, %v958
        %v5567 = vmul.f32 %v5530, %v963
        %v5568 = vmul.f32 %v5535, %v968
        %v5569 = vmul.f32 %v5540, %v973
        %v5570 = vmul.f32 %v5545, %v978
        %v5571 = vmul.f32 %v5550, %v983
        %v5572 = vmul.f32 %v5555, %v988
        %5573 = vset.pattern.permute.xlu0 1
        %5574 = vperm.xlu0 %5573, %v5366
        %v5575 = vpop.permute.xlu0 %5574
        %5577 = vset.pattern.permute.xlu0 1
        %5578 = vperm.xlu0 %5577, %v5368
        %v5579 = vpop.permute.xlu0 %5578
        %5581 = vset.pattern.permute.xlu0 1
        %5582 = vperm.xlu0 %5581, %v5370
        %v5583 = vpop.permute.xlu0 %5582
        %5585 = vset.pattern.permute.xlu0 1
        %5586 = vperm.xlu0 %5585, %v5372
        %v5587 = vpop.permute.xlu0 %5586
        %5589 = vset.pattern.permute.xlu0 1
        %5590 = vperm.xlu0 %5589, %v5374
        %v5591 = vpop.permute.xlu0 %5590
        %5593 = vset.pattern.permute.xlu0 1
        %5594 = vperm.xlu0 %5593, %v5376
        %v5595 = vpop.permute.xlu0 %5594
        %5597 = vset.pattern.permute.xlu0 1
        %5598 = vperm.xlu0 %5597, %v5378
        %v5599 = vpop.permute.xlu0 %5598
        %5601 = vset.pattern.permute.xlu0 1
        %5602 = vperm.xlu0 %5601, %v5380
        %v5603 = vpop.permute.xlu0 %5602
        %5605 = vset.pattern.permute.xlu0 1
        %5606 = vperm.xlu0 %5605, %v5382
        %v5607 = vpop.permute.xlu0 %5606
        %5609 = vset.pattern.permute.xlu0 1
        %5610 = vperm.xlu0 %5609, %v5384
        %v5611 = vpop.permute.xlu0 %5610
        %5613 = vset.pattern.permute.xlu0 1
        %5614 = vperm.xlu0 %5613, %v5386
        %v5615 = vpop.permute.xlu0 %5614
        %5617 = vset.pattern.permute.xlu0 1
        %5618 = vperm.xlu0 %5617, %v5388
        %v5619 = vpop.permute.xlu0 %5618
        %5621 = vset.pattern.permute.xlu0 1
        %5622 = vperm.xlu0 %5621, %v5390
        %v5623 = vpop.permute.xlu0 %5622
        %5625 = vset.pattern.permute.xlu0 1
        %5626 = vperm.xlu0 %5625, %v5392
        %v5627 = vpop.permute.xlu0 %5626
        %5629 = vset.pattern.permute.xlu0 1
        %5630 = vperm.xlu0 %5629, %v5394
        %v5631 = vpop.permute.xlu0 %5630
        %5633 = vset.pattern.permute.xlu0 1
        %5634 = vperm.xlu0 %5633, %v5396
        %v5635 = vpop.permute.xlu0 %5634
        %v5637 = vmul.f32 %v5575, %v913
        %v5638 = vmul.f32 %v5579, %v918
        %v5639 = vmul.f32 %v5583, %v923
        %v5640 = vmul.f32 %v5587, %v928
        %v5641 = vmul.f32 %v5591, %v933
        %v5642 = vmul.f32 %v5595, %v938
        %v5643 = vmul.f32 %v5599, %v943
        %v5644 = vmul.f32 %v5603, %v948
        %v5645 = vmul.f32 %v5607, %v953
        %v5646 = vmul.f32 %v5611, %v958
        %v5647 = vmul.f32 %v5615, %v963
        %v5648 = vmul.f32 %v5619, %v968
        %v5649 = vmul.f32 %v5623, %v973
        %v5650 = vmul.f32 %v5627, %v978
        %v5651 = vmul.f32 %v5631, %v983
        %v5652 = vmul.f32 %v5635, %v988
        %5669 = vrot.lane.b32.xlu0 %v5637, 96
        %v5670 = vpop.permute.xlu0 %5669
        %5671 = vrot.lane.b32.xlu0 %v5638, 96
        %v5672 = vpop.permute.xlu0 %5671
        %5673 = vrot.lane.b32.xlu0 %v5639, 96
        %v5674 = vpop.permute.xlu0 %5673
        %5675 = vrot.lane.b32.xlu0 %v5640, 96
        %v5676 = vpop.permute.xlu0 %5675
        %5677 = vrot.lane.b32.xlu0 %v5641, 96
        %v5678 = vpop.permute.xlu0 %5677
        %5679 = vrot.lane.b32.xlu0 %v5642, 96
        %v5680 = vpop.permute.xlu0 %5679
        %5681 = vrot.lane.b32.xlu0 %v5643, 96
        %v5682 = vpop.permute.xlu0 %5681
        %5683 = vrot.lane.b32.xlu0 %v5644, 96
        %v5684 = vpop.permute.xlu0 %5683
        %5685 = vrot.lane.b32.xlu0 %v5645, 96
        %v5686 = vpop.permute.xlu0 %5685
        %5687 = vrot.lane.b32.xlu0 %v5646, 96
        %v5688 = vpop.permute.xlu0 %5687
        %5689 = vrot.lane.b32.xlu0 %v5647, 96
        %v5690 = vpop.permute.xlu0 %5689
        %5691 = vrot.lane.b32.xlu0 %v5648, 96
        %v5692 = vpop.permute.xlu0 %5691
        %5693 = vrot.lane.b32.xlu0 %v5649, 96
        %v5694 = vpop.permute.xlu0 %5693
        %5695 = vrot.lane.b32.xlu0 %v5650, 96
        %v5696 = vpop.permute.xlu0 %5695
        %5697 = vrot.lane.b32.xlu0 %v5651, 96
        %v5698 = vpop.permute.xlu0 %5697
        %5699 = vrot.lane.b32.xlu0 %v5652, 96
        %v5700 = vpop.permute.xlu0 %5699
        %v5717 = vadd.f32 %v5557, %v5670
        %v5718 = vadd.f32 %v5558, %v5672
        %v5719 = vadd.f32 %v5559, %v5674
        %v5720 = vadd.f32 %v5560, %v5676
        %v5721 = vadd.f32 %v5561, %v5678
        %v5722 = vadd.f32 %v5562, %v5680
        %v5723 = vadd.f32 %v5563, %v5682
        %v5724 = vadd.f32 %v5564, %v5684
        %v5725 = vadd.f32 %v5565, %v5686
        %v5726 = vadd.f32 %v5566, %v5688
        %v5727 = vadd.f32 %v5567, %v5690
        %v5728 = vadd.f32 %v5568, %v5692
        %v5729 = vadd.f32 %v5569, %v5694
        %v5730 = vadd.f32 %v5570, %v5696
        %v5731 = vadd.f32 %v5571, %v5698
        %v5732 = vadd.f32 %v5572, %v5700
        %5733 = vset.pattern.permute.xlu0 2
        %5734 = vperm.xlu0 %5733, %v5366
        %v5735 = vpop.permute.xlu0 %5734
        %5737 = vset.pattern.permute.xlu0 2
        %5738 = vperm.xlu0 %5737, %v5368
        %v5739 = vpop.permute.xlu0 %5738
        %5741 = vset.pattern.permute.xlu0 2
        %5742 = vperm.xlu0 %5741, %v5370
        %v5743 = vpop.permute.xlu0 %5742
        %5745 = vset.pattern.permute.xlu0 2
        %5746 = vperm.xlu0 %5745, %v5372
        %v5747 = vpop.permute.xlu0 %5746
        %5749 = vset.pattern.permute.xlu0 2
        %5750 = vperm.xlu0 %5749, %v5374
        %v5751 = vpop.permute.xlu0 %5750
        %5753 = vset.pattern.permute.xlu0 2
        %5754 = vperm.xlu0 %5753, %v5376
        %v5755 = vpop.permute.xlu0 %5754
        %5757 = vset.pattern.permute.xlu0 2
        %5758 = vperm.xlu0 %5757, %v5378
        %v5759 = vpop.permute.xlu0 %5758
        %5761 = vset.pattern.permute.xlu0 2
        %5762 = vperm.xlu0 %5761, %v5380
        %v5763 = vpop.permute.xlu0 %5762
        %5765 = vset.pattern.permute.xlu0 2
        %5766 = vperm.xlu0 %5765, %v5382
        %v5767 = vpop.permute.xlu0 %5766
        %5769 = vset.pattern.permute.xlu0 2
        %5770 = vperm.xlu0 %5769, %v5384
        %v5771 = vpop.permute.xlu0 %5770
        %5773 = vset.pattern.permute.xlu0 2
        %5774 = vperm.xlu0 %5773, %v5386
        %v5775 = vpop.permute.xlu0 %5774
        %5777 = vset.pattern.permute.xlu0 2
        %5778 = vperm.xlu0 %5777, %v5388
        %v5779 = vpop.permute.xlu0 %5778
        %5781 = vset.pattern.permute.xlu0 2
        %5782 = vperm.xlu0 %5781, %v5390
        %v5783 = vpop.permute.xlu0 %5782
        %5785 = vset.pattern.permute.xlu0 2
        %5786 = vperm.xlu0 %5785, %v5392
        %v5787 = vpop.permute.xlu0 %5786
        %5789 = vset.pattern.permute.xlu0 2
        %5790 = vperm.xlu0 %5789, %v5394
        %v5791 = vpop.permute.xlu0 %5790
        %5793 = vset.pattern.permute.xlu0 2
        %5794 = vperm.xlu0 %5793, %v5396
        %v5795 = vpop.permute.xlu0 %5794
        %v5797 = vmul.f32 %v5735, %v913
        %v5798 = vmul.f32 %v5739, %v918
        %v5799 = vmul.f32 %v5743, %v923
        %v5800 = vmul.f32 %v5747, %v928
        %v5801 = vmul.f32 %v5751, %v933
        %v5802 = vmul.f32 %v5755, %v938
        %v5803 = vmul.f32 %v5759, %v943
        %v5804 = vmul.f32 %v5763, %v948
        %v5805 = vmul.f32 %v5767, %v953
        %v5806 = vmul.f32 %v5771, %v958
        %v5807 = vmul.f32 %v5775, %v963
        %v5808 = vmul.f32 %v5779, %v968
        %v5809 = vmul.f32 %v5783, %v973
        %v5810 = vmul.f32 %v5787, %v978
        %v5811 = vmul.f32 %v5791, %v983
        %v5812 = vmul.f32 %v5795, %v988
        %5829 = vrot.lane.b32.xlu0 %v5797, 64
        %v5830 = vpop.permute.xlu0 %5829
        %5831 = vrot.lane.b32.xlu0 %v5798, 64
        %v5832 = vpop.permute.xlu0 %5831
        %5833 = vrot.lane.b32.xlu0 %v5799, 64
        %v5834 = vpop.permute.xlu0 %5833
        %5835 = vrot.lane.b32.xlu0 %v5800, 64
        %v5836 = vpop.permute.xlu0 %5835
        %5837 = vrot.lane.b32.xlu0 %v5801, 64
        %v5838 = vpop.permute.xlu0 %5837
        %5839 = vrot.lane.b32.xlu0 %v5802, 64
        %v5840 = vpop.permute.xlu0 %5839
        %5841 = vrot.lane.b32.xlu0 %v5803, 64
        %v5842 = vpop.permute.xlu0 %5841
        %5843 = vrot.lane.b32.xlu0 %v5804, 64
        %v5844 = vpop.permute.xlu0 %5843
        %5845 = vrot.lane.b32.xlu0 %v5805, 64
        %v5846 = vpop.permute.xlu0 %5845
        %5847 = vrot.lane.b32.xlu0 %v5806, 64
        %v5848 = vpop.permute.xlu0 %5847
        %5849 = vrot.lane.b32.xlu0 %v5807, 64
        %v5850 = vpop.permute.xlu0 %5849
        %5851 = vrot.lane.b32.xlu0 %v5808, 64
        %v5852 = vpop.permute.xlu0 %5851
        %5853 = vrot.lane.b32.xlu0 %v5809, 64
        %v5854 = vpop.permute.xlu0 %5853
        %5855 = vrot.lane.b32.xlu0 %v5810, 64
        %v5856 = vpop.permute.xlu0 %5855
        %5857 = vrot.lane.b32.xlu0 %v5811, 64
        %v5858 = vpop.permute.xlu0 %5857
        %5859 = vrot.lane.b32.xlu0 %v5812, 64
        %v5860 = vpop.permute.xlu0 %5859
        %v5877 = vadd.f32 %v5717, %v5830
        %v5878 = vadd.f32 %v5718, %v5832
        %v5879 = vadd.f32 %v5719, %v5834
        %v5880 = vadd.f32 %v5720, %v5836
        %v5881 = vadd.f32 %v5721, %v5838
        %v5882 = vadd.f32 %v5722, %v5840
        %v5883 = vadd.f32 %v5723, %v5842
        %v5884 = vadd.f32 %v5724, %v5844
        %v5885 = vadd.f32 %v5725, %v5846
        %v5886 = vadd.f32 %v5726, %v5848
        %v5887 = vadd.f32 %v5727, %v5850
        %v5888 = vadd.f32 %v5728, %v5852
        %v5889 = vadd.f32 %v5729, %v5854
        %v5890 = vadd.f32 %v5730, %v5856
        %v5891 = vadd.f32 %v5731, %v5858
        %v5892 = vadd.f32 %v5732, %v5860
        %5893 = vset.pattern.permute.xlu0 3
        %5894 = vperm.xlu0 %5893, %v5366
        %v5895 = vpop.permute.xlu0 %5894
        %5897 = vset.pattern.permute.xlu0 3
        %5898 = vperm.xlu0 %5897, %v5368
        %v5899 = vpop.permute.xlu0 %5898
        %5901 = vset.pattern.permute.xlu0 3
        %5902 = vperm.xlu0 %5901, %v5370
        %v5903 = vpop.permute.xlu0 %5902
        %5905 = vset.pattern.permute.xlu0 3
        %5906 = vperm.xlu0 %5905, %v5372
        %v5907 = vpop.permute.xlu0 %5906
        %5909 = vset.pattern.permute.xlu0 3
        %5910 = vperm.xlu0 %5909, %v5374
        %v5911 = vpop.permute.xlu0 %5910
        %5913 = vset.pattern.permute.xlu0 3
        %5914 = vperm.xlu0 %5913, %v5376
        %v5915 = vpop.permute.xlu0 %5914
        %5917 = vset.pattern.permute.xlu0 3
        %5918 = vperm.xlu0 %5917, %v5378
        %v5919 = vpop.permute.xlu0 %5918
        %5921 = vset.pattern.permute.xlu0 3
        %5922 = vperm.xlu0 %5921, %v5380
        %v5923 = vpop.permute.xlu0 %5922
        %5925 = vset.pattern.permute.xlu0 3
        %5926 = vperm.xlu0 %5925, %v5382
        %v5927 = vpop.permute.xlu0 %5926
        %5929 = vset.pattern.permute.xlu0 3
        %5930 = vperm.xlu0 %5929, %v5384
        %v5931 = vpop.permute.xlu0 %5930
        %5933 = vset.pattern.permute.xlu0 3
        %5934 = vperm.xlu0 %5933, %v5386
        %v5935 = vpop.permute.xlu0 %5934
        %5937 = vset.pattern.permute.xlu0 3
        %5938 = vperm.xlu0 %5937, %v5388
        %v5939 = vpop.permute.xlu0 %5938
        %5941 = vset.pattern.permute.xlu0 3
        %5942 = vperm.xlu0 %5941, %v5390
        %v5943 = vpop.permute.xlu0 %5942
        %5945 = vset.pattern.permute.xlu0 3
        %5946 = vperm.xlu0 %5945, %v5392
        %v5947 = vpop.permute.xlu0 %5946
        %5949 = vset.pattern.permute.xlu0 3
        %5950 = vperm.xlu0 %5949, %v5394
        %v5951 = vpop.permute.xlu0 %5950
        %5953 = vset.pattern.permute.xlu0 3
        %5954 = vperm.xlu0 %5953, %v5396
        %v5955 = vpop.permute.xlu0 %5954
        %v5957 = vmul.f32 %v5895, %v913
        %v5958 = vmul.f32 %v5899, %v918
        %v5959 = vmul.f32 %v5903, %v923
        %v5960 = vmul.f32 %v5907, %v928
        %v5961 = vmul.f32 %v5911, %v933
        %v5962 = vmul.f32 %v5915, %v938
        %v5963 = vmul.f32 %v5919, %v943
        %v5964 = vmul.f32 %v5923, %v948
        %v5965 = vmul.f32 %v5927, %v953
        %v5966 = vmul.f32 %v5931, %v958
        %v5967 = vmul.f32 %v5935, %v963
        %v5968 = vmul.f32 %v5939, %v968
        %v5969 = vmul.f32 %v5943, %v973
        %v5970 = vmul.f32 %v5947, %v978
        %v5971 = vmul.f32 %v5951, %v983
        %v5972 = vmul.f32 %v5955, %v988
        %5989 = vrot.lane.b32.xlu0 %v5957, 32
        %v5990 = vpop.permute.xlu0 %5989
        %5991 = vrot.lane.b32.xlu0 %v5958, 32
        %v5992 = vpop.permute.xlu0 %5991
        %5993 = vrot.lane.b32.xlu0 %v5959, 32
        %v5994 = vpop.permute.xlu0 %5993
        %5995 = vrot.lane.b32.xlu0 %v5960, 32
        %v5996 = vpop.permute.xlu0 %5995
        %5997 = vrot.lane.b32.xlu0 %v5961, 32
        %v5998 = vpop.permute.xlu0 %5997
        %5999 = vrot.lane.b32.xlu0 %v5962, 32
        %v6000 = vpop.permute.xlu0 %5999
        %6001 = vrot.lane.b32.xlu0 %v5963, 32
        %v6002 = vpop.permute.xlu0 %6001
        %6003 = vrot.lane.b32.xlu0 %v5964, 32
        %v6004 = vpop.permute.xlu0 %6003
        %6005 = vrot.lane.b32.xlu0 %v5965, 32
        %v6006 = vpop.permute.xlu0 %6005
        %6007 = vrot.lane.b32.xlu0 %v5966, 32
        %v6008 = vpop.permute.xlu0 %6007
        %6009 = vrot.lane.b32.xlu0 %v5967, 32
        %v6010 = vpop.permute.xlu0 %6009
        %6011 = vrot.lane.b32.xlu0 %v5968, 32
        %v6012 = vpop.permute.xlu0 %6011
        %6013 = vrot.lane.b32.xlu0 %v5969, 32
        %v6014 = vpop.permute.xlu0 %6013
        %6015 = vrot.lane.b32.xlu0 %v5970, 32
        %v6016 = vpop.permute.xlu0 %6015
        %6017 = vrot.lane.b32.xlu0 %v5971, 32
        %v6018 = vpop.permute.xlu0 %6017
        %6019 = vrot.lane.b32.xlu0 %v5972, 32
        %v6020 = vpop.permute.xlu0 %6019
        %v6037 = vadd.f32 %v5877, %v5990
        %v6038 = vadd.f32 %v5878, %v5992
        %v6039 = vadd.f32 %v5879, %v5994
        %v6040 = vadd.f32 %v5880, %v5996
        %v6041 = vadd.f32 %v5881, %v5998
        %v6042 = vadd.f32 %v5882, %v6000
        %v6043 = vadd.f32 %v5883, %v6002
        %v6044 = vadd.f32 %v5884, %v6004
        %v6045 = vadd.f32 %v5885, %v6006
        %v6046 = vadd.f32 %v5886, %v6008
        %v6047 = vadd.f32 %v5887, %v6010
        %v6048 = vadd.f32 %v5888, %v6012
        %v6049 = vadd.f32 %v5889, %v6014
        %v6050 = vadd.f32 %v5890, %v6016
        %v6051 = vadd.f32 %v5891, %v6018
        %v6052 = vadd.f32 %v5892, %v6020
        %v6053 = vmul.f32 %v6037, %v5446
        %v6054 = vmul.f32 %v6038, %v5448
        %v6055 = vmul.f32 %v6039, %v5450
        %v6056 = vmul.f32 %v6040, %v5452
        %v6057 = vmul.f32 %v6041, %v5454
        %v6058 = vmul.f32 %v6042, %v5456
        %v6059 = vmul.f32 %v6043, %v5458
        %v6060 = vmul.f32 %v6044, %v5460
        %v6061 = vmul.f32 %v6045, %v5462
        %v6062 = vmul.f32 %v6046, %v5464
        %v6063 = vmul.f32 %v6047, %v5466
        %v6064 = vmul.f32 %v6048, %v5468
        %v6065 = vmul.f32 %v6049, %v5470
        %v6066 = vmul.f32 %v6050, %v5472
        %v6067 = vmul.f32 %v6051, %v5474
        %v6068 = vmul.f32 %v6052, %v5476
        %6085 = vrot.lane.b32.xlu0 %v6053, 96
        %v6086 = vpop.permute.xlu0 %6085
        %6087 = vrot.lane.b32.xlu0 %v6054, 96
        %v6088 = vpop.permute.xlu0 %6087
        %6089 = vrot.lane.b32.xlu0 %v6055, 96
        %v6090 = vpop.permute.xlu0 %6089
        %6091 = vrot.lane.b32.xlu0 %v6056, 96
        %v6092 = vpop.permute.xlu0 %6091
        %6093 = vrot.lane.b32.xlu0 %v6057, 96
        %v6094 = vpop.permute.xlu0 %6093
        %6095 = vrot.lane.b32.xlu0 %v6058, 96
        %v6096 = vpop.permute.xlu0 %6095
        %6097 = vrot.lane.b32.xlu0 %v6059, 96
        %v6098 = vpop.permute.xlu0 %6097
        %6099 = vrot.lane.b32.xlu0 %v6060, 96
        %v6100 = vpop.permute.xlu0 %6099
        %6101 = vrot.lane.b32.xlu0 %v6061, 96
        %v6102 = vpop.permute.xlu0 %6101
        %6103 = vrot.lane.b32.xlu0 %v6062, 96
        %v6104 = vpop.permute.xlu0 %6103
        %6105 = vrot.lane.b32.xlu0 %v6063, 96
        %v6106 = vpop.permute.xlu0 %6105
        %6107 = vrot.lane.b32.xlu0 %v6064, 96
        %v6108 = vpop.permute.xlu0 %6107
        %6109 = vrot.lane.b32.xlu0 %v6065, 96
        %v6110 = vpop.permute.xlu0 %6109
        %6111 = vrot.lane.b32.xlu0 %v6066, 96
        %v6112 = vpop.permute.xlu0 %6111
        %6113 = vrot.lane.b32.xlu0 %v6067, 96
        %v6114 = vpop.permute.xlu0 %6113
        %6115 = vrot.lane.b32.xlu0 %v6068, 96
        %v6116 = vpop.permute.xlu0 %6115
        %vm6133 = vcmask 1048320
        %6134 = vst.msk [vmem:[#allocation2] sm:$0xff] %vm6133, %v6086
        %6135 = vst.msk [vmem:[#allocation2 + $0x8] sm:$0xff] %vm6133, %v6088
        %6136 = vst.msk [vmem:[#allocation2 + $0x10] sm:$0xff] %vm6133, %v6090
        %6137 = vst.msk [vmem:[#allocation2 + $0x18] sm:$0xff] %vm6133, %v6092
        %6138 = vst.msk [vmem:[#allocation2 + $0x20] sm:$0xff] %vm6133, %v6094
        %6139 = vst.msk [vmem:[#allocation2 + $0x28] sm:$0xff] %vm6133, %v6096
        %6140 = vst.msk [vmem:[#allocation2 + $0x30] sm:$0xff] %vm6133, %v6098
        %6141 = vst.msk [vmem:[#allocation2 + $0x38] sm:$0xff] %vm6133, %v6100
        %6142 = vst.msk [vmem:[#allocation2 + $0x40] sm:$0xff] %vm6133, %v6102
        %6143 = vst.msk [vmem:[#allocation2 + $0x48] sm:$0xff] %vm6133, %v6104
        %6144 = vst.msk [vmem:[#allocation2 + $0x50] sm:$0xff] %vm6133, %v6106
        %6145 = vst.msk [vmem:[#allocation2 + $0x58] sm:$0xff] %vm6133, %v6108
        %6146 = vst.msk [vmem:[#allocation2 + $0x60] sm:$0xff] %vm6133, %v6110
        %6147 = vst.msk [vmem:[#allocation2 + $0x68] sm:$0xff] %vm6133, %v6112
        %6148 = vst.msk [vmem:[#allocation2 + $0x70] sm:$0xff] %vm6133, %v6114
        %6149 = vst.msk [vmem:[#allocation2 + $0x78] sm:$0xff] %vm6133, %v6116
        %v6150 = vld [vmem:[#allocation2] sm:$0xff]
        %v6151 = vld [vmem:[#allocation2 + $0x8] sm:$0xff]
        %v6152 = vld [vmem:[#allocation2 + $0x10] sm:$0xff]
        %v6153 = vld [vmem:[#allocation2 + $0x18] sm:$0xff]
        %v6154 = vld [vmem:[#allocation2 + $0x20] sm:$0xff]
        %v6155 = vld [vmem:[#allocation2 + $0x28] sm:$0xff]
        %v6156 = vld [vmem:[#allocation2 + $0x30] sm:$0xff]
        %v6157 = vld [vmem:[#allocation2 + $0x38] sm:$0xff]
        %v6158 = vld [vmem:[#allocation2 + $0x40] sm:$0xff]
        %v6159 = vld [vmem:[#allocation2 + $0x48] sm:$0xff]
        %v6160 = vld [vmem:[#allocation2 + $0x50] sm:$0xff]
        %v6161 = vld [vmem:[#allocation2 + $0x58] sm:$0xff]
        %v6162 = vld [vmem:[#allocation2 + $0x60] sm:$0xff]
        %v6163 = vld [vmem:[#allocation2 + $0x68] sm:$0xff]
        %v6164 = vld [vmem:[#allocation2 + $0x70] sm:$0xff]
        %v6165 = vld [vmem:[#allocation2 + $0x78] sm:$0xff]
        %v6166 = vld [vmem:[%s6] sm:$0xff]
        %v6167 = vld [vmem:[%s6 + $0x8] sm:$0xff]
        %v6168 = vld [vmem:[%s6 + $0x10] sm:$0xff]
        %v6169 = vld [vmem:[%s6 + $0x18] sm:$0xff]
        %v6170 = vld [vmem:[%s6 + $0x20] sm:$0xff]
        %v6171 = vld [vmem:[%s6 + $0x28] sm:$0xff]
        %v6172 = vld [vmem:[%s6 + $0x30] sm:$0xff]
        %v6173 = vld [vmem:[%s6 + $0x38] sm:$0xff]
        %v6174 = vld [vmem:[%s6 + $0x40] sm:$0xff]
        %v6175 = vld [vmem:[%s6 + $0x48] sm:$0xff]
        %v6176 = vld [vmem:[%s6 + $0x50] sm:$0xff]
        %v6177 = vld [vmem:[%s6 + $0x58] sm:$0xff]
        %v6178 = vld [vmem:[%s6 + $0x60] sm:$0xff]
        %v6179 = vld [vmem:[%s6 + $0x68] sm:$0xff]
        %v6180 = vld [vmem:[%s6 + $0x70] sm:$0xff]
        %v6181 = vld [vmem:[%s6 + $0x78] sm:$0xff]
        %v6182 = vld [vmem:[%s7] sm:$0x1]
        %v6184 = vlaneseq
        %v6185 = vshrl.u32 %v6184, 7
        %v6186 = vsub.s32 0, %v6185
        %v6187 = vrot.slane %v6182, %v6186
        %6189 = vmatprep.subr.mxu0 0.0
        %6190 = vmatpush1.msra.mxu0 %v6166
        %6191 = vmatprep.subr.mxu0 0.0
        %6192 = vmatpush1.msra.mxu0 %v6167
        %6193 = vmatprep.subr.mxu0 0.0
        %6194 = vmatpush1.msra.mxu0 %v6168
        %6195 = vmatprep.subr.mxu0 0.0
        %6196 = vmatpush1.msra.mxu0 %v6169
        %6197 = vmatprep.subr.mxu0 0.0
        %6198 = vmatpush1.msra.mxu0 %v6170
        %6199 = vmatprep.subr.mxu0 0.0
        %6200 = vmatpush1.msra.mxu0 %v6171
        %6201 = vmatprep.subr.mxu0 0.0
        %6202 = vmatpush1.msra.mxu0 %v6172
        %6203 = vmatprep.subr.mxu0 0.0
        %6204 = vmatpush1.msra.mxu0 %v6173
        %6205 = vmatprep.subr.mxu0 0.0
        %6206 = vmatpush1.msra.mxu0 %v6174
        %6207 = vmatprep.subr.mxu0 0.0
        %6208 = vmatpush1.msra.mxu0 %v6175
        %6209 = vmatprep.subr.mxu0 0.0
        %6210 = vmatpush1.msra.mxu0 %v6176
        %6211 = vmatprep.subr.mxu0 0.0
        %6212 = vmatpush1.msra.mxu0 %v6177
        %6213 = vmatprep.subr.mxu0 0.0
        %6214 = vmatpush1.msra.mxu0 %v6178
        %6215 = vmatprep.subr.mxu0 0.0
        %6216 = vmatpush1.msra.mxu0 %v6179
        %6217 = vmatprep.subr.mxu0 0.0
        %6218 = vmatpush1.msra.mxu0 %v6180
        %6219 = vmatprep.subr.mxu0 0.0
        %6220 = vmatpush1.msra.mxu0 %v6181
        %6221 = vmatprep.subr.mxu0 0.0
        %6222 = vmatpush1.msra.mxu0 0.0
        %6223 = vmatprep.subr.mxu0 0.0
        %6224 = vmatpush1.msra.mxu0 0.0
        %6225 = vmatprep.subr.mxu0 0.0
        %6226 = vmatpush1.msra.mxu0 0.0
        %6227 = vmatprep.subr.mxu0 0.0
        %6228 = vmatpush1.msra.mxu0 0.0
        %6229 = vmatprep.subr.mxu0 0.0
        %6230 = vmatpush1.msra.mxu0 0.0
        %6231 = vmatprep.subr.mxu0 0.0
        %6232 = vmatpush1.msra.mxu0 0.0
        %6233 = vmatprep.subr.mxu0 0.0
        %6234 = vmatpush1.msra.mxu0 0.0
        %6235 = vmatprep.subr.mxu0 0.0
        %6236 = vmatpush1.msra.mxu0 0.0
        %6237 = vmatprep.subr.mxu0 0.0
        %6238 = vmatpush1.msra.mxu0 0.0
        %6239 = vmatprep.subr.mxu0 0.0
        %6240 = vmatpush1.msra.mxu0 0.0
        %6241 = vmatprep.subr.mxu0 0.0
        %6242 = vmatpush1.msra.mxu0 0.0
        %6243 = vmatprep.subr.mxu0 0.0
        %6244 = vmatpush1.msra.mxu0 0.0
        %6245 = vmatprep.subr.mxu0 0.0
        %6246 = vmatpush1.msra.mxu0 0.0
        %6247 = vmatprep.subr.mxu0 0.0
        %6248 = vmatpush1.msra.mxu0 0.0
        %6249 = vmatprep.subr.mxu0 0.0
        %6250 = vmatpush1.msra.mxu0 0.0
        %6251 = vmatprep.subr.mxu0 0.0
        %6252 = vmatpush1.msra.mxu0 0.0
        %6253 = vmatprep.mubr.f32.mxu0 0.0
        %6254 = vmatmul.mubr.f32.gmra.mrb[0].mxu0 %v6150
        %v6255 = vpop.f32.mrb[0].mxu0
        %v6256 = vadd.f32 %v6187, %v6255
        %v6257 = vpop.f32.mrb[0].mxu0
        %6258 = vmatprep.mubr.f32.mxu0 0.0
        %6259 = vmatmul.mubr.f32.gmra.mrb[0].mxu0 %v6151
        %v6260 = vpop.f32.mrb[0].mxu0
        %v6261 = vadd.f32 %v6187, %v6260
        %v6262 = vpop.f32.mrb[0].mxu0
        %6263 = vmatprep.mubr.f32.mxu0 0.0
        %6264 = vmatmul.mubr.f32.gmra.mrb[0].mxu0 %v6152
        %v6265 = vpop.f32.mrb[0].mxu0
        %v6266 = vadd.f32 %v6187, %v6265
        %v6267 = vpop.f32.mrb[0].mxu0
        %6268 = vmatprep.mubr.f32.mxu0 0.0
        %6269 = vmatmul.mubr.f32.gmra.mrb[0].mxu0 %v6153
        %v6270 = vpop.f32.mrb[0].mxu0
        %v6271 = vadd.f32 %v6187, %v6270
        %v6272 = vpop.f32.mrb[0].mxu0
        %6273 = vmatprep.mubr.f32.mxu0 0.0
        %6274 = vmatmul.mubr.f32.gmra.mrb[0].mxu0 %v6154
        %v6275 = vpop.f32.mrb[0].mxu0
        %v6276 = vadd.f32 %v6187, %v6275
        %v6277 = vpop.f32.mrb[0].mxu0
        %6278 = vmatprep.mubr.f32.mxu0 0.0
        %6279 = vmatmul.mubr.f32.gmra.mrb[0].mxu0 %v6155
        %v6280 = vpop.f32.mrb[0].mxu0
        %v6281 = vadd.f32 %v6187, %v6280
        %v6282 = vpop.f32.mrb[0].mxu0
        %6283 = vmatprep.mubr.f32.mxu0 0.0
        %6284 = vmatmul.mubr.f32.gmra.mrb[0].mxu0 %v6156
        %v6285 = vpop.f32.mrb[0].mxu0
        %v6286 = vadd.f32 %v6187, %v6285
        %v6287 = vpop.f32.mrb[0].mxu0
        %6288 = vmatprep.mubr.f32.mxu0 0.0
        %6289 = vmatmul.mubr.f32.gmra.mrb[0].mxu0 %v6157
        %v6290 = vpop.f32.mrb[0].mxu0
        %v6291 = vadd.f32 %v6187, %v6290
        %v6292 = vpop.f32.mrb[0].mxu0
        %6293 = vmatprep.mubr.f32.mxu0 0.0
        %6294 = vmatmul.mubr.f32.gmra.mrb[0].mxu0 %v6158
        %v6295 = vpop.f32.mrb[0].mxu0
        %v6296 = vadd.f32 %v6187, %v6295
        %v6297 = vpop.f32.mrb[0].mxu0
        %6298 = vmatprep.mubr.f32.mxu0 0.0
        %6299 = vmatmul.mubr.f32.gmra.mrb[0].mxu0 %v6159
        %v6300 = vpop.f32.mrb[0].mxu0
        %v6301 = vadd.f32 %v6187, %v6300
        %v6302 = vpop.f32.mrb[0].mxu0
        %6303 = vmatprep.mubr.f32.mxu0 0.0
        %6304 = vmatmul.mubr.f32.gmra.mrb[0].mxu0 %v6160
        %v6305 = vpop.f32.mrb[0].mxu0
        %v6306 = vadd.f32 %v6187, %v6305
        %v6307 = vpop.f32.mrb[0].mxu0
        %6308 = vmatprep.mubr.f32.mxu0 0.0
        %6309 = vmatmul.mubr.f32.gmra.mrb[0].mxu0 %v6161
        %v6310 = vpop.f32.mrb[0].mxu0
        %v6311 = vadd.f32 %v6187, %v6310
        %v6312 = vpop.f32.mrb[0].mxu0
        %6313 = vmatprep.mubr.f32.mxu0 0.0
        %6314 = vmatmul.mubr.f32.gmra.mrb[0].mxu0 %v6162
        %v6315 = vpop.f32.mrb[0].mxu0
        %v6316 = vadd.f32 %v6187, %v6315
        %v6317 = vpop.f32.mrb[0].mxu0
        %6318 = vmatprep.mubr.f32.mxu0 0.0
        %6319 = vmatmul.mubr.f32.gmra.mrb[0].mxu0 %v6163
        %v6320 = vpop.f32.mrb[0].mxu0
        %v6321 = vadd.f32 %v6187, %v6320
        %v6322 = vpop.f32.mrb[0].mxu0
        %6323 = vmatprep.mubr.f32.mxu0 0.0
        %6324 = vmatmul.mubr.f32.gmra.mrb[0].mxu0 %v6164
        %v6325 = vpop.f32.mrb[0].mxu0
        %v6326 = vadd.f32 %v6187, %v6325
        %v6327 = vpop.f32.mrb[0].mxu0
        %6328 = vmatprep.mubr.f32.mxu0 0.0
        %6329 = vmatmul.mubr.f32.gmra.mrb[0].mxu0 %v6165
        %v6330 = vpop.f32.mrb[0].mxu0
        %v6331 = vadd.f32 %v6187, %v6330
        %v6332 = vpop.f32.mrb[0].mxu0
        %6333 = vdwg.mxu0
        %6334 = vst [vmem:[%s331] sm:$0xff] %v6256
        %6335 = vst [vmem:[%s331 + $0x8] sm:$0xff] %v6261
        %6336 = vst [vmem:[%s331 + $0x10] sm:$0xff] %v6266
        %6337 = vst [vmem:[%s331 + $0x18] sm:$0xff] %v6271
        %6338 = vst [vmem:[%s331 + $0x20] sm:$0xff] %v6276
        %6339 = vst [vmem:[%s331 + $0x28] sm:$0xff] %v6281
        %6340 = vst [vmem:[%s331 + $0x30] sm:$0xff] %v6286
        %6341 = vst [vmem:[%s331 + $0x38] sm:$0xff] %v6291
        %6342 = vst [vmem:[%s331 + $0x40] sm:$0xff] %v6296
        %6343 = vst [vmem:[%s331 + $0x48] sm:$0xff] %v6301
        %6344 = vst [vmem:[%s331 + $0x50] sm:$0xff] %v6306
        %6345 = vst [vmem:[%s331 + $0x58] sm:$0xff] %v6311
        %6346 = vst [vmem:[%s331 + $0x60] sm:$0xff] %v6316
        %6347 = vst [vmem:[%s331 + $0x68] sm:$0xff] %v6321
        %6348 = vst [vmem:[%s331 + $0x70] sm:$0xff] %v6326
        %6349 = vst [vmem:[%s331 + $0x78] sm:$0xff] %v6331
        %s6350 = sand.u32 %s213, 1
        %s6351 = scalar_lea.sflag [#allocation4], %s6350
        %s6352 = sand.u32 %s213, 1
        %s6353 = smul.addr %s6352, 128
        %s6354 = scalar_lea.vmem [#allocation3], %s6353
        // Predicated region
        $region53: #{tpu_custom_call.1} parent=51 // pred_check
          %p6355 = pneg %p223
        $region54: #{tpu_custom_call.1} parent=51 // pred_check_branch
          %6357 = sbr.rel (%p6355) target = $region56
        $region55: #{tpu_custom_call.1} parent=51 // pred_region
          %s6358 = smul.u32 16, %s22
          %s6360 = ssub.s32 2048, 2048
          %6361 = vsyncadd %s6351, %s6360
          %s6362 = smul.addr %s6358, 128
          %s6363 = scalar_lea.hbm %s8, %s6362
          %s6364 = sshll.u32 %s6354, 4
          %s6365 = int_to_ptr.vmem [resolvable:$true] %s6364
          %6370 = dma.vmem_to_hbm [thread:$0]  %s6365, 2048, %s6363, %s6351, 128, 128, 8
        $region56: #{tpu_custom_call.1} parent=51 // pred_fallthru
          _
      $region52: #{tpu_custom_call.1} parent=5 // pred_fallthru
        _
      %p6371 = scmp.le.s32.totalorder 2, %s17
      // Predicated region
      $region57: #{tpu_custom_call.1} parent=5 // pred_check
        %p6372 = pneg %p6371
      $region58: #{tpu_custom_call.1} parent=5 // pred_check_branch
        %6374 = sbr.rel (%p6372) target = $region60
      $region59: #{tpu_custom_call.1} parent=5 // pred_region
        %s6375 = ssub.s32 %s17, 2
        // Predicated region
        $region61: #{tpu_custom_call.1} parent=59 // pred_check
          %p6376 = pneg %p229
        $region62: #{tpu_custom_call.1} parent=59 // pred_check_branch
          %6378 = sbr.rel (%p6376) target = $region64
        $region63: #{tpu_custom_call.1} parent=59 // pred_region
          %s6379 = sand.u32 %s214, 1
          %s6380 = scalar_lea.sflag [#allocation4], %s6379
          %s6381 = sand.u32 %s214, 1
          %s6382 = smul.addr %s6381, 128
          %s6383 = scalar_lea.vmem [#allocation3], %s6382
          %6384 = dma.done %s6380, 2048
        $region64: #{tpu_custom_call.1} parent=59 // pred_fallthru
          _
      $region60: #{tpu_custom_call.1} parent=5 // pred_fallthru
        _
    $region6: #{tpu_custom_call.1} parent=1 // loop_footer
      %s21 = sadd.s32 1, %s17
    $region7: #{tpu_custom_call.1} parent=1 // loop_footer_branch
      %16 = sbr.rel target = $region3
    $region8: #{tpu_custom_call.1} parent=1 // loop_exit
      _
    %6385 = vsyncpa [#allocation4], 1
    %s6386 = scalar_lea.sflag [#allocation4], 1
    %6387 = vsyncpa %s6386, 1

</llo_original>
